<compile_context>
chip_gen: v7x
topology: tpu7x:2x2x1
jax: 0.10.0
libtpu: 0.0.40
codegen_flags: <defaults>
</compile_context>

<pallas_src>
import functools
from math import sqrt

import jax
import jax.numpy as jnp
from jax.experimental import pallas as pl
from jax.experimental.pallas import tpu as pltpu


# Lane offset of the activation interior inside the padded flat buffers.
# Must be >= W + 1 (flat halo for the row shifts); 128 keeps interior stores
# lane-aligned and unmasked.
PAD = 128


def vdsr_kernel(x_ref, w1_ref, wt_ref, w2_ref, o_ref,
                act_a, act_b, xpad, *, H, W):
    """Full VDSR forward for one batch element.

    x_ref : (1, 1, HW)       f32   flattened input row (lane-dense)
    w1_ref: (64, 9)          bf16  conv1 weights, [c_out, tap]
    wt_ref: (18*9, 64, 64)   bf16  trunk weights, [layer*9 + tap, c_out, c_in]
    w2_ref: (9, 8, 64)       bf16  conv2 weights, [tap, c_out (padded 1->8), c_in]
    o_ref : (1, 1, HW)       f32   flattened output row
    act_a : (64, 2*PAD+HW)   bf16  ping activation (interior at lanes [PAD, PAD+HW))
    act_b : (64, 2*PAD+HW)   bf16  pong activation
    xpad  : (1, 2*PAD+HW)    f32   padded single-channel input row
    """
    HW = H * W
    C = act_a.shape[0]                     # 64 hidden channels
    n_trunk = wt_ref.shape[0] // 9         # 18 trunk layers
    assert n_trunk % 2 == 0

    # --- per-batch-element init: zero ONLY the pad lanes (interiors are fully
    # overwritten every layer).  Done every grid step (not pl.when(pid==0)) so
    # it stays correct under megacore batch sharding; it is tiny.
    zc = jnp.zeros((C, PAD), jnp.bfloat16)
    act_a[:, :PAD] = zc
    act_a[:, PAD + HW:] = zc
    act_b[:, :PAD] = zc
    act_b[:, PAD + HW:] = zc
    z1 = jnp.zeros((1, PAD), jnp.float32)
    xpad[:, :PAD] = z1
    xpad[:, PAD + HW:] = z1

    # Original f32 input row (kept for the residual) and its bf16-rounded copy
    # that feeds conv1 (kernel math is bf16 operands / f32 accumulation).
    x_row = x_ref[...].reshape(1, HW)                        # f32
    xpad[:, PAD:PAD + HW] = x_row.astype(jnp.bfloat16).astype(jnp.float32)

    # Lane masks that kill the row-wrap column of the dx = 0 / dx = 2 taps.
    wcol = jax.lax.broadcasted_iota(jnp.int32, (1, HW), 1) % W
    has_left = wcol >= 1            # output column w has a left  neighbour
    has_right = wcol <= W - 2       # output column w has a right neighbour

    def shifted(src_ref, dy, dx):
        """(C_src, HW) ref slice holding the (dy-1, dx-1)-shifted activation
        with zeros outside the image ("same" padding)."""
        off = (dy - 1) * W + (dx - 1)
        s = src_ref[:, PAD + off:PAD + off + HW]
        if dx == 0:
            s = jnp.where(has_left, s, jnp.zeros_like(s))
        elif dx == 2:
            s = jnp.where(has_right, s, jnp.zeros_like(s))
        return s

    # ---- conv1: true 1 -> 64 conv as 9 VPU multiply-adds (outer products) ---
    acc = jnp.zeros((C, HW), jnp.float32)
    for t in range(9):
        dy, dx = divmod(t, 3)
        xt = shifted(xpad, dy, dx)                           # (1, HW)  f32
        w_col = w1_ref[:, t:t + 1].astype(jnp.float32)       # (C, 1)
        acc = acc + w_col * xt                               # (C, HW)  f32
    act_a[:, PAD:PAD + HW] = jnp.maximum(acc, 0.0).astype(jnp.bfloat16)

    # ---- 18 trunk layers: 9 accumulated K=64 MXU matmuls per layer ----------
    def conv64_relu(src_ref, dst_ref, layer):
        lacc = jnp.zeros((C, HW), jnp.float32)
        for t in range(9):
            dy, dx = divmod(t, 3)
            s = shifted(src_ref, dy, dx)                     # (C, HW) bf16
            w_t = wt_ref[layer * 9 + t]                      # (C, C)  bf16
            lacc = lacc + jnp.dot(w_t, s, preferred_element_type=jnp.float32)
        dst_ref[:, PAD:PAD + HW] = jnp.maximum(lacc, 0.0).astype(jnp.bfloat16)

    def two_layers(i, carry):
        conv64_relu(act_a, act_b, 2 * i)                     # A -> B
        conv64_relu(act_b, act_a, 2 * i + 1)                 # B -> A
        return carry

    jax.lax.fori_loop(0, n_trunk // 2, two_layers, 0)        # ends in act_a

    # ---- conv2 (64 -> 1, c_out padded to 8) + residual in f32 ---------------
    acc2 = jnp.zeros((8, HW), jnp.float32)
    for t in range(9):
        dy, dx = divmod(t, 3)
        s = shifted(act_a, dy, dx)
        acc2 = acc2 + jnp.dot(w2_ref[t], s, preferred_element_type=jnp.float32)
    o_ref[...] = (acc2[0:1, :] + x_row).reshape(1, 1, HW)


def vdsr_forward(params, x_nchw):
    """x_nchw: (B, 1, H, W) float32 -> (B, 1, H, W) float32."""
    B, C_in, H, W = x_nchw.shape
    assert C_in == 1, "VDSR is a single-channel model"
    assert W + 1 <= PAD, "image width must satisfy W + 1 <= PAD (flat halo)"
    HW = H * W

    # NCHW with C == 1 is bit-identical to a (B, 1, H*W) slab, so the HBM
    # input/output blocks are lane-dense (last dim = H*W, a multiple of 128
    # for the shapes used here).
    x_flat = x_nchw.reshape(B, 1, HW).astype(jnp.float32)

    kern = functools.partial(vdsr_kernel, H=H, W=W)
    out = pl.pallas_call(
        kern,
        out_shape=jax.ShapeDtypeStruct((B, 1, HW), jnp.float32),
        grid=(B,),
        in_specs=[
            pl.BlockSpec((1, 1, HW), lambda b: (b, 0, 0)),
            pl.BlockSpec(params["w1"].shape, lambda b: (0, 0)),
            pl.BlockSpec(params["w_trunk"].shape, lambda b: (0, 0, 0)),
            pl.BlockSpec(params["w2"].shape, lambda b: (0, 0, 0)),
        ],
        out_specs=pl.BlockSpec((1, 1, HW), lambda b: (b, 0, 0)),
        scratch_shapes=[
            pltpu.VMEM((64, 2 * PAD + HW), jnp.bfloat16),    # act_a (ping)
            pltpu.VMEM((64, 2 * PAD + HW), jnp.bfloat16),    # act_b (pong)
            pltpu.VMEM((1, 2 * PAD + HW), jnp.float32),      # padded input row
        ],
        compiler_params=pltpu.CompilerParams(
            dimension_semantics=("parallel",),
            # Actual VMEM use is ~5 MiB (weights + two small act buffers), so
            # 32 MiB is safe on every generation.  For larger fused images
            # raise toward ~100 MiB on v5e/v6e; size from 64 MiB/TC on v7x.
            vmem_limit_bytes=32 * 1024 * 1024),
    )(x_flat, params["w1"], params["w_trunk"], params["w2"])
    return out.reshape(B, 1, H, W)


def init_vdsr_params(key):
    """Deterministic init mirroring VDSR._initialize_weights:
    normal(0, sqrt(2 / (kh*kw*out_channels))), no bias.

    Returns (kernel_params, reference_weights):
      kernel_params["w1"]      : (64, 9)       bf16  conv1, [c_out, tap]
      kernel_params["w_trunk"] : (18*9, 64, 64) bf16  trunk, [l*9+t, c_out, c_in]
      kernel_params["w2"]      : (9, 8, 64)    bf16  conv2, c_out padded 1->8
      reference_weights        : f32 HWIO tensors for the pure-JAX reference.
    """
    keys = jax.random.split(key, 20)
    std64 = sqrt(2.0 / (3 * 3 * 64))
    std1 = sqrt(2.0 / (3 * 3 * 1))

    w1 = jax.random.normal(keys[0], (3, 3, 1, 64), jnp.float32) * std64
    trunk = [jax.random.normal(keys[1 + i], (3, 3, 64, 64), jnp.float32) * std64
             for i in range(18)]
    w2 = jax.random.normal(keys[19], (3, 3, 64, 1), jnp.float32) * std1

    # conv1 HWIO (3,3,1,64) -> (c_out, tap)
    w1_packed = jnp.transpose(w1.reshape(9, 64), (1, 0))            # (64, 9)
    # trunk HWIO (3,3,64,64) -> (tap, c_out, c_in), stacked over layers
    wt_packed = jnp.stack(
        [jnp.transpose(w.reshape(9, 64, 64), (0, 2, 1)) for w in trunk]
    ).reshape(18 * 9, 64, 64)
    # conv2 HWIO (3,3,64,1) -> (tap, c_out padded to 8, c_in)
    w2_packed = jnp.pad(jnp.transpose(w2.reshape(9, 64, 1), (0, 2, 1)),
                        ((0, 0), (0, 7), (0, 0)))                   # (9, 8, 64)

    kernel_params = {
        "w1": w1_packed.astype(jnp.bfloat16),
        "w_trunk": wt_packed.astype(jnp.bfloat16),
        "w2": w2_packed.astype(jnp.bfloat16),
    }
    ref_weights = {"w1": w1, "trunk": trunk, "w2": w2}
    return kernel_params, ref_weights


def vdsr_reference(ref_ws, x_nchw, mimic_kernel_bf16):
    """Pure-JAX reference (lax.conv, NHWC/HWIO).  With mimic_kernel_bf16=True
    it applies the same bf16-operand / f32-accumulate rounding as the kernel."""
    def conv(a, w, relu):
        if mimic_kernel_bf16:
            a = a.astype(jnp.bfloat16)
            w = w.astype(jnp.bfloat16)
        y = jax.lax.conv_general_dilated(
            a, w, window_strides=(1, 1), padding=((1, 1), (1, 1)),
            dimension_numbers=("NHWC", "HWIO", "NHWC"),
            preferred_element_type=jnp.float32)
        return jnp.maximum(y, 0.0) if relu else y

    x = jnp.transpose(x_nchw, (0, 2, 3, 1))                          # (B,H,W,1)
    a = conv(x, ref_ws["w1"], relu=True)
    for wt in ref_ws["trunk"]:
        a = conv(a, wt, relu=True)
    y = conv(a, ref_ws["w2"], relu=False)
    return jnp.transpose(y + x, (0, 3, 1, 2))


if __name__ == "__main__":
    key = jax.random.PRNGKey(0)
    kp, kx = jax.random.split(key)
    params, ref_ws = init_vdsr_params(kp)

    # Small deterministic input: batch=2, channels=1 (VDSR is single-channel), 16x16.
    x = jax.random.normal(kx, (2, 1, 16, 16), jnp.float32)

    out = jax.block_until_ready(vdsr_forward(params, x))
    assert out.shape == (2, 1, 16, 16)

    # Check vs a reference that uses the same bf16-operand / f32-accumulate
    # rounding as the kernel.  Both paths quantize activations to bf16 between
    # all 20 layers, so accumulation-order differences make a few bf16
    # roundings flip and drift by a couple of bf16 ulps (~0.02 measured on this
    # config); 0.1 still catches any tap / padding / layout / residual bug
    # (those produce O(1) errors).
    ref_b = jax.block_until_ready(vdsr_reference(ref_ws, x, mimic_kernel_bf16=True))
    err_b = float(jnp.max(jnp.abs(out - ref_b)))
    assert err_b < 1e-1, f"Pallas VDSR mismatch vs bf16 reference: {err_b}"

    # Loose sanity check vs the pure-f32 reference (bounds bf16 quantization drift).
    ref_f = jax.block_until_ready(vdsr_reference(ref_ws, x, mimic_kernel_bf16=False))
    err_f = float(jnp.max(jnp.abs(out - ref_f)))
    assert err_f < 0.10 * (1.0 + float(jnp.max(jnp.abs(ref_f)))), \
        f"Pallas VDSR deviates too far from f32 reference: {err_f}"

    print("KERNEL_OK")
</pallas_src>

<mosaic_0001>
module attributes {stable_mosaic.version = 11 : i64} {
  func.func @vdsr_kernel(%arg0: i32, %arg1: memref<1x1x256xf32, #tpu.memory_space<vmem>>, %arg2: memref<64x9xbf16, #tpu.memory_space<vmem>>, %arg3: memref<162x64x64xbf16, #tpu.memory_space<vmem>>, %arg4: memref<9x8x64xbf16, #tpu.memory_space<vmem>>, %arg5: memref<1x1x256xf32, #tpu.memory_space<vmem>>, %arg6: memref<64x512xbf16, #tpu.memory_space<vmem>>, %arg7: memref<64x512xbf16, #tpu.memory_space<vmem>>, %arg8: memref<1x512xf32, #tpu.memory_space<vmem>>) attributes {dimension_semantics = [#tpu.dimension_semantics<parallel>], iteration_bounds = array<i64: 2>, scalar_prefetch = 0 : i64, scratch_operands = 3 : i64, tpu.core_type = #tpu.core_type<tc>, window_params = [{transform_indices = @transform_0, window_bounds = array<i64: 1, 1, 256>}, {pipeline_mode = #tpu.pipeline_mode<synchronous>, transform_indices = @transform_1, window_bounds = array<i64: 64, 9>}, {pipeline_mode = #tpu.pipeline_mode<synchronous>, transform_indices = @transform_2, window_bounds = array<i64: 162, 64, 64>}, {pipeline_mode = #tpu.pipeline_mode<synchronous>, transform_indices = @transform_3, window_bounds = array<i64: 9, 8, 64>}, {transform_indices = @transform_4, window_bounds = array<i64: 1, 1, 256>}]} {
    %cst = arith.constant 0.000000e+00 : bf16
    %0 = vector.broadcast %cst : bf16 to vector<64x128xbf16>
    %c0 = arith.constant 0 : index
    %c0_0 = arith.constant 0 : index
    %1 = vector.load %arg6[%c0, %c0_0] : memref<64x512xbf16, #tpu.memory_space<vmem>>, vector<64x128xbf16>
    tpu.vector_store %arg6[%c0, %c0_0], %0 {strides = array<i32>} : memref<64x512xbf16, #tpu.memory_space<vmem>>, vector<64x128xbf16>,
    %c0_1 = arith.constant 0 : index
    %c384 = arith.constant 384 : index
    %2 = vector.load %arg6[%c0_1, %c384] : memref<64x512xbf16, #tpu.memory_space<vmem>>, vector<64x128xbf16>
    tpu.vector_store %arg6[%c0_1, %c384], %0 {strides = array<i32>} : memref<64x512xbf16, #tpu.memory_space<vmem>>, vector<64x128xbf16>,
    %c0_2 = arith.constant 0 : index
    %c0_3 = arith.constant 0 : index
    %3 = vector.load %arg7[%c0_2, %c0_3] : memref<64x512xbf16, #tpu.memory_space<vmem>>, vector<64x128xbf16>
    tpu.vector_store %arg7[%c0_2, %c0_3], %0 {strides = array<i32>} : memref<64x512xbf16, #tpu.memory_space<vmem>>, vector<64x128xbf16>,
    %c0_4 = arith.constant 0 : index
    %c384_5 = arith.constant 384 : index
    %4 = vector.load %arg7[%c0_4, %c384_5] : memref<64x512xbf16, #tpu.memory_space<vmem>>, vector<64x128xbf16>
    tpu.vector_store %arg7[%c0_4, %c384_5], %0 {strides = array<i32>} : memref<64x512xbf16, #tpu.memory_space<vmem>>, vector<64x128xbf16>,
    %cst_6 = arith.constant 0.000000e+00 : f32
    %5 = vector.broadcast %cst_6 : f32 to vector<1x128xf32>
    %c0_7 = arith.constant 0 : index
    %c0_8 = arith.constant 0 : index
    %6 = vector.load %arg8[%c0_7, %c0_8] : memref<1x512xf32, #tpu.memory_space<vmem>>, vector<1x128xf32>
    tpu.vector_store %arg8[%c0_7, %c0_8], %5 {strides = array<i32>} : memref<1x512xf32, #tpu.memory_space<vmem>>, vector<1x128xf32>,
    %c0_9 = arith.constant 0 : index
    %c384_10 = arith.constant 384 : index
    %7 = vector.load %arg8[%c0_9, %c384_10] : memref<1x512xf32, #tpu.memory_space<vmem>>, vector<1x128xf32>
    tpu.vector_store %arg8[%c0_9, %c384_10], %5 {strides = array<i32>} : memref<1x512xf32, #tpu.memory_space<vmem>>, vector<1x128xf32>,
    %c0_11 = arith.constant 0 : index
    %c0_12 = arith.constant 0 : index
    %c0_13 = arith.constant 0 : index
    %8 = vector.load %arg1[%c0_11, %c0_12, %c0_13] : memref<1x1x256xf32, #tpu.memory_space<vmem>>, vector<1x1x256xf32>
    %9 = vector.shape_cast %8 : vector<1x1x256xf32> to vector<1x256xf32>
    %10 = arith.truncf %9 : vector<1x256xf32> to vector<1x256xbf16>
    %11 = arith.extf %10 : vector<1x256xbf16> to vector<1x256xf32>
    %c0_14 = arith.constant 0 : index
    %c128 = arith.constant 128 : index
    %12 = vector.load %arg8[%c0_14, %c128] : memref<1x512xf32, #tpu.memory_space<vmem>>, vector<1x256xf32>
    tpu.vector_store %arg8[%c0_14, %c128], %11 {strides = array<i32>} : memref<1x512xf32, #tpu.memory_space<vmem>>, vector<1x256xf32>,
    %13 = tpu.iota {dimensions = array<i32: 1>} : vector<1x256xi32>
    %c16_i32 = arith.constant 16 : i32
    %c0_i32 = arith.constant 0 : i32
    %14 = arith.cmpi eq, %c16_i32, %c0_i32 : i32
    %c1_i32 = arith.constant 1 : i32
    %15 = arith.select %14, %c1_i32, %c16_i32 : i32
    %16 = vector.broadcast %15 : i32 to vector<1x256xi32>
    %17 = arith.remsi %13, %16 : vector<1x256xi32>
    %c0_i32_15 = arith.constant 0 : i32
    %18 = vector.broadcast %c0_i32_15 : i32 to vector<1x256xi32>
    %19 = arith.cmpi ne, %17, %18 : vector<1x256xi32>
    %c0_i32_16 = arith.constant 0 : i32
    %20 = vector.broadcast %c0_i32_16 : i32 to vector<1x256xi32>
    %21 = arith.cmpi slt, %17, %20 : vector<1x256xi32>
    %c0_i32_17 = arith.constant 0 : i32
    %22 = arith.cmpi slt, %15, %c0_i32_17 : i32
    %23 = vector.broadcast %22 : i1 to vector<1x256xi1>
    %24 = vector.broadcast %23 : vector<1x256xi1> to vector<1x256xi1>
    %25 = arith.xori %21, %24 : vector<1x256xi1>
    %26 = arith.andi %25, %19 : vector<1x256xi1>
    %27 = vector.broadcast %15 : i32 to vector<1x256xi32>
    %28 = arith.addi %17, %27 : vector<1x256xi32>
    %29 = arith.select %26, %28, %17 : vector<1x256xi1>, vector<1x256xi32>
    %c1_i32_18 = arith.constant 1 : i32
    %30 = vector.broadcast %c1_i32_18 : i32 to vector<1x256xi32>
    %31 = arith.cmpi sge, %29, %30 : vector<1x256xi32>
    %c14_i32 = arith.constant 14 : i32
    %32 = vector.broadcast %c14_i32 : i32 to vector<1x256xi32>
    %33 = arith.cmpi sle, %29, %32 : vector<1x256xi32>
    %cst_19 = arith.constant 0.000000e+00 : f32
    %34 = vector.broadcast %cst_19 : f32 to vector<64x256xf32>
    %c0_20 = arith.constant 0 : index
    %c111 = arith.constant 111 : index
    %35 = vector.load %arg8[%c0_20, %c111] : memref<1x512xf32, #tpu.memory_space<vmem>>, vector<1x256xf32>
    %cst_21 = arith.constant 0.000000e+00 : f32
    %36 = vector.broadcast %cst_21 : f32 to vector<1x256xf32>
    %37 = arith.select %31, %35, %36 : vector<1x256xi1>, vector<1x256xf32>
    %c0_22 = arith.constant 0 : index
    %c0_23 = arith.constant 0 : index
    %38 = vector.load %arg2[%c0_22, %c0_23] : memref<64x9xbf16, #tpu.memory_space<vmem>>, vector<64x1xbf16>
    %39 = arith.extf %38 : vector<64x1xbf16> to vector<64x1xf32>
    %40 = vector.broadcast %39 : vector<64x1xf32> to vector<64x256xf32>
    %41 = vector.broadcast %37 : vector<1x256xf32> to vector<64x256xf32>
    %42 = arith.mulf %40, %41 : vector<64x256xf32>
    %43 = arith.addf %34, %42 : vector<64x256xf32>
    %c0_24 = arith.constant 0 : index
    %c112 = arith.constant 112 : index
    %44 = vector.load %arg8[%c0_24, %c112] : memref<1x512xf32, #tpu.memory_space<vmem>>, vector<1x256xf32>
    %c0_25 = arith.constant 0 : index
    %c1 = arith.constant 1 : index
    %45 = vector.load %arg2[%c0_25, %c1] : memref<64x9xbf16, #tpu.memory_space<vmem>>, vector<64x1xbf16>
    %46 = arith.extf %45 : vector<64x1xbf16> to vector<64x1xf32>
    %47 = vector.broadcast %46 : vector<64x1xf32> to vector<64x256xf32>
    %48 = vector.broadcast %44 : vector<1x256xf32> to vector<64x256xf32>
    %49 = arith.mulf %47, %48 : vector<64x256xf32>
    %50 = arith.addf %43, %49 : vector<64x256xf32>
    %c0_26 = arith.constant 0 : index
    %c113 = arith.constant 113 : index
    %51 = vector.load %arg8[%c0_26, %c113] : memref<1x512xf32, #tpu.memory_space<vmem>>, vector<1x256xf32>
    %cst_27 = arith.constant 0.000000e+00 : f32
    %52 = vector.broadcast %cst_27 : f32 to vector<1x256xf32>
    %53 = arith.select %33, %51, %52 : vector<1x256xi1>, vector<1x256xf32>
    %c0_28 = arith.constant 0 : index
    %c2 = arith.constant 2 : index
    %54 = vector.load %arg2[%c0_28, %c2] : memref<64x9xbf16, #tpu.memory_space<vmem>>, vector<64x1xbf16>
    %55 = arith.extf %54 : vector<64x1xbf16> to vector<64x1xf32>
    %56 = vector.broadcast %55 : vector<64x1xf32> to vector<64x256xf32>
    %57 = vector.broadcast %53 : vector<1x256xf32> to vector<64x256xf32>
    %58 = arith.mulf %56, %57 : vector<64x256xf32>
    %59 = arith.addf %50, %58 : vector<64x256xf32>
    %c0_29 = arith.constant 0 : index
    %c127 = arith.constant 127 : index
    %60 = vector.load %arg8[%c0_29, %c127] : memref<1x512xf32, #tpu.memory_space<vmem>>, vector<1x256xf32>
    %cst_30 = arith.constant 0.000000e+00 : f32
    %61 = vector.broadcast %cst_30 : f32 to vector<1x256xf32>
    %62 = arith.select %31, %60, %61 : vector<1x256xi1>, vector<1x256xf32>
    %c0_31 = arith.constant 0 : index
    %c3 = arith.constant 3 : index
    %63 = vector.load %arg2[%c0_31, %c3] : memref<64x9xbf16, #tpu.memory_space<vmem>>, vector<64x1xbf16>
    %64 = arith.extf %63 : vector<64x1xbf16> to vector<64x1xf32>
    %65 = vector.broadcast %64 : vector<64x1xf32> to vector<64x256xf32>
    %66 = vector.broadcast %62 : vector<1x256xf32> to vector<64x256xf32>
    %67 = arith.mulf %65, %66 : vector<64x256xf32>
    %68 = arith.addf %59, %67 : vector<64x256xf32>
    %c0_32 = arith.constant 0 : index
    %c128_33 = arith.constant 128 : index
    %69 = vector.load %arg8[%c0_32, %c128_33] : memref<1x512xf32, #tpu.memory_space<vmem>>, vector<1x256xf32>
    %c0_34 = arith.constant 0 : index
    %c4 = arith.constant 4 : index
    %70 = vector.load %arg2[%c0_34, %c4] : memref<64x9xbf16, #tpu.memory_space<vmem>>, vector<64x1xbf16>
    %71 = arith.extf %70 : vector<64x1xbf16> to vector<64x1xf32>
    %72 = vector.broadcast %71 : vector<64x1xf32> to vector<64x256xf32>
    %73 = vector.broadcast %69 : vector<1x256xf32> to vector<64x256xf32>
    %74 = arith.mulf %72, %73 : vector<64x256xf32>
    %75 = arith.addf %68, %74 : vector<64x256xf32>
    %c0_35 = arith.constant 0 : index
    %c129 = arith.constant 129 : index
    %76 = vector.load %arg8[%c0_35, %c129] : memref<1x512xf32, #tpu.memory_space<vmem>>, vector<1x256xf32>
    %cst_36 = arith.constant 0.000000e+00 : f32
    %77 = vector.broadcast %cst_36 : f32 to vector<1x256xf32>
    %78 = arith.select %33, %76, %77 : vector<1x256xi1>, vector<1x256xf32>
    %c0_37 = arith.constant 0 : index
    %c5 = arith.constant 5 : index
    %79 = vector.load %arg2[%c0_37, %c5] : memref<64x9xbf16, #tpu.memory_space<vmem>>, vector<64x1xbf16>
    %80 = arith.extf %79 : vector<64x1xbf16> to vector<64x1xf32>
    %81 = vector.broadcast %80 : vector<64x1xf32> to vector<64x256xf32>
    %82 = vector.broadcast %78 : vector<1x256xf32> to vector<64x256xf32>
    %83 = arith.mulf %81, %82 : vector<64x256xf32>
    %84 = arith.addf %75, %83 : vector<64x256xf32>
    %c0_38 = arith.constant 0 : index
    %c143 = arith.constant 143 : index
    %85 = vector.load %arg8[%c0_38, %c143] : memref<1x512xf32, #tpu.memory_space<vmem>>, vector<1x256xf32>
    %cst_39 = arith.constant 0.000000e+00 : f32
    %86 = vector.broadcast %cst_39 : f32 to vector<1x256xf32>
    %87 = arith.select %31, %85, %86 : vector<1x256xi1>, vector<1x256xf32>
    %c0_40 = arith.constant 0 : index
    %c6 = arith.constant 6 : index
    %88 = vector.load %arg2[%c0_40, %c6] : memref<64x9xbf16, #tpu.memory_space<vmem>>, vector<64x1xbf16>
    %89 = arith.extf %88 : vector<64x1xbf16> to vector<64x1xf32>
    %90 = vector.broadcast %89 : vector<64x1xf32> to vector<64x256xf32>
    %91 = vector.broadcast %87 : vector<1x256xf32> to vector<64x256xf32>
    %92 = arith.mulf %90, %91 : vector<64x256xf32>
    %93 = arith.addf %84, %92 : vector<64x256xf32>
    %c0_41 = arith.constant 0 : index
    %c144 = arith.constant 144 : index
    %94 = vector.load %arg8[%c0_41, %c144] : memref<1x512xf32, #tpu.memory_space<vmem>>, vector<1x256xf32>
    %c0_42 = arith.constant 0 : index
    %c7 = arith.constant 7 : index
    %95 = vector.load %arg2[%c0_42, %c7] : memref<64x9xbf16, #tpu.memory_space<vmem>>, vector<64x1xbf16>
    %96 = arith.extf %95 : vector<64x1xbf16> to vector<64x1xf32>
    %97 = vector.broadcast %96 : vector<64x1xf32> to vector<64x256xf32>
    %98 = vector.broadcast %94 : vector<1x256xf32> to vector<64x256xf32>
    %99 = arith.mulf %97, %98 : vector<64x256xf32>
    %100 = arith.addf %93, %99 : vector<64x256xf32>
    %c0_43 = arith.constant 0 : index
    %c145 = arith.constant 145 : index
    %101 = vector.load %arg8[%c0_43, %c145] : memref<1x512xf32, #tpu.memory_space<vmem>>, vector<1x256xf32>
    %cst_44 = arith.constant 0.000000e+00 : f32
    %102 = vector.broadcast %cst_44 : f32 to vector<1x256xf32>
    %103 = arith.select %33, %101, %102 : vector<1x256xi1>, vector<1x256xf32>
    %c0_45 = arith.constant 0 : index
    %c8 = arith.constant 8 : index
    %104 = vector.load %arg2[%c0_45, %c8] : memref<64x9xbf16, #tpu.memory_space<vmem>>, vector<64x1xbf16>
    %105 = arith.extf %104 : vector<64x1xbf16> to vector<64x1xf32>
    %106 = vector.broadcast %105 : vector<64x1xf32> to vector<64x256xf32>
    %107 = vector.broadcast %103 : vector<1x256xf32> to vector<64x256xf32>
    %108 = arith.mulf %106, %107 : vector<64x256xf32>
    %109 = arith.addf %100, %108 : vector<64x256xf32>
    %cst_46 = arith.constant 0.000000e+00 : f32
    %110 = vector.broadcast %cst_46 : f32 to vector<64x256xf32>
    %111 = arith.maximumf %109, %110 : vector<64x256xf32>
    %112 = arith.truncf %111 : vector<64x256xf32> to vector<64x256xbf16>
    %c0_47 = arith.constant 0 : index
    %c128_48 = arith.constant 128 : index
    %113 = vector.load %arg6[%c0_47, %c128_48] : memref<64x512xbf16, #tpu.memory_space<vmem>>, vector<64x256xbf16>
    tpu.vector_store %arg6[%c0_47, %c128_48], %112 {strides = array<i32>} : memref<64x512xbf16, #tpu.memory_space<vmem>>, vector<64x256xbf16>,
    %c0_i32_49 = arith.constant 0 : i32
    %c9_i32 = arith.constant 9 : i32
    %114 = arith.addi %c0_i32_49, %c9_i32 : i32
    %c1_i32_50 = arith.constant 1 : i32
    scf.for %arg9 = %c0_i32_49 to %114 step %c1_i32_50  : i32 {
      %c2_i32 = arith.constant 2 : i32
      %189 = arith.muli %c2_i32, %arg9 : i32
      %cst_116 = arith.constant 0.000000e+00 : f32
      %190 = vector.broadcast %cst_116 : f32 to vector<64x256xf32>
      %c0_117 = arith.constant 0 : index
      %c111_118 = arith.constant 111 : index
      %191 = vector.load %arg6[%c0_117, %c111_118] : memref<64x512xbf16, #tpu.memory_space<vmem>>, vector<64x256xbf16>
      %cst_119 = arith.constant 0.000000e+00 : bf16
      %192 = vector.broadcast %cst_119 : bf16 to vector<64x256xbf16>
      %193 = vector.shape_cast %31 : vector<1x256xi1> to vector<1x256xi1>
      %194 = vector.broadcast %193 : vector<1x256xi1> to vector<64x256xi1>
      %195 = arith.select %194, %191, %192 : vector<64x256xi1>, vector<64x256xbf16>
      %c9_i32_120 = arith.constant 9 : i32
      %196 = arith.muli %189, %c9_i32_120 : i32
      %c0_i32_121 = arith.constant 0 : i32
      %197 = arith.addi %196, %c0_i32_121 : i32
      %198 = arith.index_cast %197 : i32 to index
      %c0_122 = arith.constant 0 : index
      %c0_123 = arith.constant 0 : index
      %199 = vector.load %arg3[%198, %c0_122, %c0_123] : memref<162x64x64xbf16, #tpu.memory_space<vmem>>, vector<1x64x64xbf16>
      %200 = vector.shape_cast %199 : vector<1x64x64xbf16> to vector<64x64xbf16>
      %cst_124 = arith.constant dense<0.000000e+00> : vector<64x256xf32>
      %201 = tpu.matmul %200, %195, %cst_124 {dimension_numbers = #tpu.dot_dimension_numbers<[1], [0], [0], [1], [0, 0, 1, 1], [], []>} : vector<64x64xbf16>, vector<64x256xbf16>, vector<64x256xf32> -> vector<64x256xf32>
      %202 = arith.addf %190, %201 : vector<64x256xf32>
      %c0_125 = arith.constant 0 : index
      %c112_126 = arith.constant 112 : index
      %203 = vector.load %arg6[%c0_125, %c112_126] : memref<64x512xbf16, #tpu.memory_space<vmem>>, vector<64x256xbf16>
      %c9_i32_127 = arith.constant 9 : i32
      %204 = arith.muli %189, %c9_i32_127 : i32
      %c1_i32_128 = arith.constant 1 : i32
      %205 = arith.addi %204, %c1_i32_128 : i32
      %206 = arith.index_cast %205 : i32 to index
      %c0_129 = arith.constant 0 : index
      %c0_130 = arith.constant 0 : index
      %207 = vector.load %arg3[%206, %c0_129, %c0_130] : memref<162x64x64xbf16, #tpu.memory_space<vmem>>, vector<1x64x64xbf16>
      %208 = vector.shape_cast %207 : vector<1x64x64xbf16> to vector<64x64xbf16>
      %cst_131 = arith.constant dense<0.000000e+00> : vector<64x256xf32>
      %209 = tpu.matmul %208, %203, %cst_131 {dimension_numbers = #tpu.dot_dimension_numbers<[1], [0], [0], [1], [0, 0, 1, 1], [], []>} : vector<64x64xbf16>, vector<64x256xbf16>, vector<64x256xf32> -> vector<64x256xf32>
      %210 = arith.addf %202, %209 : vector<64x256xf32>
      %c0_132 = arith.constant 0 : index
      %c113_133 = arith.constant 113 : index
      %211 = vector.load %arg6[%c0_132, %c113_133] : memref<64x512xbf16, #tpu.memory_space<vmem>>, vector<64x256xbf16>
      %cst_134 = arith.constant 0.000000e+00 : bf16
      %212 = vector.broadcast %cst_134 : bf16 to vector<64x256xbf16>
      %213 = vector.shape_cast %33 : vector<1x256xi1> to vector<1x256xi1>
      %214 = vector.broadcast %213 : vector<1x256xi1> to vector<64x256xi1>
      %215 = arith.select %214, %211, %212 : vector<64x256xi1>, vector<64x256xbf16>
      %c9_i32_135 = arith.constant 9 : i32
      %216 = arith.muli %189, %c9_i32_135 : i32
      %c2_i32_136 = arith.constant 2 : i32
      %217 = arith.addi %216, %c2_i32_136 : i32
      %218 = arith.index_cast %217 : i32 to index
      %c0_137 = arith.constant 0 : index
      %c0_138 = arith.constant 0 : index
      %219 = vector.load %arg3[%218, %c0_137, %c0_138] : memref<162x64x64xbf16, #tpu.memory_space<vmem>>, vector<1x64x64xbf16>
      %220 = vector.shape_cast %219 : vector<1x64x64xbf16> to vector<64x64xbf16>
      %cst_139 = arith.constant dense<0.000000e+00> : vector<64x256xf32>
      %221 = tpu.matmul %220, %215, %cst_139 {dimension_numbers = #tpu.dot_dimension_numbers<[1], [0], [0], [1], [0, 0, 1, 1], [], []>} : vector<64x64xbf16>, vector<64x256xbf16>, vector<64x256xf32> -> vector<64x256xf32>
      %222 = arith.addf %210, %221 : vector<64x256xf32>
      %c0_140 = arith.constant 0 : index
      %c127_141 = arith.constant 127 : index
      %223 = vector.load %arg6[%c0_140, %c127_141] : memref<64x512xbf16, #tpu.memory_space<vmem>>, vector<64x256xbf16>
      %cst_142 = arith.constant 0.000000e+00 : bf16
      %224 = vector.broadcast %cst_142 : bf16 to vector<64x256xbf16>
      %225 = vector.shape_cast %31 : vector<1x256xi1> to vector<1x256xi1>
      %226 = vector.broadcast %225 : vector<1x256xi1> to vector<64x256xi1>
      %227 = arith.select %226, %223, %224 : vector<64x256xi1>, vector<64x256xbf16>
      %c9_i32_143 = arith.constant 9 : i32
      %228 = arith.muli %189, %c9_i32_143 : i32
      %c3_i32 = arith.constant 3 : i32
      %229 = arith.addi %228, %c3_i32 : i32
      %230 = arith.index_cast %229 : i32 to index
      %c0_144 = arith.constant 0 : index
      %c0_145 = arith.constant 0 : index
      %231 = vector.load %arg3[%230, %c0_144, %c0_145] : memref<162x64x64xbf16, #tpu.memory_space<vmem>>, vector<1x64x64xbf16>
      %232 = vector.shape_cast %231 : vector<1x64x64xbf16> to vector<64x64xbf16>
      %cst_146 = arith.constant dense<0.000000e+00> : vector<64x256xf32>
      %233 = tpu.matmul %232, %227, %cst_146 {dimension_numbers = #tpu.dot_dimension_numbers<[1], [0], [0], [1], [0, 0, 1, 1], [], []>} : vector<64x64xbf16>, vector<64x256xbf16>, vector<64x256xf32> -> vector<64x256xf32>
      %234 = arith.addf %222, %233 : vector<64x256xf32>
      %c0_147 = arith.constant 0 : index
      %c128_148 = arith.constant 128 : index
      %235 = vector.load %arg6[%c0_147, %c128_148] : memref<64x512xbf16, #tpu.memory_space<vmem>>, vector<64x256xbf16>
      %c9_i32_149 = arith.constant 9 : i32
      %236 = arith.muli %189, %c9_i32_149 : i32
      %c4_i32 = arith.constant 4 : i32
      %237 = arith.addi %236, %c4_i32 : i32
      %238 = arith.index_cast %237 : i32 to index
      %c0_150 = arith.constant 0 : index
      %c0_151 = arith.constant 0 : index
      %239 = vector.load %arg3[%238, %c0_150, %c0_151] : memref<162x64x64xbf16, #tpu.memory_space<vmem>>, vector<1x64x64xbf16>
      %240 = vector.shape_cast %239 : vector<1x64x64xbf16> to vector<64x64xbf16>
      %cst_152 = arith.constant dense<0.000000e+00> : vector<64x256xf32>
      %241 = tpu.matmul %240, %235, %cst_152 {dimension_numbers = #tpu.dot_dimension_numbers<[1], [0], [0], [1], [0, 0, 1, 1], [], []>} : vector<64x64xbf16>, vector<64x256xbf16>, vector<64x256xf32> -> vector<64x256xf32>
      %242 = arith.addf %234, %241 : vector<64x256xf32>
      %c0_153 = arith.constant 0 : index
      %c129_154 = arith.constant 129 : index
      %243 = vector.load %arg6[%c0_153, %c129_154] : memref<64x512xbf16, #tpu.memory_space<vmem>>, vector<64x256xbf16>
      %cst_155 = arith.constant 0.000000e+00 : bf16
      %244 = vector.broadcast %cst_155 : bf16 to vector<64x256xbf16>
      %245 = vector.shape_cast %33 : vector<1x256xi1> to vector<1x256xi1>
      %246 = vector.broadcast %245 : vector<1x256xi1> to vector<64x256xi1>
      %247 = arith.select %246, %243, %244 : vector<64x256xi1>, vector<64x256xbf16>
      %c9_i32_156 = arith.constant 9 : i32
      %248 = arith.muli %189, %c9_i32_156 : i32
      %c5_i32 = arith.constant 5 : i32
      %249 = arith.addi %248, %c5_i32 : i32
      %250 = arith.index_cast %249 : i32 to index
      %c0_157 = arith.constant 0 : index
      %c0_158 = arith.constant 0 : index
      %251 = vector.load %arg3[%250, %c0_157, %c0_158] : memref<162x64x64xbf16, #tpu.memory_space<vmem>>, vector<1x64x64xbf16>
      %252 = vector.shape_cast %251 : vector<1x64x64xbf16> to vector<64x64xbf16>
      %cst_159 = arith.constant dense<0.000000e+00> : vector<64x256xf32>
      %253 = tpu.matmul %252, %247, %cst_159 {dimension_numbers = #tpu.dot_dimension_numbers<[1], [0], [0], [1], [0, 0, 1, 1], [], []>} : vector<64x64xbf16>, vector<64x256xbf16>, vector<64x256xf32> -> vector<64x256xf32>
      %254 = arith.addf %242, %253 : vector<64x256xf32>
      %c0_160 = arith.constant 0 : index
      %c143_161 = arith.constant 143 : index
      %255 = vector.load %arg6[%c0_160, %c143_161] : memref<64x512xbf16, #tpu.memory_space<vmem>>, vector<64x256xbf16>
      %cst_162 = arith.constant 0.000000e+00 : bf16
      %256 = vector.broadcast %cst_162 : bf16 to vector<64x256xbf16>
      %257 = vector.shape_cast %31 : vector<1x256xi1> to vector<1x256xi1>
      %258 = vector.broadcast %257 : vector<1x256xi1> to vector<64x256xi1>
      %259 = arith.select %258, %255, %256 : vector<64x256xi1>, vector<64x256xbf16>
      %c9_i32_163 = arith.constant 9 : i32
      %260 = arith.muli %189, %c9_i32_163 : i32
      %c6_i32 = arith.constant 6 : i32
      %261 = arith.addi %260, %c6_i32 : i32
      %262 = arith.index_cast %261 : i32 to index
      %c0_164 = arith.constant 0 : index
      %c0_165 = arith.constant 0 : index
      %263 = vector.load %arg3[%262, %c0_164, %c0_165] : memref<162x64x64xbf16, #tpu.memory_space<vmem>>, vector<1x64x64xbf16>
      %264 = vector.shape_cast %263 : vector<1x64x64xbf16> to vector<64x64xbf16>
      %cst_166 = arith.constant dense<0.000000e+00> : vector<64x256xf32>
      %265 = tpu.matmul %264, %259, %cst_166 {dimension_numbers = #tpu.dot_dimension_numbers<[1], [0], [0], [1], [0, 0, 1, 1], [], []>} : vector<64x64xbf16>, vector<64x256xbf16>, vector<64x256xf32> -> vector<64x256xf32>
      %266 = arith.addf %254, %265 : vector<64x256xf32>
      %c0_167 = arith.constant 0 : index
      %c144_168 = arith.constant 144 : index
      %267 = vector.load %arg6[%c0_167, %c144_168] : memref<64x512xbf16, #tpu.memory_space<vmem>>, vector<64x256xbf16>
      %c9_i32_169 = arith.constant 9 : i32
      %268 = arith.muli %189, %c9_i32_169 : i32
      %c7_i32 = arith.constant 7 : i32
      %269 = arith.addi %268, %c7_i32 : i32
      %270 = arith.index_cast %269 : i32 to index
      %c0_170 = arith.constant 0 : index
      %c0_171 = arith.constant 0 : index
      %271 = vector.load %arg3[%270, %c0_170, %c0_171] : memref<162x64x64xbf16, #tpu.memory_space<vmem>>, vector<1x64x64xbf16>
      %272 = vector.shape_cast %271 : vector<1x64x64xbf16> to vector<64x64xbf16>
      %cst_172 = arith.constant dense<0.000000e+00> : vector<64x256xf32>
      %273 = tpu.matmul %272, %267, %cst_172 {dimension_numbers = #tpu.dot_dimension_numbers<[1], [0], [0], [1], [0, 0, 1, 1], [], []>} : vector<64x64xbf16>, vector<64x256xbf16>, vector<64x256xf32> -> vector<64x256xf32>
      %274 = arith.addf %266, %273 : vector<64x256xf32>
      %c0_173 = arith.constant 0 : index
      %c145_174 = arith.constant 145 : index
      %275 = vector.load %arg6[%c0_173, %c145_174] : memref<64x512xbf16, #tpu.memory_space<vmem>>, vector<64x256xbf16>
      %cst_175 = arith.constant 0.000000e+00 : bf16
      %276 = vector.broadcast %cst_175 : bf16 to vector<64x256xbf16>
      %277 = vector.shape_cast %33 : vector<1x256xi1> to vector<1x256xi1>
      %278 = vector.broadcast %277 : vector<1x256xi1> to vector<64x256xi1>
      %279 = arith.select %278, %275, %276 : vector<64x256xi1>, vector<64x256xbf16>
      %c9_i32_176 = arith.constant 9 : i32
      %280 = arith.muli %189, %c9_i32_176 : i32
      %c8_i32 = arith.constant 8 : i32
      %281 = arith.addi %280, %c8_i32 : i32
      %282 = arith.index_cast %281 : i32 to index
      %c0_177 = arith.constant 0 : index
      %c0_178 = arith.constant 0 : index
      %283 = vector.load %arg3[%282, %c0_177, %c0_178] : memref<162x64x64xbf16, #tpu.memory_space<vmem>>, vector<1x64x64xbf16>
      %284 = vector.shape_cast %283 : vector<1x64x64xbf16> to vector<64x64xbf16>
      %cst_179 = arith.constant dense<0.000000e+00> : vector<64x256xf32>
      %285 = tpu.matmul %284, %279, %cst_179 {dimension_numbers = #tpu.dot_dimension_numbers<[1], [0], [0], [1], [0, 0, 1, 1], [], []>} : vector<64x64xbf16>, vector<64x256xbf16>, vector<64x256xf32> -> vector<64x256xf32>
      %286 = arith.addf %274, %285 : vector<64x256xf32>
      %cst_180 = arith.constant 0.000000e+00 : f32
      %287 = vector.broadcast %cst_180 : f32 to vector<64x256xf32>
      %288 = arith.maximumf %286, %287 : vector<64x256xf32>
      %289 = arith.truncf %288 : vector<64x256xf32> to vector<64x256xbf16>
      %c0_181 = arith.constant 0 : index
      %c128_182 = arith.constant 128 : index
      %290 = vector.load %arg7[%c0_181, %c128_182] : memref<64x512xbf16, #tpu.memory_space<vmem>>, vector<64x256xbf16>
      tpu.vector_store %arg7[%c0_181, %c128_182], %289 {strides = array<i32>} : memref<64x512xbf16, #tpu.memory_space<vmem>>, vector<64x256xbf16>,
      %c2_i32_183 = arith.constant 2 : i32
      %291 = arith.muli %c2_i32_183, %arg9 : i32
      %c1_i32_184 = arith.constant 1 : i32
      %292 = arith.addi %291, %c1_i32_184 : i32
      %cst_185 = arith.constant 0.000000e+00 : f32
      %293 = vector.broadcast %cst_185 : f32 to vector<64x256xf32>
      %c0_186 = arith.constant 0 : index
      %c111_187 = arith.constant 111 : index
      %294 = vector.load %arg7[%c0_186, %c111_187] : memref<64x512xbf16, #tpu.memory_space<vmem>>, vector<64x256xbf16>
      %cst_188 = arith.constant 0.000000e+00 : bf16
      %295 = vector.broadcast %cst_188 : bf16 to vector<64x256xbf16>
      %296 = vector.shape_cast %31 : vector<1x256xi1> to vector<1x256xi1>
      %297 = vector.broadcast %296 : vector<1x256xi1> to vector<64x256xi1>
      %298 = arith.select %297, %294, %295 : vector<64x256xi1>, vector<64x256xbf16>
      %c9_i32_189 = arith.constant 9 : i32
      %299 = arith.muli %292, %c9_i32_189 : i32
      %c0_i32_190 = arith.constant 0 : i32
      %300 = arith.addi %299, %c0_i32_190 : i32
      %301 = arith.index_cast %300 : i32 to index
      %c0_191 = arith.constant 0 : index
      %c0_192 = arith.constant 0 : index
      %302 = vector.load %arg3[%301, %c0_191, %c0_192] : memref<162x64x64xbf16, #tpu.memory_space<vmem>>, vector<1x64x64xbf16>
      %303 = vector.shape_cast %302 : vector<1x64x64xbf16> to vector<64x64xbf16>
      %cst_193 = arith.constant dense<0.000000e+00> : vector<64x256xf32>
      %304 = tpu.matmul %303, %298, %cst_193 {dimension_numbers = #tpu.dot_dimension_numbers<[1], [0], [0], [1], [0, 0, 1, 1], [], []>} : vector<64x64xbf16>, vector<64x256xbf16>, vector<64x256xf32> -> vector<64x256xf32>
      %305 = arith.addf %293, %304 : vector<64x256xf32>
      %c0_194 = arith.constant 0 : index
      %c112_195 = arith.constant 112 : index
      %306 = vector.load %arg7[%c0_194, %c112_195] : memref<64x512xbf16, #tpu.memory_space<vmem>>, vector<64x256xbf16>
      %c9_i32_196 = arith.constant 9 : i32
      %307 = arith.muli %292, %c9_i32_196 : i32
      %c1_i32_197 = arith.constant 1 : i32
      %308 = arith.addi %307, %c1_i32_197 : i32
      %309 = arith.index_cast %308 : i32 to index
      %c0_198 = arith.constant 0 : index
      %c0_199 = arith.constant 0 : index
      %310 = vector.load %arg3[%309, %c0_198, %c0_199] : memref<162x64x64xbf16, #tpu.memory_space<vmem>>, vector<1x64x64xbf16>
      %311 = vector.shape_cast %310 : vector<1x64x64xbf16> to vector<64x64xbf16>
      %cst_200 = arith.constant dense<0.000000e+00> : vector<64x256xf32>
      %312 = tpu.matmul %311, %306, %cst_200 {dimension_numbers = #tpu.dot_dimension_numbers<[1], [0], [0], [1], [0, 0, 1, 1], [], []>} : vector<64x64xbf16>, vector<64x256xbf16>, vector<64x256xf32> -> vector<64x256xf32>
      %313 = arith.addf %305, %312 : vector<64x256xf32>
      %c0_201 = arith.constant 0 : index
      %c113_202 = arith.constant 113 : index
      %314 = vector.load %arg7[%c0_201, %c113_202] : memref<64x512xbf16, #tpu.memory_space<vmem>>, vector<64x256xbf16>
      %cst_203 = arith.constant 0.000000e+00 : bf16
      %315 = vector.broadcast %cst_203 : bf16 to vector<64x256xbf16>
      %316 = vector.shape_cast %33 : vector<1x256xi1> to vector<1x256xi1>
      %317 = vector.broadcast %316 : vector<1x256xi1> to vector<64x256xi1>
      %318 = arith.select %317, %314, %315 : vector<64x256xi1>, vector<64x256xbf16>
      %c9_i32_204 = arith.constant 9 : i32
      %319 = arith.muli %292, %c9_i32_204 : i32
      %c2_i32_205 = arith.constant 2 : i32
      %320 = arith.addi %319, %c2_i32_205 : i32
      %321 = arith.index_cast %320 : i32 to index
      %c0_206 = arith.constant 0 : index
      %c0_207 = arith.constant 0 : index
      %322 = vector.load %arg3[%321, %c0_206, %c0_207] : memref<162x64x64xbf16, #tpu.memory_space<vmem>>, vector<1x64x64xbf16>
      %323 = vector.shape_cast %322 : vector<1x64x64xbf16> to vector<64x64xbf16>
      %cst_208 = arith.constant dense<0.000000e+00> : vector<64x256xf32>
      %324 = tpu.matmul %323, %318, %cst_208 {dimension_numbers = #tpu.dot_dimension_numbers<[1], [0], [0], [1], [0, 0, 1, 1], [], []>} : vector<64x64xbf16>, vector<64x256xbf16>, vector<64x256xf32> -> vector<64x256xf32>
      %325 = arith.addf %313, %324 : vector<64x256xf32>
      %c0_209 = arith.constant 0 : index
      %c127_210 = arith.constant 127 : index
      %326 = vector.load %arg7[%c0_209, %c127_210] : memref<64x512xbf16, #tpu.memory_space<vmem>>, vector<64x256xbf16>
      %cst_211 = arith.constant 0.000000e+00 : bf16
      %327 = vector.broadcast %cst_211 : bf16 to vector<64x256xbf16>
      %328 = vector.shape_cast %31 : vector<1x256xi1> to vector<1x256xi1>
      %329 = vector.broadcast %328 : vector<1x256xi1> to vector<64x256xi1>
      %330 = arith.select %329, %326, %327 : vector<64x256xi1>, vector<64x256xbf16>
      %c9_i32_212 = arith.constant 9 : i32
      %331 = arith.muli %292, %c9_i32_212 : i32
      %c3_i32_213 = arith.constant 3 : i32
      %332 = arith.addi %331, %c3_i32_213 : i32
      %333 = arith.index_cast %332 : i32 to index
      %c0_214 = arith.constant 0 : index
      %c0_215 = arith.constant 0 : index
      %334 = vector.load %arg3[%333, %c0_214, %c0_215] : memref<162x64x64xbf16, #tpu.memory_space<vmem>>, vector<1x64x64xbf16>
      %335 = vector.shape_cast %334 : vector<1x64x64xbf16> to vector<64x64xbf16>
      %cst_216 = arith.constant dense<0.000000e+00> : vector<64x256xf32>
      %336 = tpu.matmul %335, %330, %cst_216 {dimension_numbers = #tpu.dot_dimension_numbers<[1], [0], [0], [1], [0, 0, 1, 1], [], []>} : vector<64x64xbf16>, vector<64x256xbf16>, vector<64x256xf32> -> vector<64x256xf32>
      %337 = arith.addf %325, %336 : vector<64x256xf32>
      %c0_217 = arith.constant 0 : index
      %c128_218 = arith.constant 128 : index
      %338 = vector.load %arg7[%c0_217, %c128_218] : memref<64x512xbf16, #tpu.memory_space<vmem>>, vector<64x256xbf16>
      %c9_i32_219 = arith.constant 9 : i32
      %339 = arith.muli %292, %c9_i32_219 : i32
      %c4_i32_220 = arith.constant 4 : i32
      %340 = arith.addi %339, %c4_i32_220 : i32
      %341 = arith.index_cast %340 : i32 to index
      %c0_221 = arith.constant 0 : index
      %c0_222 = arith.constant 0 : index
      %342 = vector.load %arg3[%341, %c0_221, %c0_222] : memref<162x64x64xbf16, #tpu.memory_space<vmem>>, vector<1x64x64xbf16>
      %343 = vector.shape_cast %342 : vector<1x64x64xbf16> to vector<64x64xbf16>
      %cst_223 = arith.constant dense<0.000000e+00> : vector<64x256xf32>
      %344 = tpu.matmul %343, %338, %cst_223 {dimension_numbers = #tpu.dot_dimension_numbers<[1], [0], [0], [1], [0, 0, 1, 1], [], []>} : vector<64x64xbf16>, vector<64x256xbf16>, vector<64x256xf32> -> vector<64x256xf32>
      %345 = arith.addf %337, %344 : vector<64x256xf32>
      %c0_224 = arith.constant 0 : index
      %c129_225 = arith.constant 129 : index
      %346 = vector.load %arg7[%c0_224, %c129_225] : memref<64x512xbf16, #tpu.memory_space<vmem>>, vector<64x256xbf16>
      %cst_226 = arith.constant 0.000000e+00 : bf16
      %347 = vector.broadcast %cst_226 : bf16 to vector<64x256xbf16>
      %348 = vector.shape_cast %33 : vector<1x256xi1> to vector<1x256xi1>
      %349 = vector.broadcast %348 : vector<1x256xi1> to vector<64x256xi1>
      %350 = arith.select %349, %346, %347 : vector<64x256xi1>, vector<64x256xbf16>
      %c9_i32_227 = arith.constant 9 : i32
      %351 = arith.muli %292, %c9_i32_227 : i32
      %c5_i32_228 = arith.constant 5 : i32
      %352 = arith.addi %351, %c5_i32_228 : i32
      %353 = arith.index_cast %352 : i32 to index
      %c0_229 = arith.constant 0 : index
      %c0_230 = arith.constant 0 : index
      %354 = vector.load %arg3[%353, %c0_229, %c0_230] : memref<162x64x64xbf16, #tpu.memory_space<vmem>>, vector<1x64x64xbf16>
      %355 = vector.shape_cast %354 : vector<1x64x64xbf16> to vector<64x64xbf16>
      %cst_231 = arith.constant dense<0.000000e+00> : vector<64x256xf32>
      %356 = tpu.matmul %355, %350, %cst_231 {dimension_numbers = #tpu.dot_dimension_numbers<[1], [0], [0], [1], [0, 0, 1, 1], [], []>} : vector<64x64xbf16>, vector<64x256xbf16>, vector<64x256xf32> -> vector<64x256xf32>
      %357 = arith.addf %345, %356 : vector<64x256xf32>
      %c0_232 = arith.constant 0 : index
      %c143_233 = arith.constant 143 : index
      %358 = vector.load %arg7[%c0_232, %c143_233] : memref<64x512xbf16, #tpu.memory_space<vmem>>, vector<64x256xbf16>
      %cst_234 = arith.constant 0.000000e+00 : bf16
      %359 = vector.broadcast %cst_234 : bf16 to vector<64x256xbf16>
      %360 = vector.shape_cast %31 : vector<1x256xi1> to vector<1x256xi1>
      %361 = vector.broadcast %360 : vector<1x256xi1> to vector<64x256xi1>
      %362 = arith.select %361, %358, %359 : vector<64x256xi1>, vector<64x256xbf16>
      %c9_i32_235 = arith.constant 9 : i32
      %363 = arith.muli %292, %c9_i32_235 : i32
      %c6_i32_236 = arith.constant 6 : i32
      %364 = arith.addi %363, %c6_i32_236 : i32
      %365 = arith.index_cast %364 : i32 to index
      %c0_237 = arith.constant 0 : index
      %c0_238 = arith.constant 0 : index
      %366 = vector.load %arg3[%365, %c0_237, %c0_238] : memref<162x64x64xbf16, #tpu.memory_space<vmem>>, vector<1x64x64xbf16>
      %367 = vector.shape_cast %366 : vector<1x64x64xbf16> to vector<64x64xbf16>
      %cst_239 = arith.constant dense<0.000000e+00> : vector<64x256xf32>
      %368 = tpu.matmul %367, %362, %cst_239 {dimension_numbers = #tpu.dot_dimension_numbers<[1], [0], [0], [1], [0, 0, 1, 1], [], []>} : vector<64x64xbf16>, vector<64x256xbf16>, vector<64x256xf32> -> vector<64x256xf32>
      %369 = arith.addf %357, %368 : vector<64x256xf32>
      %c0_240 = arith.constant 0 : index
      %c144_241 = arith.constant 144 : index
      %370 = vector.load %arg7[%c0_240, %c144_241] : memref<64x512xbf16, #tpu.memory_space<vmem>>, vector<64x256xbf16>
      %c9_i32_242 = arith.constant 9 : i32
      %371 = arith.muli %292, %c9_i32_242 : i32
      %c7_i32_243 = arith.constant 7 : i32
      %372 = arith.addi %371, %c7_i32_243 : i32
      %373 = arith.index_cast %372 : i32 to index
      %c0_244 = arith.constant 0 : index
      %c0_245 = arith.constant 0 : index
      %374 = vector.load %arg3[%373, %c0_244, %c0_245] : memref<162x64x64xbf16, #tpu.memory_space<vmem>>, vector<1x64x64xbf16>
      %375 = vector.shape_cast %374 : vector<1x64x64xbf16> to vector<64x64xbf16>
      %cst_246 = arith.constant dense<0.000000e+00> : vector<64x256xf32>
      %376 = tpu.matmul %375, %370, %cst_246 {dimension_numbers = #tpu.dot_dimension_numbers<[1], [0], [0], [1], [0, 0, 1, 1], [], []>} : vector<64x64xbf16>, vector<64x256xbf16>, vector<64x256xf32> -> vector<64x256xf32>
      %377 = arith.addf %369, %376 : vector<64x256xf32>
      %c0_247 = arith.constant 0 : index
      %c145_248 = arith.constant 145 : index
      %378 = vector.load %arg7[%c0_247, %c145_248] : memref<64x512xbf16, #tpu.memory_space<vmem>>, vector<64x256xbf16>
      %cst_249 = arith.constant 0.000000e+00 : bf16
      %379 = vector.broadcast %cst_249 : bf16 to vector<64x256xbf16>
      %380 = vector.shape_cast %33 : vector<1x256xi1> to vector<1x256xi1>
      %381 = vector.broadcast %380 : vector<1x256xi1> to vector<64x256xi1>
      %382 = arith.select %381, %378, %379 : vector<64x256xi1>, vector<64x256xbf16>
      %c9_i32_250 = arith.constant 9 : i32
      %383 = arith.muli %292, %c9_i32_250 : i32
      %c8_i32_251 = arith.constant 8 : i32
      %384 = arith.addi %383, %c8_i32_251 : i32
      %385 = arith.index_cast %384 : i32 to index
      %c0_252 = arith.constant 0 : index
      %c0_253 = arith.constant 0 : index
      %386 = vector.load %arg3[%385, %c0_252, %c0_253] : memref<162x64x64xbf16, #tpu.memory_space<vmem>>, vector<1x64x64xbf16>
      %387 = vector.shape_cast %386 : vector<1x64x64xbf16> to vector<64x64xbf16>
      %cst_254 = arith.constant dense<0.000000e+00> : vector<64x256xf32>
      %388 = tpu.matmul %387, %382, %cst_254 {dimension_numbers = #tpu.dot_dimension_numbers<[1], [0], [0], [1], [0, 0, 1, 1], [], []>} : vector<64x64xbf16>, vector<64x256xbf16>, vector<64x256xf32> -> vector<64x256xf32>
      %389 = arith.addf %377, %388 : vector<64x256xf32>
      %cst_255 = arith.constant 0.000000e+00 : f32
      %390 = vector.broadcast %cst_255 : f32 to vector<64x256xf32>
      %391 = arith.maximumf %389, %390 : vector<64x256xf32>
      %392 = arith.truncf %391 : vector<64x256xf32> to vector<64x256xbf16>
      %c0_256 = arith.constant 0 : index
      %c128_257 = arith.constant 128 : index
      %393 = vector.load %arg6[%c0_256, %c128_257] : memref<64x512xbf16, #tpu.memory_space<vmem>>, vector<64x256xbf16>
      tpu.vector_store %arg6[%c0_256, %c128_257], %392 {strides = array<i32>} : memref<64x512xbf16, #tpu.memory_space<vmem>>, vector<64x256xbf16>,
    }
    %c9_i32_51 = arith.constant 9 : i32
    %cst_52 = arith.constant 0.000000e+00 : f32
    %115 = vector.broadcast %cst_52 : f32 to vector<8x256xf32>
    %c0_53 = arith.constant 0 : index
    %c111_54 = arith.constant 111 : index
    %116 = vector.load %arg6[%c0_53, %c111_54] : memref<64x512xbf16, #tpu.memory_space<vmem>>, vector<64x256xbf16>
    %cst_55 = arith.constant 0.000000e+00 : bf16
    %117 = vector.broadcast %cst_55 : bf16 to vector<64x256xbf16>
    %118 = vector.shape_cast %31 : vector<1x256xi1> to vector<1x256xi1>
    %119 = vector.broadcast %118 : vector<1x256xi1> to vector<64x256xi1>
    %120 = arith.select %119, %116, %117 : vector<64x256xi1>, vector<64x256xbf16>
    %c0_56 = arith.constant 0 : index
    %c0_57 = arith.constant 0 : index
    %c0_58 = arith.constant 0 : index
    %121 = vector.load %arg4[%c0_56, %c0_57, %c0_58] : memref<9x8x64xbf16, #tpu.memory_space<vmem>>, vector<1x8x64xbf16>
    %122 = vector.shape_cast %121 : vector<1x8x64xbf16> to vector<8x64xbf16>
    %cst_59 = arith.constant dense<0.000000e+00> : vector<8x256xf32>
    %123 = tpu.matmul %122, %120, %cst_59 {dimension_numbers = #tpu.dot_dimension_numbers<[1], [0], [0], [1], [0, 0, 1, 1], [], []>} : vector<8x64xbf16>, vector<64x256xbf16>, vector<8x256xf32> -> vector<8x256xf32>
    %124 = arith.addf %115, %123 : vector<8x256xf32>
    %c0_60 = arith.constant 0 : index
    %c112_61 = arith.constant 112 : index
    %125 = vector.load %arg6[%c0_60, %c112_61] : memref<64x512xbf16, #tpu.memory_space<vmem>>, vector<64x256xbf16>
    %c1_62 = arith.constant 1 : index
    %c0_63 = arith.constant 0 : index
    %c0_64 = arith.constant 0 : index
    %126 = vector.load %arg4[%c1_62, %c0_63, %c0_64] : memref<9x8x64xbf16, #tpu.memory_space<vmem>>, vector<1x8x64xbf16>
    %127 = vector.shape_cast %126 : vector<1x8x64xbf16> to vector<8x64xbf16>
    %cst_65 = arith.constant dense<0.000000e+00> : vector<8x256xf32>
    %128 = tpu.matmul %127, %125, %cst_65 {dimension_numbers = #tpu.dot_dimension_numbers<[1], [0], [0], [1], [0, 0, 1, 1], [], []>} : vector<8x64xbf16>, vector<64x256xbf16>, vector<8x256xf32> -> vector<8x256xf32>
    %129 = arith.addf %124, %128 : vector<8x256xf32>
    %c0_66 = arith.constant 0 : index
    %c113_67 = arith.constant 113 : index
    %130 = vector.load %arg6[%c0_66, %c113_67] : memref<64x512xbf16, #tpu.memory_space<vmem>>, vector<64x256xbf16>
    %cst_68 = arith.constant 0.000000e+00 : bf16
    %131 = vector.broadcast %cst_68 : bf16 to vector<64x256xbf16>
    %132 = vector.shape_cast %33 : vector<1x256xi1> to vector<1x256xi1>
    %133 = vector.broadcast %132 : vector<1x256xi1> to vector<64x256xi1>
    %134 = arith.select %133, %130, %131 : vector<64x256xi1>, vector<64x256xbf16>
    %c2_69 = arith.constant 2 : index
    %c0_70 = arith.constant 0 : index
    %c0_71 = arith.constant 0 : index
    %135 = vector.load %arg4[%c2_69, %c0_70, %c0_71] : memref<9x8x64xbf16, #tpu.memory_space<vmem>>, vector<1x8x64xbf16>
    %136 = vector.shape_cast %135 : vector<1x8x64xbf16> to vector<8x64xbf16>
    %cst_72 = arith.constant dense<0.000000e+00> : vector<8x256xf32>
    %137 = tpu.matmul %136, %134, %cst_72 {dimension_numbers = #tpu.dot_dimension_numbers<[1], [0], [0], [1], [0, 0, 1, 1], [], []>} : vector<8x64xbf16>, vector<64x256xbf16>, vector<8x256xf32> -> vector<8x256xf32>
    %138 = arith.addf %129, %137 : vector<8x256xf32>
    %c0_73 = arith.constant 0 : index
    %c127_74 = arith.constant 127 : index
    %139 = vector.load %arg6[%c0_73, %c127_74] : memref<64x512xbf16, #tpu.memory_space<vmem>>, vector<64x256xbf16>
    %cst_75 = arith.constant 0.000000e+00 : bf16
    %140 = vector.broadcast %cst_75 : bf16 to vector<64x256xbf16>
    %141 = vector.shape_cast %31 : vector<1x256xi1> to vector<1x256xi1>
    %142 = vector.broadcast %141 : vector<1x256xi1> to vector<64x256xi1>
    %143 = arith.select %142, %139, %140 : vector<64x256xi1>, vector<64x256xbf16>
    %c3_76 = arith.constant 3 : index
    %c0_77 = arith.constant 0 : index
    %c0_78 = arith.constant 0 : index
    %144 = vector.load %arg4[%c3_76, %c0_77, %c0_78] : memref<9x8x64xbf16, #tpu.memory_space<vmem>>, vector<1x8x64xbf16>
    %145 = vector.shape_cast %144 : vector<1x8x64xbf16> to vector<8x64xbf16>
    %cst_79 = arith.constant dense<0.000000e+00> : vector<8x256xf32>
    %146 = tpu.matmul %145, %143, %cst_79 {dimension_numbers = #tpu.dot_dimension_numbers<[1], [0], [0], [1], [0, 0, 1, 1], [], []>} : vector<8x64xbf16>, vector<64x256xbf16>, vector<8x256xf32> -> vector<8x256xf32>
    %147 = arith.addf %138, %146 : vector<8x256xf32>
    %c0_80 = arith.constant 0 : index
    %c128_81 = arith.constant 128 : index
    %148 = vector.load %arg6[%c0_80, %c128_81] : memref<64x512xbf16, #tpu.memory_space<vmem>>, vector<64x256xbf16>
    %c4_82 = arith.constant 4 : index
    %c0_83 = arith.constant 0 : index
    %c0_84 = arith.constant 0 : index
    %149 = vector.load %arg4[%c4_82, %c0_83, %c0_84] : memref<9x8x64xbf16, #tpu.memory_space<vmem>>, vector<1x8x64xbf16>
    %150 = vector.shape_cast %149 : vector<1x8x64xbf16> to vector<8x64xbf16>
    %cst_85 = arith.constant dense<0.000000e+00> : vector<8x256xf32>
    %151 = tpu.matmul %150, %148, %cst_85 {dimension_numbers = #tpu.dot_dimension_numbers<[1], [0], [0], [1], [0, 0, 1, 1], [], []>} : vector<8x64xbf16>, vector<64x256xbf16>, vector<8x256xf32> -> vector<8x256xf32>
    %152 = arith.addf %147, %151 : vector<8x256xf32>
    %c0_86 = arith.constant 0 : index
    %c129_87 = arith.constant 129 : index
    %153 = vector.load %arg6[%c0_86, %c129_87] : memref<64x512xbf16, #tpu.memory_space<vmem>>, vector<64x256xbf16>
    %cst_88 = arith.constant 0.000000e+00 : bf16
    %154 = vector.broadcast %cst_88 : bf16 to vector<64x256xbf16>
    %155 = vector.shape_cast %33 : vector<1x256xi1> to vector<1x256xi1>
    %156 = vector.broadcast %155 : vector<1x256xi1> to vector<64x256xi1>
    %157 = arith.select %156, %153, %154 : vector<64x256xi1>, vector<64x256xbf16>
    %c5_89 = arith.constant 5 : index
    %c0_90 = arith.constant 0 : index
    %c0_91 = arith.constant 0 : index
    %158 = vector.load %arg4[%c5_89, %c0_90, %c0_91] : memref<9x8x64xbf16, #tpu.memory_space<vmem>>, vector<1x8x64xbf16>
    %159 = vector.shape_cast %158 : vector<1x8x64xbf16> to vector<8x64xbf16>
    %cst_92 = arith.constant dense<0.000000e+00> : vector<8x256xf32>
    %160 = tpu.matmul %159, %157, %cst_92 {dimension_numbers = #tpu.dot_dimension_numbers<[1], [0], [0], [1], [0, 0, 1, 1], [], []>} : vector<8x64xbf16>, vector<64x256xbf16>, vector<8x256xf32> -> vector<8x256xf32>
    %161 = arith.addf %152, %160 : vector<8x256xf32>
    %c0_93 = arith.constant 0 : index
    %c143_94 = arith.constant 143 : index
    %162 = vector.load %arg6[%c0_93, %c143_94] : memref<64x512xbf16, #tpu.memory_space<vmem>>, vector<64x256xbf16>
    %cst_95 = arith.constant 0.000000e+00 : bf16
    %163 = vector.broadcast %cst_95 : bf16 to vector<64x256xbf16>
    %164 = vector.shape_cast %31 : vector<1x256xi1> to vector<1x256xi1>
    %165 = vector.broadcast %164 : vector<1x256xi1> to vector<64x256xi1>
    %166 = arith.select %165, %162, %163 : vector<64x256xi1>, vector<64x256xbf16>
    %c6_96 = arith.constant 6 : index
    %c0_97 = arith.constant 0 : index
    %c0_98 = arith.constant 0 : index
    %167 = vector.load %arg4[%c6_96, %c0_97, %c0_98] : memref<9x8x64xbf16, #tpu.memory_space<vmem>>, vector<1x8x64xbf16>
    %168 = vector.shape_cast %167 : vector<1x8x64xbf16> to vector<8x64xbf16>
    %cst_99 = arith.constant dense<0.000000e+00> : vector<8x256xf32>
    %169 = tpu.matmul %168, %166, %cst_99 {dimension_numbers = #tpu.dot_dimension_numbers<[1], [0], [0], [1], [0, 0, 1, 1], [], []>} : vector<8x64xbf16>, vector<64x256xbf16>, vector<8x256xf32> -> vector<8x256xf32>
    %170 = arith.addf %161, %169 : vector<8x256xf32>
    %c0_100 = arith.constant 0 : index
    %c144_101 = arith.constant 144 : index
    %171 = vector.load %arg6[%c0_100, %c144_101] : memref<64x512xbf16, #tpu.memory_space<vmem>>, vector<64x256xbf16>
    %c7_102 = arith.constant 7 : index
    %c0_103 = arith.constant 0 : index
    %c0_104 = arith.constant 0 : index
    %172 = vector.load %arg4[%c7_102, %c0_103, %c0_104] : memref<9x8x64xbf16, #tpu.memory_space<vmem>>, vector<1x8x64xbf16>
    %173 = vector.shape_cast %172 : vector<1x8x64xbf16> to vector<8x64xbf16>
    %cst_105 = arith.constant dense<0.000000e+00> : vector<8x256xf32>
    %174 = tpu.matmul %173, %171, %cst_105 {dimension_numbers = #tpu.dot_dimension_numbers<[1], [0], [0], [1], [0, 0, 1, 1], [], []>} : vector<8x64xbf16>, vector<64x256xbf16>, vector<8x256xf32> -> vector<8x256xf32>
    %175 = arith.addf %170, %174 : vector<8x256xf32>
    %c0_106 = arith.constant 0 : index
    %c145_107 = arith.constant 145 : index
    %176 = vector.load %arg6[%c0_106, %c145_107] : memref<64x512xbf16, #tpu.memory_space<vmem>>, vector<64x256xbf16>
    %cst_108 = arith.constant 0.000000e+00 : bf16
    %177 = vector.broadcast %cst_108 : bf16 to vector<64x256xbf16>
    %178 = vector.shape_cast %33 : vector<1x256xi1> to vector<1x256xi1>
    %179 = vector.broadcast %178 : vector<1x256xi1> to vector<64x256xi1>
    %180 = arith.select %179, %176, %177 : vector<64x256xi1>, vector<64x256xbf16>
    %c8_109 = arith.constant 8 : index
    %c0_110 = arith.constant 0 : index
    %c0_111 = arith.constant 0 : index
    %181 = vector.load %arg4[%c8_109, %c0_110, %c0_111] : memref<9x8x64xbf16, #tpu.memory_space<vmem>>, vector<1x8x64xbf16>
    %182 = vector.shape_cast %181 : vector<1x8x64xbf16> to vector<8x64xbf16>
    %cst_112 = arith.constant dense<0.000000e+00> : vector<8x256xf32>
    %183 = tpu.matmul %182, %180, %cst_112 {dimension_numbers = #tpu.dot_dimension_numbers<[1], [0], [0], [1], [0, 0, 1, 1], [], []>} : vector<8x64xbf16>, vector<64x256xbf16>, vector<8x256xf32> -> vector<8x256xf32>
    %184 = arith.addf %175, %183 : vector<8x256xf32>
    %185 = vector.extract_strided_slice %184 {offsets = [0, 0], sizes = [1, 256], strides = [1, 1]} : vector<8x256xf32> to vector<1x256xf32>
    %186 = arith.addf %185, %9 : vector<1x256xf32>
    %187 = vector.shape_cast %186 : vector<1x256xf32> to vector<1x1x256xf32>
    %c0_113 = arith.constant 0 : index
    %c0_114 = arith.constant 0 : index
    %c0_115 = arith.constant 0 : index
    %188 = vector.load %arg5[%c0_113, %c0_114, %c0_115] : memref<1x1x256xf32, #tpu.memory_space<vmem>>, vector<1x1x256xf32>
    tpu.vector_store %arg5[%c0_113, %c0_114, %c0_115], %187 {strides = array<i32>} : memref<1x1x256xf32, #tpu.memory_space<vmem>>, vector<1x1x256xf32>,
    return
  }
  func.func @transform_0(%arg0: i32) -> (i32, i32, i32) {
    %c0_i32 = arith.constant 0 : i32
    %c0_i32_0 = arith.constant 0 : i32
    %c0_i32_1 = arith.constant 0 : i32
    return %arg0, %c0_i32, %c0_i32_0 : i32, i32, i32
  }
  func.func @transform_1(%arg0: i32) -> (i32, i32) {
    %c0_i32 = arith.constant 0 : i32
    %c0_i32_0 = arith.constant 0 : i32
    %c0_i32_1 = arith.constant 0 : i32
    return %c0_i32, %c0_i32_0 : i32, i32
  }
  func.func @transform_2(%arg0: i32) -> (i32, i32, i32) {
    %c0_i32 = arith.constant 0 : i32
    %c0_i32_0 = arith.constant 0 : i32
    %c0_i32_1 = arith.constant 0 : i32
    %c0_i32_2 = arith.constant 0 : i32
    return %c0_i32, %c0_i32_0, %c0_i32_1 : i32, i32, i32
  }
  func.func @transform_3(%arg0: i32) -> (i32, i32, i32) {
    %c0_i32 = arith.constant 0 : i32
    %c0_i32_0 = arith.constant 0 : i32
    %c0_i32_1 = arith.constant 0 : i32
    %c0_i32_2 = arith.constant 0 : i32
    return %c0_i32, %c0_i32_0, %c0_i32_1 : i32, i32, i32
  }
  func.func @transform_4(%arg0: i32) -> (i32, i32, i32) {
    %c0_i32 = arith.constant 0 : i32
    %c0_i32_0 = arith.constant 0 : i32
    %c0_i32_1 = arith.constant 0 : i32
    return %arg0, %c0_i32, %c0_i32_0 : i32, i32, i32
  }
}

</mosaic_0001>

<llo_original>
// kernel: tpu_custom_call.1
$region0: #{tpu_custom_call.1}
  #allocation0 [shape = 'u32[]', space=smem, size = 0x4, offset = 0x4, fixed_abs, tag = 'smem constant byte address 0x4 - core index']
  #allocation1 [shape = 'u32[144,128]{1,0:T(1,128)}', space=vmem, size = 0x12000, scoped, tag = 'internal scratch']
  #allocation2 [shape = 'bf16[64,512]{1,0:T(16,128)(2,1)}', space=vmem, size = 0x10000, scoped, tag = 'scratch operand']
  #allocation3 [shape = 'bf16[64,512]{1,0:T(16,128)(2,1)}', space=vmem, size = 0x10000, scoped, tag = 'scratch operand']
  #allocation4 [shape = 'f32[1,512]{1,0:T(1,128)}', space=vmem, size = 0x800, scoped, tag = 'scratch operand']
  %s0 = inlined_call_operand.vmem [shape: f32[2,1,256], index: 0, kind: input, shape index: {}]
  %s1 = inlined_call_operand.vmem [shape: bf16[64,9], index: 1, kind: input, shape index: {}]
  %s2 = inlined_call_operand.vmem [shape: bf16[162,64,64], index: 2, kind: input, shape index: {}]
  %s3 = inlined_call_operand.vmem [shape: bf16[9,8,64], index: 3, kind: input, shape index: {}]
  %s4 = inlined_call_operand.hbm [shape: f32[2,1,256], index: 4, kind: output, shape index: {}]
  %s5 = sld [smem:[#allocation0]]
  $region56: #{tpu_custom_call.1} parent=0
    _
  %s7 = ssub.s32 1, %s5
  %s8 = scalar_select 0, %s7, %s5
  $region1: #{tpu_custom_call.1} parent=0
    #allocation5 [shape = 'u8[2048]{0}', space=vmem, size = 0x800, scoped, tag = 'output window, operand 0']
    #allocation6 [shape = 's32[2]{0}', space=sflag, size = 0x8, scoped, tag = 'scoped memory for tpu_custom_call.1']
    %9 = vsyncpa [#allocation6], 0
    %s10 = scalar_lea.sflag [#allocation6], 1
    %11 = vsyncpa %s10, 0
    loop: start=0, step=1, limit=4
    $region2: #{tpu_custom_call.1} parent=1 // loop_pre_header
      _
    $region3: #{tpu_custom_call.1} parent=1 // loop_header
      %s13 = sphi 0, %s17
      %p14 = scmp.ge.s32.totalorder %s13, 4
      %s23 = sphi 0, %s25
      %s26 = sphi 0, %s23
      %s27 = sphi 0, %s26
      %s43 = sphi 0, %s27
      %s47 = sphi 0, %s47
      %s49 = sphi 0, %s47
      %s50 = sphi 0, %s49
      %s64 = sphi 0, %s50
      %s68 = sphi 0, %s68
      %s70 = sphi 0, %s68
      %s71 = sphi 0, %s70
      %s85 = sphi 0, %s71
      %s89 = sphi 0, %s89
      %s91 = sphi 0, %s89
      %s92 = sphi 0, %s91
      %s106 = sphi 0, %s92
      %s112 = sphi 0, %s114
      %s115 = sphi 0, %s112
      %s116 = sphi 0, %s115
      %s132 = sphi 0, %s116
    $region4: #{tpu_custom_call.1} parent=1 // loop_header_branch
      %16 = sbr.rel (%p14) target = $region8
    $region5: #{tpu_custom_call.1} parent=1 // loop_body
      %s18 = ssub.s32 %s13, 1
      %s19 = ssub.s32 %s13, 2
      %s20 = sadd.s32 %s13, 1
      %s21 = ssub.s32 %s13, %s20
      %p22 = scmp.eq.s32.totalorder %s21, 0
      %s24 = sadd.s32 %s23, 1
      %s25 = scalar_select %p22, %s23, %s24
      %p28 = pneg %p22
      %p29 = scmp.eq.s32.totalorder %s13, 1
      %p30 = por %p28, %p29
      %p31 = scmp.ne.s32.totalorder %s23, %s26
      %p32 = scmp.eq.s32.totalorder %s13, 0
      %p33 = por %p31, %p32
      %p34 = scmp.ne.s32.totalorder %s23, %s26
      %p35 = scmp.eq.s32.totalorder %s18, 1
      %p36 = por %p34, %p35
      %p37 = scmp.ne.s32.totalorder %s26, %s27
      %p38 = scmp.eq.s32.totalorder %s18, 0
      %p39 = por %p37, %p38
      %p40 = scmp.ne.s32.totalorder %s26, %s27
      %p41 = scmp.eq.s32.totalorder %s19, 1
      %p42 = por %p40, %p41
      %p44 = scmp.ne.s32.totalorder %s27, %s43
      %p45 = scmp.eq.s32.totalorder %s19, 0
      %p46 = por %p44, %p45
      %s48 = sadd.s32 %s47, 1
      %p51 = scmp.eq.s32.totalorder %s13, 1
      %p52 = scmp.ne.s32.totalorder %s47, %s49
      %p53 = scmp.eq.s32.totalorder %s13, 0
      %p54 = por %p52, %p53
      %p55 = scmp.ne.s32.totalorder %s47, %s49
      %p56 = scmp.eq.s32.totalorder %s18, 1
      %p57 = por %p55, %p56
      %p58 = scmp.ne.s32.totalorder %s49, %s50
      %p59 = scmp.eq.s32.totalorder %s18, 0
      %p60 = por %p58, %p59
      %p61 = scmp.ne.s32.totalorder %s49, %s50
      %p62 = scmp.eq.s32.totalorder %s19, 1
      %p63 = por %p61, %p62
      %p65 = scmp.ne.s32.totalorder %s50, %s64
      %p66 = scmp.eq.s32.totalorder %s19, 0
      %p67 = por %p65, %p66
      %s69 = sadd.s32 %s68, 1
      %p72 = scmp.eq.s32.totalorder %s13, 1
      %p73 = scmp.ne.s32.totalorder %s68, %s70
      %p74 = scmp.eq.s32.totalorder %s13, 0
      %p75 = por %p73, %p74
      %p76 = scmp.ne.s32.totalorder %s68, %s70
      %p77 = scmp.eq.s32.totalorder %s18, 1
      %p78 = por %p76, %p77
      %p79 = scmp.ne.s32.totalorder %s70, %s71
      %p80 = scmp.eq.s32.totalorder %s18, 0
      %p81 = por %p79, %p80
      %p82 = scmp.ne.s32.totalorder %s70, %s71
      %p83 = scmp.eq.s32.totalorder %s19, 1
      %p84 = por %p82, %p83
      %p86 = scmp.ne.s32.totalorder %s71, %s85
      %p87 = scmp.eq.s32.totalorder %s19, 0
      %p88 = por %p86, %p87
      %s90 = sadd.s32 %s89, 1
      %p93 = scmp.eq.s32.totalorder %s13, 1
      %p94 = scmp.ne.s32.totalorder %s89, %s91
      %p95 = scmp.eq.s32.totalorder %s13, 0
      %p96 = por %p94, %p95
      %p97 = scmp.ne.s32.totalorder %s89, %s91
      %p98 = scmp.eq.s32.totalorder %s18, 1
      %p99 = por %p97, %p98
      %p100 = scmp.ne.s32.totalorder %s91, %s92
      %p101 = scmp.eq.s32.totalorder %s18, 0
      %p102 = por %p100, %p101
      %p103 = scmp.ne.s32.totalorder %s91, %s92
      %p104 = scmp.eq.s32.totalorder %s19, 1
      %p105 = por %p103, %p104
      %p107 = scmp.ne.s32.totalorder %s92, %s106
      %p108 = scmp.eq.s32.totalorder %s19, 0
      %p109 = por %p107, %p108
      %s110 = ssub.s32 %s13, %s20
      %p111 = scmp.eq.s32.totalorder %s110, 0
      %s113 = sadd.s32 %s112, 1
      %s114 = scalar_select %p111, %s112, %s113
      %p117 = pneg %p111
      %p118 = scmp.eq.s32.totalorder %s13, 1
      %p119 = por %p117, %p118
      %p120 = scmp.ne.s32.totalorder %s112, %s115
      %p121 = scmp.eq.s32.totalorder %s13, 0
      %p122 = por %p120, %p121
      %p123 = scmp.ne.s32.totalorder %s112, %s115
      %p124 = scmp.eq.s32.totalorder %s18, 1
      %p125 = por %p123, %p124
      %p126 = scmp.ne.s32.totalorder %s115, %s116
      %p127 = scmp.eq.s32.totalorder %s18, 0
      %p128 = por %p126, %p127
      %p129 = scmp.ne.s32.totalorder %s115, %s116
      %p130 = scmp.eq.s32.totalorder %s19, 1
      %p131 = por %p129, %p130
      %p133 = scmp.ne.s32.totalorder %s116, %s132
      %p134 = scmp.eq.s32.totalorder %s19, 0
      %p135 = por %p133, %p134
      %p136 = scmp.le.s32.totalorder 1, %s13
      %p137 = scmp.lt.s32.totalorder %s13, 3
      %p138 = pnand %p136, %p137
      %p139 = pneg %p138
      // Predicated region
      $region9: #{tpu_custom_call.1} parent=5 // pred_check
        _
      $region10: #{tpu_custom_call.1} parent=5 // pred_check_branch
        %141 = sbr.rel (%p138) target = $region12
      $region11: #{tpu_custom_call.1} parent=5 // pred_region
        %s142 = ssub.s32 %s13, 1
        // Predicated region
        $region13: #{tpu_custom_call.1} parent=11 // pred_check
          %p143 = pneg %p60
        $region14: #{tpu_custom_call.1} parent=11 // pred_check_branch
          %145 = sbr.rel (%p143) target = $region16
        $region15: #{tpu_custom_call.1} parent=11 // pred_region
          _
        $region16: #{tpu_custom_call.1} parent=11 // pred_fallthru
          _
        // Predicated region
        $region17: #{tpu_custom_call.1} parent=11 // pred_check
          %p146 = pneg %p81
        $region18: #{tpu_custom_call.1} parent=11 // pred_check_branch
          %148 = sbr.rel (%p146) target = $region20
        $region19: #{tpu_custom_call.1} parent=11 // pred_region
          _
        $region20: #{tpu_custom_call.1} parent=11 // pred_fallthru
          _
        // Predicated region
        $region21: #{tpu_custom_call.1} parent=11 // pred_check
          %p149 = pneg %p102
        $region22: #{tpu_custom_call.1} parent=11 // pred_check_branch
          %151 = sbr.rel (%p149) target = $region24
        $region23: #{tpu_custom_call.1} parent=11 // pred_region
          _
        $region24: #{tpu_custom_call.1} parent=11 // pred_fallthru
          _
      $region12: #{tpu_custom_call.1} parent=5 // pred_fallthru
        _
      %p152 = scmp.lt.s32.totalorder %s13, 2
      // Predicated region
      $region25: #{tpu_custom_call.1} parent=5 // pred_check
        %p153 = pneg %p152
      $region26: #{tpu_custom_call.1} parent=5 // pred_check_branch
        %155 = sbr.rel (%p153) target = $region28
      $region27: #{tpu_custom_call.1} parent=5 // pred_region
        // Predicated region
        $region29: #{tpu_custom_call.1} parent=27 // pred_check
          %p156 = pneg %p33
        $region30: #{tpu_custom_call.1} parent=27 // pred_check_branch
          %158 = sbr.rel (%p156) target = $region32
        $region31: #{tpu_custom_call.1} parent=27 // pred_region
          %p159 = scmp.lt.s32.totalorder %s13, 1
          %s160 = scalar_select %p159, %s13, 1
          %s161 = smul.addr %s160, 2
          %s162 = scalar_lea.vmem %s0, %s161
        $region32: #{tpu_custom_call.1} parent=27 // pred_fallthru
          _
      $region28: #{tpu_custom_call.1} parent=5 // pred_fallthru
        _
      %p163 = scmp.le.s32.totalorder 1, %s13
      %p164 = scmp.lt.s32.totalorder %s13, 3
      %p165 = pnand %p163, %p164
      %p166 = pneg %p165
      // Predicated region
      $region33: #{tpu_custom_call.1} parent=5 // pred_check
        _
      $region34: #{tpu_custom_call.1} parent=5 // pred_check_branch
        %168 = sbr.rel (%p165) target = $region36
      $region35: #{tpu_custom_call.1} parent=5 // pred_region
        %s169 = ssub.s32 %s13, 1
        %p170 = scmp.lt.s32.totalorder %s18, 1
        %s171 = scalar_select %p170, %s18, 1
        %s172 = smul.addr %s171, 2
        %s173 = scalar_lea.vmem %s0, %s172
        %p174 = pneg %p39
        %p175 = pneg %p36
        %p176 = pneg %p60
        %p177 = pneg %p57
        %p178 = pneg %p81
        %p179 = pneg %p78
        %p180 = pneg %p102
        %p181 = pneg %p99
        %p182 = pneg %p128
        %p183 = pneg %p125
        %s184 = sand.u32 %s115, 1
        %s185 = scalar_lea.sflag [#allocation6], %s184
        %s186 = sand.u32 %s115, 1
        %s187 = smul.addr %s186, 2
        %s188 = scalar_lea.vmem [#allocation5], %s187
        %p189 = scmp.lt.s32.totalorder %s18, 1
        %s190 = scalar_select %p189, %s18, 1
        %s191 = smul.addr %s190, 2
        %s192 = scalar_lea.vmem %s0, %s191
        %196 = vst [vmem:[#allocation2] sm:$0xff] 0
        %197 = vst [vmem:[#allocation2 + $0x20] sm:$0xff] 0
        %198 = vst [vmem:[#allocation2 + $0x40] sm:$0xff] 0
        %199 = vst [vmem:[#allocation2 + $0x60] sm:$0xff] 0
        %200 = vst [vmem:[#allocation2 + $0x18] sm:$0xff] 0
        %201 = vst [vmem:[#allocation2 + $0x38] sm:$0xff] 0
        %202 = vst [vmem:[#allocation2 + $0x58] sm:$0xff] 0
        %203 = vst [vmem:[#allocation2 + $0x78] sm:$0xff] 0
        %204 = vst [vmem:[#allocation3] sm:$0xff] 0
        %205 = vst [vmem:[#allocation3 + $0x20] sm:$0xff] 0
        %206 = vst [vmem:[#allocation3 + $0x40] sm:$0xff] 0
        %207 = vst [vmem:[#allocation3 + $0x60] sm:$0xff] 0
        %208 = vst [vmem:[#allocation3 + $0x18] sm:$0xff] 0
        %209 = vst [vmem:[#allocation3 + $0x38] sm:$0xff] 0
        %210 = vst [vmem:[#allocation3 + $0x58] sm:$0xff] 0
        %211 = vst [vmem:[#allocation3 + $0x78] sm:$0xff] 0
        %v212 = vlaneseq
        %vm213 = vcmp.ge.s32.totalorder %v212, 0
        %vm214 = vcmp.lt.s32.totalorder %v212, 128
        %vm215 = vmand %vm213, %vm214
        %216 = vst.msk [vmem:[#allocation4] sm:$0x1] %vm215, 0.0
        %217 = vst.msk [vmem:[#allocation4 + $0x3] sm:$0x1] %vm215, 0.0
        %v218 = vld [vmem:[%s192] sm:$0x3]
        %v220 = vlaneseq
        %v221 = vshrl.u32 %v220, 7
        %v222 = vsub.s32 0, %v221
        %v223 = vrot.slane %v218, %v222
        %v224 = vlaneseq
        %v225 = vshrl.u32 %v224, 7
        %v226 = vsub.s32 1, %v225
        %v227 = vrot.slane %v218, %v226
        %v230 = vpack.c.bf16 %v223, %v223
        %v231 = vpack.c.bf16 %v227, %v227
        %v232 = vunpack.c.l.bf16 %v230
        %v233 = vunpack.c.l.bf16 %v231
        %v236 = vcombine.low %v232, %v233
        %v238 = vunpack.c.l.s4 1966171168
        %v239 = vunpack.c.0.s8 %v238
        %v240 = vlaneseq
        %v241 = vshrl.u32 %v240, 7
        %v242 = vsub.s32 %v239, %v241
        %v243 = vrot.slane %v236, %v242
        %v245 = vunpack.c.l.s4 1966171168
        %v246 = vunpack.c.0.s8 %v245
        %v247 = vlaneseq
        %v248 = vshrl.u32 %v247, 7
        %v249 = vsub.s32 %v246, %v248
        %v250 = vrot.slane %v243, %v249
        %vm252 = vcmp.lt.s32.totalorder %v212, 256
        %vm253 = vmand %vm213, %vm252
        %254 = vst.msk [vmem:[#allocation4 + $0x1] sm:$0x3] %vm253, %v250
        %v255 = vlaneseq
        %v256 = vand.u32 %v255, 127
        %v257 = vadd.s32 %v256, 128
        %vm258 = vcmp.lt.s32.totalorder %v256, 0
        %v259 = vsub.s32 0, %v256
        %v260 = vsel %vm258, %v259, %v256
        %v261 = vshrl.u32 %v260, 4
        %v262 = vand.u32 %v260, 15
        %v263 = vsub.s32 0, %v262
        %v264 = vsel %vm258, %v263, %v262
        %vm265 = vcmp.lt.s32.totalorder %v257, 0
        %v266 = vsub.s32 0, %v257
        %v267 = vsel %vm265, %v266, %v257
        %v268 = vshrl.u32 %v267, 4
        %v269 = vand.u32 %v267, 15
        %v270 = vsub.s32 0, %v269
        %v271 = vsel %vm265, %v270, %v269
        %vm272 = vcmp.ne.s32.totalorder %v264, 0
        %vm273 = vcmp.ne.s32.totalorder %v271, 0
        %vm274 = vcmp.lt.s32.totalorder %v264, 0
        %vm275 = vcmp.lt.s32.totalorder %v271, 0
        %vm276 = vmand %vm274, %vm272
        %vm277 = vmand %vm275, %vm273
        %v278 = vadd.s32 %v264, 16
        %v279 = vadd.s32 %v271, 16
        %v280 = vsel %vm276, %v278, %v264
        %v281 = vsel %vm277, %v279, %v271
        %vm282 = vcmp.ge.s32.totalorder %v280, 1
        %vm283 = vcmp.ge.s32.totalorder %v281, 1
        %vm284 = vcmp.le.s32.totalorder %v280, 14
        %vm285 = vcmp.le.s32.totalorder %v281, 14
        %v286 = vld [vmem:[#allocation4] sm:$0x7]
        %v288 = vlaneseq
        %v289 = vshrl.u32 %v288, 7
        %v290 = vsub.s32 0, %v289
        %v291 = vrot.slane %v286, %v290
        %v292 = vlaneseq
        %v293 = vshrl.u32 %v292, 7
        %v294 = vsub.s32 1, %v293
        %v295 = vrot.slane %v286, %v294
        %v296 = vlaneseq
        %v297 = vshrl.u32 %v296, 7
        %v298 = vsub.s32 2, %v297
        %v299 = vrot.slane %v286, %v298
        %300 = vrot.lane.b32.xlu0 %v291, 17
        %v301 = vpop.permute.xlu0 %300
        %302 = vrot.lane.b32.xlu0 %v295, 17
        %v303 = vpop.permute.xlu0 %302
        %304 = vrot.lane.b32.xlu0 %v299, 17
        %v305 = vpop.permute.xlu0 %304
        %vm306 = vcmask 138240
        %v307 = vsel %vm306, %v301, %v303
        %v308 = vsel %vm306, %v303, %v305
        %v311 = vsel %vm282, %v307, 0.0
        %v312 = vsel %vm283, %v308, 0.0
        %v313 = vld [vmem:[%s1] sm:$0xf]
        %v314 = vld [vmem:[%s1 + $0x4] sm:$0xf]
        %v315 = vld [vmem:[%s1 + $0x8] sm:$0xf]
        %v316 = vld [vmem:[%s1 + $0xc] sm:$0xf]
        %v317 = vld [vmem:[%s1 + $0x10] sm:$0xf]
        %v318 = vld [vmem:[%s1 + $0x14] sm:$0xf]
        %v319 = vld [vmem:[%s1 + $0x18] sm:$0xf]
        %v320 = vld [vmem:[%s1 + $0x1c] sm:$0xf]
        %v321 = vunpack.c.l.bf16 %v313
        %v322 = vunpack.c.l.bf16 %v314
        %v323 = vunpack.c.l.bf16 %v315
        %v324 = vunpack.c.l.bf16 %v316
        %v325 = vunpack.c.l.bf16 %v317
        %v326 = vunpack.c.l.bf16 %v318
        %v327 = vunpack.c.l.bf16 %v319
        %v328 = vunpack.c.l.bf16 %v320
        %330 = vset.pattern.permute.xlu0 0
        %331 = vperm.xlu0 %330, %v321
        %v332 = vpop.permute.xlu0 %331
        %335 = vset.pattern.permute.xlu0 0
        %336 = vperm.xlu0 %335, %v322
        %v337 = vpop.permute.xlu0 %336
        %340 = vset.pattern.permute.xlu0 0
        %341 = vperm.xlu0 %340, %v323
        %v342 = vpop.permute.xlu0 %341
        %345 = vset.pattern.permute.xlu0 0
        %346 = vperm.xlu0 %345, %v324
        %v347 = vpop.permute.xlu0 %346
        %350 = vset.pattern.permute.xlu0 0
        %351 = vperm.xlu0 %350, %v325
        %v352 = vpop.permute.xlu0 %351
        %355 = vset.pattern.permute.xlu0 0
        %356 = vperm.xlu0 %355, %v326
        %v357 = vpop.permute.xlu0 %356
        %360 = vset.pattern.permute.xlu0 0
        %361 = vperm.xlu0 %360, %v327
        %v362 = vpop.permute.xlu0 %361
        %365 = vset.pattern.permute.xlu0 0
        %366 = vperm.xlu0 %365, %v328
        %v367 = vpop.permute.xlu0 %366
        %v369 = vlaneseq
        %v370 = vshrl.u32 %v369, 7
        %v371 = vsub.s32 0, %v370
        %v372 = vrot.slane %v311, %v371
        %v373 = vlaneseq
        %v374 = vshrl.u32 %v373, 7
        %v375 = vsub.s32 0, %v374
        %v376 = vrot.slane %v312, %v375
        %v377 = vmul.f32 %v332, %v372
        %v378 = vmul.f32 %v332, %v376
        %v379 = vmul.f32 %v337, %v372
        %v380 = vmul.f32 %v337, %v376
        %v381 = vmul.f32 %v342, %v372
        %v382 = vmul.f32 %v342, %v376
        %v383 = vmul.f32 %v347, %v372
        %v384 = vmul.f32 %v347, %v376
        %v385 = vmul.f32 %v352, %v372
        %v386 = vmul.f32 %v352, %v376
        %v387 = vmul.f32 %v357, %v372
        %v388 = vmul.f32 %v357, %v376
        %v389 = vmul.f32 %v362, %v372
        %v390 = vmul.f32 %v362, %v376
        %v391 = vmul.f32 %v367, %v372
        %v392 = vmul.f32 %v367, %v376
        %v393 = vadd.f32 %v377, 0.0
        %v394 = vadd.f32 %v378, 0.0
        %v395 = vadd.f32 %v379, 0.0
        %v396 = vadd.f32 %v380, 0.0
        %v397 = vadd.f32 %v381, 0.0
        %v398 = vadd.f32 %v382, 0.0
        %v399 = vadd.f32 %v383, 0.0
        %v400 = vadd.f32 %v384, 0.0
        %v401 = vadd.f32 %v385, 0.0
        %v402 = vadd.f32 %v386, 0.0
        %v403 = vadd.f32 %v387, 0.0
        %v404 = vadd.f32 %v388, 0.0
        %v405 = vadd.f32 %v389, 0.0
        %v406 = vadd.f32 %v390, 0.0
        %v407 = vadd.f32 %v391, 0.0
        %v408 = vadd.f32 %v392, 0.0
        %409 = vset.pattern.permute.xlu0 1
        %410 = vperm.xlu0 %409, %v321
        %v411 = vpop.permute.xlu0 %410
        %413 = vset.pattern.permute.xlu0 1
        %414 = vperm.xlu0 %413, %v322
        %v415 = vpop.permute.xlu0 %414
        %417 = vset.pattern.permute.xlu0 1
        %418 = vperm.xlu0 %417, %v323
        %v419 = vpop.permute.xlu0 %418
        %421 = vset.pattern.permute.xlu0 1
        %422 = vperm.xlu0 %421, %v324
        %v423 = vpop.permute.xlu0 %422
        %425 = vset.pattern.permute.xlu0 1
        %426 = vperm.xlu0 %425, %v325
        %v427 = vpop.permute.xlu0 %426
        %429 = vset.pattern.permute.xlu0 1
        %430 = vperm.xlu0 %429, %v326
        %v431 = vpop.permute.xlu0 %430
        %433 = vset.pattern.permute.xlu0 1
        %434 = vperm.xlu0 %433, %v327
        %v435 = vpop.permute.xlu0 %434
        %437 = vset.pattern.permute.xlu0 1
        %438 = vperm.xlu0 %437, %v328
        %v439 = vpop.permute.xlu0 %438
        %v444 = vmul.f32 %v411, %v291
        %v445 = vmul.f32 %v411, %v295
        %v446 = vmul.f32 %v411, %v299
        %v447 = vmul.f32 %v415, %v291
        %v448 = vmul.f32 %v415, %v295
        %v449 = vmul.f32 %v415, %v299
        %v450 = vmul.f32 %v419, %v291
        %v451 = vmul.f32 %v419, %v295
        %v452 = vmul.f32 %v419, %v299
        %v453 = vmul.f32 %v423, %v291
        %v454 = vmul.f32 %v423, %v295
        %v455 = vmul.f32 %v423, %v299
        %v456 = vmul.f32 %v427, %v291
        %v457 = vmul.f32 %v427, %v295
        %v458 = vmul.f32 %v427, %v299
        %v459 = vmul.f32 %v431, %v291
        %v460 = vmul.f32 %v431, %v295
        %v461 = vmul.f32 %v431, %v299
        %v462 = vmul.f32 %v435, %v291
        %v463 = vmul.f32 %v435, %v295
        %v464 = vmul.f32 %v435, %v299
        %v465 = vmul.f32 %v439, %v291
        %v466 = vmul.f32 %v439, %v295
        %v467 = vmul.f32 %v439, %v299
        %492 = vrot.lane.b32.xlu0 %v444, 16
        %v493 = vpop.permute.xlu0 %492
        %494 = vrot.lane.b32.xlu0 %v445, 16
        %v495 = vpop.permute.xlu0 %494
        %496 = vrot.lane.b32.xlu0 %v446, 16
        %v497 = vpop.permute.xlu0 %496
        %498 = vrot.lane.b32.xlu0 %v447, 16
        %v499 = vpop.permute.xlu0 %498
        %500 = vrot.lane.b32.xlu0 %v448, 16
        %v501 = vpop.permute.xlu0 %500
        %502 = vrot.lane.b32.xlu0 %v449, 16
        %v503 = vpop.permute.xlu0 %502
        %504 = vrot.lane.b32.xlu0 %v450, 16
        %v505 = vpop.permute.xlu0 %504
        %506 = vrot.lane.b32.xlu0 %v451, 16
        %v507 = vpop.permute.xlu0 %506
        %508 = vrot.lane.b32.xlu0 %v452, 16
        %v509 = vpop.permute.xlu0 %508
        %510 = vrot.lane.b32.xlu0 %v453, 16
        %v511 = vpop.permute.xlu0 %510
        %512 = vrot.lane.b32.xlu0 %v454, 16
        %v513 = vpop.permute.xlu0 %512
        %514 = vrot.lane.b32.xlu0 %v455, 16
        %v515 = vpop.permute.xlu0 %514
        %516 = vrot.lane.b32.xlu0 %v456, 16
        %v517 = vpop.permute.xlu0 %516
        %518 = vrot.lane.b32.xlu0 %v457, 16
        %v519 = vpop.permute.xlu0 %518
        %520 = vrot.lane.b32.xlu0 %v458, 16
        %v521 = vpop.permute.xlu0 %520
        %522 = vrot.lane.b32.xlu0 %v459, 16
        %v523 = vpop.permute.xlu0 %522
        %524 = vrot.lane.b32.xlu0 %v460, 16
        %v525 = vpop.permute.xlu0 %524
        %526 = vrot.lane.b32.xlu0 %v461, 16
        %v527 = vpop.permute.xlu0 %526
        %528 = vrot.lane.b32.xlu0 %v462, 16
        %v529 = vpop.permute.xlu0 %528
        %530 = vrot.lane.b32.xlu0 %v463, 16
        %v531 = vpop.permute.xlu0 %530
        %532 = vrot.lane.b32.xlu0 %v464, 16
        %v533 = vpop.permute.xlu0 %532
        %534 = vrot.lane.b32.xlu0 %v465, 16
        %v535 = vpop.permute.xlu0 %534
        %536 = vrot.lane.b32.xlu0 %v466, 16
        %v537 = vpop.permute.xlu0 %536
        %538 = vrot.lane.b32.xlu0 %v467, 16
        %v539 = vpop.permute.xlu0 %538
        %vm540 = vcmask 130048
        %v541 = vsel %vm540, %v493, %v495
        %v542 = vsel %vm540, %v495, %v497
        %v543 = vsel %vm540, %v499, %v501
        %v544 = vsel %vm540, %v501, %v503
        %v545 = vsel %vm540, %v505, %v507
        %v546 = vsel %vm540, %v507, %v509
        %v547 = vsel %vm540, %v511, %v513
        %v548 = vsel %vm540, %v513, %v515
        %v549 = vsel %vm540, %v517, %v519
        %v550 = vsel %vm540, %v519, %v521
        %v551 = vsel %vm540, %v523, %v525
        %v552 = vsel %vm540, %v525, %v527
        %v553 = vsel %vm540, %v529, %v531
        %v554 = vsel %vm540, %v531, %v533
        %v555 = vsel %vm540, %v535, %v537
        %v556 = vsel %vm540, %v537, %v539
        %v573 = vadd.f32 %v393, %v541
        %v574 = vadd.f32 %v394, %v542
        %v575 = vadd.f32 %v395, %v543
        %v576 = vadd.f32 %v396, %v544
        %v577 = vadd.f32 %v397, %v545
        %v578 = vadd.f32 %v398, %v546
        %v579 = vadd.f32 %v399, %v547
        %v580 = vadd.f32 %v400, %v548
        %v581 = vadd.f32 %v401, %v549
        %v582 = vadd.f32 %v402, %v550
        %v583 = vadd.f32 %v403, %v551
        %v584 = vadd.f32 %v404, %v552
        %v585 = vadd.f32 %v405, %v553
        %v586 = vadd.f32 %v406, %v554
        %v587 = vadd.f32 %v407, %v555
        %v588 = vadd.f32 %v408, %v556
        %589 = vrot.lane.b32.xlu0 %v291, 15
        %v590 = vpop.permute.xlu0 %589
        %591 = vrot.lane.b32.xlu0 %v295, 15
        %v592 = vpop.permute.xlu0 %591
        %593 = vrot.lane.b32.xlu0 %v299, 15
        %v594 = vpop.permute.xlu0 %593
        %vm595 = vcmask 121856
        %v596 = vsel %vm595, %v590, %v592
        %v597 = vsel %vm595, %v592, %v594
        %v600 = vsel %vm284, %v596, 0.0
        %v601 = vsel %vm285, %v597, 0.0
        %602 = vset.pattern.permute.xlu0 2
        %603 = vperm.xlu0 %602, %v321
        %v604 = vpop.permute.xlu0 %603
        %606 = vset.pattern.permute.xlu0 2
        %607 = vperm.xlu0 %606, %v322
        %v608 = vpop.permute.xlu0 %607
        %610 = vset.pattern.permute.xlu0 2
        %611 = vperm.xlu0 %610, %v323
        %v612 = vpop.permute.xlu0 %611
        %614 = vset.pattern.permute.xlu0 2
        %615 = vperm.xlu0 %614, %v324
        %v616 = vpop.permute.xlu0 %615
        %618 = vset.pattern.permute.xlu0 2
        %619 = vperm.xlu0 %618, %v325
        %v620 = vpop.permute.xlu0 %619
        %622 = vset.pattern.permute.xlu0 2
        %623 = vperm.xlu0 %622, %v326
        %v624 = vpop.permute.xlu0 %623
        %626 = vset.pattern.permute.xlu0 2
        %627 = vperm.xlu0 %626, %v327
        %v628 = vpop.permute.xlu0 %627
        %630 = vset.pattern.permute.xlu0 2
        %631 = vperm.xlu0 %630, %v328
        %v632 = vpop.permute.xlu0 %631
        %v634 = vlaneseq
        %v635 = vshrl.u32 %v634, 7
        %v636 = vsub.s32 0, %v635
        %v637 = vrot.slane %v600, %v636
        %v638 = vlaneseq
        %v639 = vshrl.u32 %v638, 7
        %v640 = vsub.s32 0, %v639
        %v641 = vrot.slane %v601, %v640
        %v642 = vmul.f32 %v604, %v637
        %v643 = vmul.f32 %v604, %v641
        %v644 = vmul.f32 %v608, %v637
        %v645 = vmul.f32 %v608, %v641
        %v646 = vmul.f32 %v612, %v637
        %v647 = vmul.f32 %v612, %v641
        %v648 = vmul.f32 %v616, %v637
        %v649 = vmul.f32 %v616, %v641
        %v650 = vmul.f32 %v620, %v637
        %v651 = vmul.f32 %v620, %v641
        %v652 = vmul.f32 %v624, %v637
        %v653 = vmul.f32 %v624, %v641
        %v654 = vmul.f32 %v628, %v637
        %v655 = vmul.f32 %v628, %v641
        %v656 = vmul.f32 %v632, %v637
        %v657 = vmul.f32 %v632, %v641
        %v658 = vadd.f32 %v573, %v642
        %v659 = vadd.f32 %v574, %v643
        %v660 = vadd.f32 %v575, %v644
        %v661 = vadd.f32 %v576, %v645
        %v662 = vadd.f32 %v577, %v646
        %v663 = vadd.f32 %v578, %v647
        %v664 = vadd.f32 %v579, %v648
        %v665 = vadd.f32 %v580, %v649
        %v666 = vadd.f32 %v581, %v650
        %v667 = vadd.f32 %v582, %v651
        %v668 = vadd.f32 %v583, %v652
        %v669 = vadd.f32 %v584, %v653
        %v670 = vadd.f32 %v585, %v654
        %v671 = vadd.f32 %v586, %v655
        %v672 = vadd.f32 %v587, %v656
        %v673 = vadd.f32 %v588, %v657
        %674 = vrot.lane.b32.xlu0 %v291, 1
        %v675 = vpop.permute.xlu0 %674
        %676 = vrot.lane.b32.xlu0 %v295, 1
        %v677 = vpop.permute.xlu0 %676
        %678 = vrot.lane.b32.xlu0 %v299, 1
        %v679 = vpop.permute.xlu0 %678
        %vm680 = vcmask 7168
        %v681 = vsel %vm680, %v675, %v677
        %v682 = vsel %vm680, %v677, %v679
        %v685 = vsel %vm282, %v681, 0.0
        %v686 = vsel %vm283, %v682, 0.0
        %687 = vset.pattern.permute.xlu0 3
        %688 = vperm.xlu0 %687, %v321
        %v689 = vpop.permute.xlu0 %688
        %691 = vset.pattern.permute.xlu0 3
        %692 = vperm.xlu0 %691, %v322
        %v693 = vpop.permute.xlu0 %692
        %695 = vset.pattern.permute.xlu0 3
        %696 = vperm.xlu0 %695, %v323
        %v697 = vpop.permute.xlu0 %696
        %699 = vset.pattern.permute.xlu0 3
        %700 = vperm.xlu0 %699, %v324
        %v701 = vpop.permute.xlu0 %700
        %703 = vset.pattern.permute.xlu0 3
        %704 = vperm.xlu0 %703, %v325
        %v705 = vpop.permute.xlu0 %704
        %707 = vset.pattern.permute.xlu0 3
        %708 = vperm.xlu0 %707, %v326
        %v709 = vpop.permute.xlu0 %708
        %711 = vset.pattern.permute.xlu0 3
        %712 = vperm.xlu0 %711, %v327
        %v713 = vpop.permute.xlu0 %712
        %715 = vset.pattern.permute.xlu0 3
        %716 = vperm.xlu0 %715, %v328
        %v717 = vpop.permute.xlu0 %716
        %v719 = vlaneseq
        %v720 = vshrl.u32 %v719, 7
        %v721 = vsub.s32 0, %v720
        %v722 = vrot.slane %v685, %v721
        %v723 = vlaneseq
        %v724 = vshrl.u32 %v723, 7
        %v725 = vsub.s32 0, %v724
        %v726 = vrot.slane %v686, %v725
        %v727 = vmul.f32 %v689, %v722
        %v728 = vmul.f32 %v689, %v726
        %v729 = vmul.f32 %v693, %v722
        %v730 = vmul.f32 %v693, %v726
        %v731 = vmul.f32 %v697, %v722
        %v732 = vmul.f32 %v697, %v726
        %v733 = vmul.f32 %v701, %v722
        %v734 = vmul.f32 %v701, %v726
        %v735 = vmul.f32 %v705, %v722
        %v736 = vmul.f32 %v705, %v726
        %v737 = vmul.f32 %v709, %v722
        %v738 = vmul.f32 %v709, %v726
        %v739 = vmul.f32 %v713, %v722
        %v740 = vmul.f32 %v713, %v726
        %v741 = vmul.f32 %v717, %v722
        %v742 = vmul.f32 %v717, %v726
        %v743 = vadd.f32 %v658, %v727
        %v744 = vadd.f32 %v659, %v728
        %v745 = vadd.f32 %v660, %v729
        %v746 = vadd.f32 %v661, %v730
        %v747 = vadd.f32 %v662, %v731
        %v748 = vadd.f32 %v663, %v732
        %v749 = vadd.f32 %v664, %v733
        %v750 = vadd.f32 %v665, %v734
        %v751 = vadd.f32 %v666, %v735
        %v752 = vadd.f32 %v667, %v736
        %v753 = vadd.f32 %v668, %v737
        %v754 = vadd.f32 %v669, %v738
        %v755 = vadd.f32 %v670, %v739
        %v756 = vadd.f32 %v671, %v740
        %v757 = vadd.f32 %v672, %v741
        %v758 = vadd.f32 %v673, %v742
        %v759 = vld [vmem:[#allocation4 + $0x1] sm:$0x3]
        %760 = vset.pattern.permute.xlu0 4
        %761 = vperm.xlu0 %760, %v321
        %v762 = vpop.permute.xlu0 %761
        %764 = vset.pattern.permute.xlu0 4
        %765 = vperm.xlu0 %764, %v322
        %v766 = vpop.permute.xlu0 %765
        %768 = vset.pattern.permute.xlu0 4
        %769 = vperm.xlu0 %768, %v323
        %v770 = vpop.permute.xlu0 %769
        %772 = vset.pattern.permute.xlu0 4
        %773 = vperm.xlu0 %772, %v324
        %v774 = vpop.permute.xlu0 %773
        %776 = vset.pattern.permute.xlu0 4
        %777 = vperm.xlu0 %776, %v325
        %v778 = vpop.permute.xlu0 %777
        %780 = vset.pattern.permute.xlu0 4
        %781 = vperm.xlu0 %780, %v326
        %v782 = vpop.permute.xlu0 %781
        %784 = vset.pattern.permute.xlu0 4
        %785 = vperm.xlu0 %784, %v327
        %v786 = vpop.permute.xlu0 %785
        %788 = vset.pattern.permute.xlu0 4
        %789 = vperm.xlu0 %788, %v328
        %v790 = vpop.permute.xlu0 %789
        %v793 = vlaneseq
        %v794 = vshrl.u32 %v793, 7
        %v795 = vsub.s32 0, %v794
        %v796 = vrot.slane %v759, %v795
        %v797 = vlaneseq
        %v798 = vshrl.u32 %v797, 7
        %v799 = vsub.s32 1, %v798
        %v800 = vrot.slane %v759, %v799
        %v803 = vmul.f32 %v762, %v796
        %v804 = vmul.f32 %v762, %v800
        %v805 = vmul.f32 %v766, %v796
        %v806 = vmul.f32 %v766, %v800
        %v807 = vmul.f32 %v770, %v796
        %v808 = vmul.f32 %v770, %v800
        %v809 = vmul.f32 %v774, %v796
        %v810 = vmul.f32 %v774, %v800
        %v811 = vmul.f32 %v778, %v796
        %v812 = vmul.f32 %v778, %v800
        %v813 = vmul.f32 %v782, %v796
        %v814 = vmul.f32 %v782, %v800
        %v815 = vmul.f32 %v786, %v796
        %v816 = vmul.f32 %v786, %v800
        %v817 = vmul.f32 %v790, %v796
        %v818 = vmul.f32 %v790, %v800
        %v819 = vadd.f32 %v743, %v803
        %v820 = vadd.f32 %v744, %v804
        %v821 = vadd.f32 %v745, %v805
        %v822 = vadd.f32 %v746, %v806
        %v823 = vadd.f32 %v747, %v807
        %v824 = vadd.f32 %v748, %v808
        %v825 = vadd.f32 %v749, %v809
        %v826 = vadd.f32 %v750, %v810
        %v827 = vadd.f32 %v751, %v811
        %v828 = vadd.f32 %v752, %v812
        %v829 = vadd.f32 %v753, %v813
        %v830 = vadd.f32 %v754, %v814
        %v831 = vadd.f32 %v755, %v815
        %v832 = vadd.f32 %v756, %v816
        %v833 = vadd.f32 %v757, %v817
        %v834 = vadd.f32 %v758, %v818
        %v835 = vld [vmem:[#allocation4 + $0x1] sm:$0x7]
        %v837 = vlaneseq
        %v838 = vshrl.u32 %v837, 7
        %v839 = vsub.s32 0, %v838
        %v840 = vrot.slane %v835, %v839
        %v841 = vlaneseq
        %v842 = vshrl.u32 %v841, 7
        %v843 = vsub.s32 1, %v842
        %v844 = vrot.slane %v835, %v843
        %v845 = vlaneseq
        %v846 = vshrl.u32 %v845, 7
        %v847 = vsub.s32 2, %v846
        %v848 = vrot.slane %v835, %v847
        %849 = vrot.lane.b32.xlu0 %v840, 127
        %v850 = vpop.permute.xlu0 %849
        %851 = vrot.lane.b32.xlu0 %v844, 127
        %v852 = vpop.permute.xlu0 %851
        %853 = vrot.lane.b32.xlu0 %v848, 127
        %v854 = vpop.permute.xlu0 %853
        %vm855 = vcmask 1039360
        %v856 = vsel %vm855, %v850, %v852
        %v857 = vsel %vm855, %v852, %v854
        %v860 = vsel %vm284, %v856, 0.0
        %v861 = vsel %vm285, %v857, 0.0
        %862 = vset.pattern.permute.xlu0 5
        %863 = vperm.xlu0 %862, %v321
        %v864 = vpop.permute.xlu0 %863
        %866 = vset.pattern.permute.xlu0 5
        %867 = vperm.xlu0 %866, %v322
        %v868 = vpop.permute.xlu0 %867
        %870 = vset.pattern.permute.xlu0 5
        %871 = vperm.xlu0 %870, %v323
        %v872 = vpop.permute.xlu0 %871
        %874 = vset.pattern.permute.xlu0 5
        %875 = vperm.xlu0 %874, %v324
        %v876 = vpop.permute.xlu0 %875
        %878 = vset.pattern.permute.xlu0 5
        %879 = vperm.xlu0 %878, %v325
        %v880 = vpop.permute.xlu0 %879
        %882 = vset.pattern.permute.xlu0 5
        %883 = vperm.xlu0 %882, %v326
        %v884 = vpop.permute.xlu0 %883
        %886 = vset.pattern.permute.xlu0 5
        %887 = vperm.xlu0 %886, %v327
        %v888 = vpop.permute.xlu0 %887
        %890 = vset.pattern.permute.xlu0 5
        %891 = vperm.xlu0 %890, %v328
        %v892 = vpop.permute.xlu0 %891
        %v894 = vlaneseq
        %v895 = vshrl.u32 %v894, 7
        %v896 = vsub.s32 0, %v895
        %v897 = vrot.slane %v860, %v896
        %v898 = vlaneseq
        %v899 = vshrl.u32 %v898, 7
        %v900 = vsub.s32 0, %v899
        %v901 = vrot.slane %v861, %v900
        %v902 = vmul.f32 %v864, %v897
        %v903 = vmul.f32 %v864, %v901
        %v904 = vmul.f32 %v868, %v897
        %v905 = vmul.f32 %v868, %v901
        %v906 = vmul.f32 %v872, %v897
        %v907 = vmul.f32 %v872, %v901
        %v908 = vmul.f32 %v876, %v897
        %v909 = vmul.f32 %v876, %v901
        %v910 = vmul.f32 %v880, %v897
        %v911 = vmul.f32 %v880, %v901
        %v912 = vmul.f32 %v884, %v897
        %v913 = vmul.f32 %v884, %v901
        %v914 = vmul.f32 %v888, %v897
        %v915 = vmul.f32 %v888, %v901
        %v916 = vmul.f32 %v892, %v897
        %v917 = vmul.f32 %v892, %v901
        %v918 = vadd.f32 %v819, %v902
        %v919 = vadd.f32 %v820, %v903
        %v920 = vadd.f32 %v821, %v904
        %v921 = vadd.f32 %v822, %v905
        %v922 = vadd.f32 %v823, %v906
        %v923 = vadd.f32 %v824, %v907
        %v924 = vadd.f32 %v825, %v908
        %v925 = vadd.f32 %v826, %v909
        %v926 = vadd.f32 %v827, %v910
        %v927 = vadd.f32 %v828, %v911
        %v928 = vadd.f32 %v829, %v912
        %v929 = vadd.f32 %v830, %v913
        %v930 = vadd.f32 %v831, %v914
        %v931 = vadd.f32 %v832, %v915
        %v932 = vadd.f32 %v833, %v916
        %v933 = vadd.f32 %v834, %v917
        %934 = vrot.lane.b32.xlu0 %v840, 113
        %v935 = vpop.permute.xlu0 %934
        %936 = vrot.lane.b32.xlu0 %v844, 113
        %v937 = vpop.permute.xlu0 %936
        %938 = vrot.lane.b32.xlu0 %v848, 113
        %v939 = vpop.permute.xlu0 %938
        %vm940 = vcmask 924672
        %v941 = vsel %vm940, %v935, %v937
        %v942 = vsel %vm940, %v937, %v939
        %v945 = vsel %vm282, %v941, 0.0
        %v946 = vsel %vm283, %v942, 0.0
        %947 = vset.pattern.permute.xlu0 6
        %948 = vperm.xlu0 %947, %v321
        %v949 = vpop.permute.xlu0 %948
        %951 = vset.pattern.permute.xlu0 6
        %952 = vperm.xlu0 %951, %v322
        %v953 = vpop.permute.xlu0 %952
        %955 = vset.pattern.permute.xlu0 6
        %956 = vperm.xlu0 %955, %v323
        %v957 = vpop.permute.xlu0 %956
        %959 = vset.pattern.permute.xlu0 6
        %960 = vperm.xlu0 %959, %v324
        %v961 = vpop.permute.xlu0 %960
        %963 = vset.pattern.permute.xlu0 6
        %964 = vperm.xlu0 %963, %v325
        %v965 = vpop.permute.xlu0 %964
        %967 = vset.pattern.permute.xlu0 6
        %968 = vperm.xlu0 %967, %v326
        %v969 = vpop.permute.xlu0 %968
        %971 = vset.pattern.permute.xlu0 6
        %972 = vperm.xlu0 %971, %v327
        %v973 = vpop.permute.xlu0 %972
        %975 = vset.pattern.permute.xlu0 6
        %976 = vperm.xlu0 %975, %v328
        %v977 = vpop.permute.xlu0 %976
        %v979 = vlaneseq
        %v980 = vshrl.u32 %v979, 7
        %v981 = vsub.s32 0, %v980
        %v982 = vrot.slane %v945, %v981
        %v983 = vlaneseq
        %v984 = vshrl.u32 %v983, 7
        %v985 = vsub.s32 0, %v984
        %v986 = vrot.slane %v946, %v985
        %v987 = vmul.f32 %v949, %v982
        %v988 = vmul.f32 %v949, %v986
        %v989 = vmul.f32 %v953, %v982
        %v990 = vmul.f32 %v953, %v986
        %v991 = vmul.f32 %v957, %v982
        %v992 = vmul.f32 %v957, %v986
        %v993 = vmul.f32 %v961, %v982
        %v994 = vmul.f32 %v961, %v986
        %v995 = vmul.f32 %v965, %v982
        %v996 = vmul.f32 %v965, %v986
        %v997 = vmul.f32 %v969, %v982
        %v998 = vmul.f32 %v969, %v986
        %v999 = vmul.f32 %v973, %v982
        %v1000 = vmul.f32 %v973, %v986
        %v1001 = vmul.f32 %v977, %v982
        %v1002 = vmul.f32 %v977, %v986
        %v1003 = vadd.f32 %v918, %v987
        %v1004 = vadd.f32 %v919, %v988
        %v1005 = vadd.f32 %v920, %v989
        %v1006 = vadd.f32 %v921, %v990
        %v1007 = vadd.f32 %v922, %v991
        %v1008 = vadd.f32 %v923, %v992
        %v1009 = vadd.f32 %v924, %v993
        %v1010 = vadd.f32 %v925, %v994
        %v1011 = vadd.f32 %v926, %v995
        %v1012 = vadd.f32 %v927, %v996
        %v1013 = vadd.f32 %v928, %v997
        %v1014 = vadd.f32 %v929, %v998
        %v1015 = vadd.f32 %v930, %v999
        %v1016 = vadd.f32 %v931, %v1000
        %v1017 = vadd.f32 %v932, %v1001
        %v1018 = vadd.f32 %v933, %v1002
        %1019 = vset.pattern.permute.xlu0 7
        %1020 = vperm.xlu0 %1019, %v321
        %v1021 = vpop.permute.xlu0 %1020
        %1023 = vset.pattern.permute.xlu0 7
        %1024 = vperm.xlu0 %1023, %v322
        %v1025 = vpop.permute.xlu0 %1024
        %1027 = vset.pattern.permute.xlu0 7
        %1028 = vperm.xlu0 %1027, %v323
        %v1029 = vpop.permute.xlu0 %1028
        %1031 = vset.pattern.permute.xlu0 7
        %1032 = vperm.xlu0 %1031, %v324
        %v1033 = vpop.permute.xlu0 %1032
        %1035 = vset.pattern.permute.xlu0 7
        %1036 = vperm.xlu0 %1035, %v325
        %v1037 = vpop.permute.xlu0 %1036
        %1039 = vset.pattern.permute.xlu0 7
        %1040 = vperm.xlu0 %1039, %v326
        %v1041 = vpop.permute.xlu0 %1040
        %1043 = vset.pattern.permute.xlu0 7
        %1044 = vperm.xlu0 %1043, %v327
        %v1045 = vpop.permute.xlu0 %1044
        %1047 = vset.pattern.permute.xlu0 7
        %1048 = vperm.xlu0 %1047, %v328
        %v1049 = vpop.permute.xlu0 %1048
        %v1054 = vmul.f32 %v1021, %v840
        %v1055 = vmul.f32 %v1021, %v844
        %v1056 = vmul.f32 %v1021, %v848
        %v1057 = vmul.f32 %v1025, %v840
        %v1058 = vmul.f32 %v1025, %v844
        %v1059 = vmul.f32 %v1025, %v848
        %v1060 = vmul.f32 %v1029, %v840
        %v1061 = vmul.f32 %v1029, %v844
        %v1062 = vmul.f32 %v1029, %v848
        %v1063 = vmul.f32 %v1033, %v840
        %v1064 = vmul.f32 %v1033, %v844
        %v1065 = vmul.f32 %v1033, %v848
        %v1066 = vmul.f32 %v1037, %v840
        %v1067 = vmul.f32 %v1037, %v844
        %v1068 = vmul.f32 %v1037, %v848
        %v1069 = vmul.f32 %v1041, %v840
        %v1070 = vmul.f32 %v1041, %v844
        %v1071 = vmul.f32 %v1041, %v848
        %v1072 = vmul.f32 %v1045, %v840
        %v1073 = vmul.f32 %v1045, %v844
        %v1074 = vmul.f32 %v1045, %v848
        %v1075 = vmul.f32 %v1049, %v840
        %v1076 = vmul.f32 %v1049, %v844
        %v1077 = vmul.f32 %v1049, %v848
        %1102 = vrot.lane.b32.xlu0 %v1054, 112
        %v1103 = vpop.permute.xlu0 %1102
        %1104 = vrot.lane.b32.xlu0 %v1055, 112
        %v1105 = vpop.permute.xlu0 %1104
        %1106 = vrot.lane.b32.xlu0 %v1056, 112
        %v1107 = vpop.permute.xlu0 %1106
        %1108 = vrot.lane.b32.xlu0 %v1057, 112
        %v1109 = vpop.permute.xlu0 %1108
        %1110 = vrot.lane.b32.xlu0 %v1058, 112
        %v1111 = vpop.permute.xlu0 %1110
        %1112 = vrot.lane.b32.xlu0 %v1059, 112
        %v1113 = vpop.permute.xlu0 %1112
        %1114 = vrot.lane.b32.xlu0 %v1060, 112
        %v1115 = vpop.permute.xlu0 %1114
        %1116 = vrot.lane.b32.xlu0 %v1061, 112
        %v1117 = vpop.permute.xlu0 %1116
        %1118 = vrot.lane.b32.xlu0 %v1062, 112
        %v1119 = vpop.permute.xlu0 %1118
        %1120 = vrot.lane.b32.xlu0 %v1063, 112
        %v1121 = vpop.permute.xlu0 %1120
        %1122 = vrot.lane.b32.xlu0 %v1064, 112
        %v1123 = vpop.permute.xlu0 %1122
        %1124 = vrot.lane.b32.xlu0 %v1065, 112
        %v1125 = vpop.permute.xlu0 %1124
        %1126 = vrot.lane.b32.xlu0 %v1066, 112
        %v1127 = vpop.permute.xlu0 %1126
        %1128 = vrot.lane.b32.xlu0 %v1067, 112
        %v1129 = vpop.permute.xlu0 %1128
        %1130 = vrot.lane.b32.xlu0 %v1068, 112
        %v1131 = vpop.permute.xlu0 %1130
        %1132 = vrot.lane.b32.xlu0 %v1069, 112
        %v1133 = vpop.permute.xlu0 %1132
        %1134 = vrot.lane.b32.xlu0 %v1070, 112
        %v1135 = vpop.permute.xlu0 %1134
        %1136 = vrot.lane.b32.xlu0 %v1071, 112
        %v1137 = vpop.permute.xlu0 %1136
        %1138 = vrot.lane.b32.xlu0 %v1072, 112
        %v1139 = vpop.permute.xlu0 %1138
        %1140 = vrot.lane.b32.xlu0 %v1073, 112
        %v1141 = vpop.permute.xlu0 %1140
        %1142 = vrot.lane.b32.xlu0 %v1074, 112
        %v1143 = vpop.permute.xlu0 %1142
        %1144 = vrot.lane.b32.xlu0 %v1075, 112
        %v1145 = vpop.permute.xlu0 %1144
        %1146 = vrot.lane.b32.xlu0 %v1076, 112
        %v1147 = vpop.permute.xlu0 %1146
        %1148 = vrot.lane.b32.xlu0 %v1077, 112
        %v1149 = vpop.permute.xlu0 %1148
        %vm1150 = vcmask 916480
        %v1151 = vsel %vm1150, %v1103, %v1105
        %v1152 = vsel %vm1150, %v1105, %v1107
        %v1153 = vsel %vm1150, %v1109, %v1111
        %v1154 = vsel %vm1150, %v1111, %v1113
        %v1155 = vsel %vm1150, %v1115, %v1117
        %v1156 = vsel %vm1150, %v1117, %v1119
        %v1157 = vsel %vm1150, %v1121, %v1123
        %v1158 = vsel %vm1150, %v1123, %v1125
        %v1159 = vsel %vm1150, %v1127, %v1129
        %v1160 = vsel %vm1150, %v1129, %v1131
        %v1161 = vsel %vm1150, %v1133, %v1135
        %v1162 = vsel %vm1150, %v1135, %v1137
        %v1163 = vsel %vm1150, %v1139, %v1141
        %v1164 = vsel %vm1150, %v1141, %v1143
        %v1165 = vsel %vm1150, %v1145, %v1147
        %v1166 = vsel %vm1150, %v1147, %v1149
        %v1183 = vadd.f32 %v1003, %v1151
        %v1184 = vadd.f32 %v1004, %v1152
        %v1185 = vadd.f32 %v1005, %v1153
        %v1186 = vadd.f32 %v1006, %v1154
        %v1187 = vadd.f32 %v1007, %v1155
        %v1188 = vadd.f32 %v1008, %v1156
        %v1189 = vadd.f32 %v1009, %v1157
        %v1190 = vadd.f32 %v1010, %v1158
        %v1191 = vadd.f32 %v1011, %v1159
        %v1192 = vadd.f32 %v1012, %v1160
        %v1193 = vadd.f32 %v1013, %v1161
        %v1194 = vadd.f32 %v1014, %v1162
        %v1195 = vadd.f32 %v1015, %v1163
        %v1196 = vadd.f32 %v1016, %v1164
        %v1197 = vadd.f32 %v1017, %v1165
        %v1198 = vadd.f32 %v1018, %v1166
        %1199 = vrot.lane.b32.xlu0 %v840, 111
        %v1200 = vpop.permute.xlu0 %1199
        %1201 = vrot.lane.b32.xlu0 %v844, 111
        %v1202 = vpop.permute.xlu0 %1201
        %1203 = vrot.lane.b32.xlu0 %v848, 111
        %v1204 = vpop.permute.xlu0 %1203
        %vm1205 = vcmask 908288
        %v1206 = vsel %vm1205, %v1200, %v1202
        %v1207 = vsel %vm1205, %v1202, %v1204
        %v1210 = vsel %vm284, %v1206, 0.0
        %v1211 = vsel %vm285, %v1207, 0.0
        %1212 = vset.pattern.permute.xlu0 8
        %1213 = vperm.xlu0 %1212, %v321
        %v1214 = vpop.permute.xlu0 %1213
        %1216 = vset.pattern.permute.xlu0 8
        %1217 = vperm.xlu0 %1216, %v322
        %v1218 = vpop.permute.xlu0 %1217
        %1220 = vset.pattern.permute.xlu0 8
        %1221 = vperm.xlu0 %1220, %v323
        %v1222 = vpop.permute.xlu0 %1221
        %1224 = vset.pattern.permute.xlu0 8
        %1225 = vperm.xlu0 %1224, %v324
        %v1226 = vpop.permute.xlu0 %1225
        %1228 = vset.pattern.permute.xlu0 8
        %1229 = vperm.xlu0 %1228, %v325
        %v1230 = vpop.permute.xlu0 %1229
        %1232 = vset.pattern.permute.xlu0 8
        %1233 = vperm.xlu0 %1232, %v326
        %v1234 = vpop.permute.xlu0 %1233
        %1236 = vset.pattern.permute.xlu0 8
        %1237 = vperm.xlu0 %1236, %v327
        %v1238 = vpop.permute.xlu0 %1237
        %1240 = vset.pattern.permute.xlu0 8
        %1241 = vperm.xlu0 %1240, %v328
        %v1242 = vpop.permute.xlu0 %1241
        %v1244 = vlaneseq
        %v1245 = vshrl.u32 %v1244, 7
        %v1246 = vsub.s32 0, %v1245
        %v1247 = vrot.slane %v1210, %v1246
        %v1248 = vlaneseq
        %v1249 = vshrl.u32 %v1248, 7
        %v1250 = vsub.s32 0, %v1249
        %v1251 = vrot.slane %v1211, %v1250
        %v1252 = vmul.f32 %v1214, %v1247
        %v1253 = vmul.f32 %v1214, %v1251
        %v1254 = vmul.f32 %v1218, %v1247
        %v1255 = vmul.f32 %v1218, %v1251
        %v1256 = vmul.f32 %v1222, %v1247
        %v1257 = vmul.f32 %v1222, %v1251
        %v1258 = vmul.f32 %v1226, %v1247
        %v1259 = vmul.f32 %v1226, %v1251
        %v1260 = vmul.f32 %v1230, %v1247
        %v1261 = vmul.f32 %v1230, %v1251
        %v1262 = vmul.f32 %v1234, %v1247
        %v1263 = vmul.f32 %v1234, %v1251
        %v1264 = vmul.f32 %v1238, %v1247
        %v1265 = vmul.f32 %v1238, %v1251
        %v1266 = vmul.f32 %v1242, %v1247
        %v1267 = vmul.f32 %v1242, %v1251
        %v1268 = vadd.f32 %v1183, %v1252
        %v1269 = vadd.f32 %v1184, %v1253
        %v1270 = vadd.f32 %v1185, %v1254
        %v1271 = vadd.f32 %v1186, %v1255
        %v1272 = vadd.f32 %v1187, %v1256
        %v1273 = vadd.f32 %v1188, %v1257
        %v1274 = vadd.f32 %v1189, %v1258
        %v1275 = vadd.f32 %v1190, %v1259
        %v1276 = vadd.f32 %v1191, %v1260
        %v1277 = vadd.f32 %v1192, %v1261
        %v1278 = vadd.f32 %v1193, %v1262
        %v1279 = vadd.f32 %v1194, %v1263
        %v1280 = vadd.f32 %v1195, %v1264
        %v1281 = vadd.f32 %v1196, %v1265
        %v1282 = vadd.f32 %v1197, %v1266
        %v1283 = vadd.f32 %v1198, %v1267
        %v1284 = vmax.f32 %v1268, 0.0
        %v1285 = vmax.f32 %v1269, 0.0
        %v1286 = vmax.f32 %v1270, 0.0
        %v1287 = vmax.f32 %v1271, 0.0
        %v1288 = vmax.f32 %v1272, 0.0
        %v1289 = vmax.f32 %v1273, 0.0
        %v1290 = vmax.f32 %v1274, 0.0
        %v1291 = vmax.f32 %v1275, 0.0
        %v1292 = vmax.f32 %v1276, 0.0
        %v1293 = vmax.f32 %v1277, 0.0
        %v1294 = vmax.f32 %v1278, 0.0
        %v1295 = vmax.f32 %v1279, 0.0
        %v1296 = vmax.f32 %v1280, 0.0
        %v1297 = vmax.f32 %v1281, 0.0
        %v1298 = vmax.f32 %v1282, 0.0
        %v1299 = vmax.f32 %v1283, 0.0
        %v1300 = vpack.c.bf16 %v1286, %v1284
        %v1301 = vpack.c.bf16 %v1287, %v1285
        %v1302 = vpack.c.bf16 %v1290, %v1288
        %v1303 = vpack.c.bf16 %v1291, %v1289
        %v1304 = vpack.c.bf16 %v1294, %v1292
        %v1305 = vpack.c.bf16 %v1295, %v1293
        %v1306 = vpack.c.bf16 %v1298, %v1296
        %v1307 = vpack.c.bf16 %v1299, %v1297
        %1308 = vst [vmem:[#allocation2 + $0x8] sm:$0xff] %v1300
        %1309 = vst [vmem:[#allocation2 + $0x10] sm:$0xff] %v1301
        %1310 = vst [vmem:[#allocation2 + $0x28] sm:$0xff] %v1302
        %1311 = vst [vmem:[#allocation2 + $0x30] sm:$0xff] %v1303
        %1312 = vst [vmem:[#allocation2 + $0x48] sm:$0xff] %v1304
        %1313 = vst [vmem:[#allocation2 + $0x50] sm:$0xff] %v1305
        %1314 = vst [vmem:[#allocation2 + $0x68] sm:$0xff] %v1306
        %1315 = vst [vmem:[#allocation2 + $0x70] sm:$0xff] %v1307
        loop: start=0, step=1, limit=9
        $region37: #{tpu_custom_call.1} parent=35 // loop_pre_header
          _
        $region38: #{tpu_custom_call.1} parent=35 // loop_header
          %s1317 = sphi 0, %s1321
          %p1318 = scmp.ge.s32.totalorder %s1317, 9
        $region39: #{tpu_custom_call.1} parent=35 // loop_header_branch
          %1320 = sbr.rel (%p1318) target = $region43
        $region40: #{tpu_custom_call.1} parent=35 // loop_body
          %v1322 = vld [vmem:[#allocation2] sm:$0xff]
          %v1323 = vld [vmem:[#allocation2 + $0x8] sm:$0xff]
          %v1324 = vld [vmem:[#allocation2 + $0x10] sm:$0xff]
          %v1325 = vld [vmem:[#allocation2 + $0x20] sm:$0xff]
          %v1326 = vld [vmem:[#allocation2 + $0x28] sm:$0xff]
          %v1327 = vld [vmem:[#allocation2 + $0x30] sm:$0xff]
          %v1328 = vld [vmem:[#allocation2 + $0x40] sm:$0xff]
          %v1329 = vld [vmem:[#allocation2 + $0x48] sm:$0xff]
          %v1330 = vld [vmem:[#allocation2 + $0x50] sm:$0xff]
          %v1331 = vld [vmem:[#allocation2 + $0x60] sm:$0xff]
          %v1332 = vld [vmem:[#allocation2 + $0x68] sm:$0xff]
          %v1333 = vld [vmem:[#allocation2 + $0x70] sm:$0xff]
          %v1334 = vsel %vm282, 1, 0
          %v1335 = vsel %vm283, 1, 0
          %vm1336 = vcmp.eq.s32.totalorder %v1334, 1
          %vm1337 = vcmp.eq.s32.totalorder %v1335, 1
          %vm1338 = vmpackc.low %vm1337, %vm1336
          %v1339 = vsel %vm1338, 65537, 0
          %v1340 = vlaneseq
          %v1341 = vshrl.u32 %v1340, 7
          %v1342 = vsub.s32 0, %v1341
          %v1343 = vrot.slane %v1339, %v1342
          %v1344 = vlaneseq
          %v1345 = vshrl.u32 %v1344, 7
          %v1346 = vsub.s32 4, %v1345
          %v1347 = vrot.slane %v1339, %v1346
          %1348 = vrot.lane.b32.xlu0 %v1343, 111
          %v1349 = vpop.permute.xlu0 %1348
          %1350 = vrot.lane.b32.xlu0 %v1347, 111
          %v1351 = vpop.permute.xlu0 %1350
          %vm1352 = vcmask 908288
          %v1353 = vsel %vm1352, %v1349, %v1351
          %vm1354 = vcmp.ne.s16.totalorder %v1349, 0
          %vm1355 = vcmp.ne.s16.totalorder %v1353, 0
          %vm1356 = vcmp.ne.s16.totalorder %v1351, 0
          %v1357 = vsel %vm1354, %v1322, 0
          %v1358 = vsel %vm1355, %v1323, 0
          %v1359 = vsel %vm1356, %v1324, 0
          %v1360 = vsel %vm1354, %v1325, 0
          %v1361 = vsel %vm1355, %v1326, 0
          %v1362 = vsel %vm1356, %v1327, 0
          %v1363 = vsel %vm1354, %v1328, 0
          %v1364 = vsel %vm1355, %v1329, 0
          %v1365 = vsel %vm1356, %v1330, 0
          %v1366 = vsel %vm1354, %v1331, 0
          %v1367 = vsel %vm1355, %v1332, 0
          %v1368 = vsel %vm1356, %v1333, 0
          %s1369 = smul.u32 %s1317, 18
          %s1370 = smul.u32 %s1369, 8
          %s1371 = smul.addr %s1370, 4
          %s1372 = scalar_lea.vmem %s2, %s1371
          %v1373 = vld [vmem:[%s1372] sm:$0xf]
          %v1374 = vld [vmem:[%s1372 + $0x4] sm:$0xf]
          %v1375 = vld [vmem:[%s1372 + $0x8] sm:$0xf]
          %v1376 = vld [vmem:[%s1372 + $0xc] sm:$0xf]
          %v1377 = vld [vmem:[%s1372 + $0x10] sm:$0xf]
          %v1378 = vld [vmem:[%s1372 + $0x14] sm:$0xf]
          %v1379 = vld [vmem:[%s1372 + $0x18] sm:$0xf]
          %v1380 = vld [vmem:[%s1372 + $0x1c] sm:$0xf]
          %s1381 = sadd.s32 %s1369, 1
          %s1382 = smul.u32 %s1381, 8
          %s1383 = smul.addr %s1382, 4
          %s1384 = scalar_lea.vmem %s2, %s1383
          %v1385 = vld [vmem:[%s1384] sm:$0xf]
          %v1386 = vld [vmem:[%s1384 + $0x4] sm:$0xf]
          %v1387 = vld [vmem:[%s1384 + $0x8] sm:$0xf]
          %v1388 = vld [vmem:[%s1384 + $0xc] sm:$0xf]
          %v1389 = vld [vmem:[%s1384 + $0x10] sm:$0xf]
          %v1390 = vld [vmem:[%s1384 + $0x14] sm:$0xf]
          %v1391 = vld [vmem:[%s1384 + $0x18] sm:$0xf]
          %v1392 = vld [vmem:[%s1384 + $0x1c] sm:$0xf]
          %v1401 = vunpack.c.l.b16 %v1385
          %v1402 = vunpack.c.l.b16 %v1386
          %v1403 = vunpack.c.l.b16 %v1387
          %v1404 = vunpack.c.l.b16 %v1388
          %v1405 = vunpack.c.l.b16 %v1389
          %v1406 = vunpack.c.l.b16 %v1390
          %v1407 = vunpack.c.l.b16 %v1391
          %v1408 = vunpack.c.l.b16 %v1392
          %v1409 = vpack.c.b16 %v1402, %v1401
          %v1410 = vpack.c.b16 %v1404, %v1403
          %v1411 = vpack.c.b16 %v1406, %v1405
          %v1412 = vpack.c.b16 %v1408, %v1407
          %1425 = vrot.lane.b32.xlu0 %v1322, 16
          %v1426 = vpop.permute.xlu0 %1425
          %1427 = vrot.lane.b32.xlu0 %v1323, 16
          %v1428 = vpop.permute.xlu0 %1427
          %1429 = vrot.lane.b32.xlu0 %v1324, 16
          %v1430 = vpop.permute.xlu0 %1429
          %1431 = vrot.lane.b32.xlu0 %v1325, 16
          %v1432 = vpop.permute.xlu0 %1431
          %1433 = vrot.lane.b32.xlu0 %v1326, 16
          %v1434 = vpop.permute.xlu0 %1433
          %1435 = vrot.lane.b32.xlu0 %v1327, 16
          %v1436 = vpop.permute.xlu0 %1435
          %1437 = vrot.lane.b32.xlu0 %v1328, 16
          %v1438 = vpop.permute.xlu0 %1437
          %1439 = vrot.lane.b32.xlu0 %v1329, 16
          %v1440 = vpop.permute.xlu0 %1439
          %1441 = vrot.lane.b32.xlu0 %v1330, 16
          %v1442 = vpop.permute.xlu0 %1441
          %1443 = vrot.lane.b32.xlu0 %v1331, 16
          %v1444 = vpop.permute.xlu0 %1443
          %1445 = vrot.lane.b32.xlu0 %v1332, 16
          %v1446 = vpop.permute.xlu0 %1445
          %1447 = vrot.lane.b32.xlu0 %v1333, 16
          %v1448 = vpop.permute.xlu0 %1447
          %vm1449 = vcmask 130048
          %v1450 = vsel %vm1449, %v1426, %v1428
          %v1451 = vsel %vm1449, %v1428, %v1430
          %v1452 = vsel %vm1449, %v1432, %v1434
          %v1453 = vsel %vm1449, %v1434, %v1436
          %v1454 = vsel %vm1449, %v1438, %v1440
          %v1455 = vsel %vm1449, %v1440, %v1442
          %v1456 = vsel %vm1449, %v1444, %v1446
          %v1457 = vsel %vm1449, %v1446, %v1448
          %vm1466 = vcmask 523264
          %v1468 = vsel %vm1466, %v1409, 0
          %v1471 = vsel %vm1466, %v1410, 0
          %v1474 = vsel %vm1466, %v1411, 0
          %v1477 = vsel %vm1466, %v1412, 0
          %1479 = vmatprep.subr.bf16.mxu0 %v1451
          %1480 = vmatpush1.bf16.msra.mxu0 %v1450
          %1481 = vmatprep.subr.bf16.mxu0 %v1453
          %1482 = vmatpush1.bf16.msra.mxu0 %v1452
          %1483 = vmatprep.subr.bf16.mxu0 %v1455
          %1484 = vmatpush1.bf16.msra.mxu0 %v1454
          %1485 = vmatprep.subr.bf16.mxu0 %v1457
          %1486 = vmatpush1.bf16.msra.mxu0 %v1456
          %1487 = vmatprep.subr.bf16.mxu0 0
          %1488 = vmatpush1.bf16.msra.mxu0 0
          %1489 = vmatprep.subr.bf16.mxu0 0
          %1490 = vmatpush1.bf16.msra.mxu0 0
          %1491 = vmatprep.subr.bf16.mxu0 0
          %1492 = vmatpush1.bf16.msra.mxu0 0
          %1493 = vmatprep.subr.bf16.mxu0 0
          %1494 = vmatpush1.bf16.msra.mxu0 0
          %1495 = vmatprep.subr.bf16.mxu0 0
          %1496 = vmatpush1.bf16.msra.mxu0 0
          %1497 = vmatprep.subr.bf16.mxu0 0
          %1498 = vmatpush1.bf16.msra.mxu0 0
          %1499 = vmatprep.subr.bf16.mxu0 0
          %1500 = vmatpush1.bf16.msra.mxu0 0
          %1501 = vmatprep.subr.bf16.mxu0 0
          %1502 = vmatpush1.bf16.msra.mxu0 0
          %1503 = vmatprep.subr.bf16.mxu0 0
          %1504 = vmatpush1.bf16.msra.mxu0 0
          %1505 = vmatprep.subr.bf16.mxu0 0
          %1506 = vmatpush1.bf16.msra.mxu0 0
          %1507 = vmatprep.subr.bf16.mxu0 0
          %1508 = vmatpush1.bf16.msra.mxu0 0
          %1509 = vmatprep.subr.bf16.mxu0 0
          %1510 = vmatpush1.bf16.msra.mxu0 0
          %1511 = vmatprep.mubr.bf16.mxu0 0
          %1512 = vmatmul.mubr.bf16.gmra.mrb[0].mxu0 %v1468
          %v1513 = vpop.f32.mrb[0].mxu0
          %v1514 = vadd.f32 0.0, %v1513
          %v1515 = vpop.f32.mrb[0].mxu0
          %v1516 = vadd.f32 0.0, %v1515
          %v1517 = vpop.f32.mrb[0].mxu0
          %v1518 = vadd.f32 0.0, %v1517
          %v1519 = vpop.f32.mrb[0].mxu0
          %v1520 = vadd.f32 0.0, %v1519
          %1521 = vmatprep.mubr.bf16.mxu0 0
          %1522 = vmatmul.mubr.bf16.gmra.mrb[0].mxu0 %v1471
          %v1523 = vpop.f32.mrb[0].mxu0
          %v1524 = vadd.f32 0.0, %v1523
          %v1525 = vpop.f32.mrb[0].mxu0
          %v1526 = vadd.f32 0.0, %v1525
          %v1527 = vpop.f32.mrb[0].mxu0
          %v1528 = vadd.f32 0.0, %v1527
          %v1529 = vpop.f32.mrb[0].mxu0
          %v1530 = vadd.f32 0.0, %v1529
          %1531 = vmatprep.mubr.bf16.mxu0 0
          %1532 = vmatmul.mubr.bf16.gmra.mrb[0].mxu0 %v1474
          %v1533 = vpop.f32.mrb[0].mxu0
          %v1534 = vadd.f32 0.0, %v1533
          %v1535 = vpop.f32.mrb[0].mxu0
          %v1536 = vadd.f32 0.0, %v1535
          %v1537 = vpop.f32.mrb[0].mxu0
          %v1538 = vadd.f32 0.0, %v1537
          %v1539 = vpop.f32.mrb[0].mxu0
          %v1540 = vadd.f32 0.0, %v1539
          %1541 = vmatprep.mubr.bf16.mxu0 0
          %1542 = vmatmul.mubr.bf16.gmra.mrb[0].mxu0 %v1477
          %v1543 = vpop.f32.mrb[0].mxu0
          %v1544 = vadd.f32 0.0, %v1543
          %v1545 = vpop.f32.mrb[0].mxu0
          %v1546 = vadd.f32 0.0, %v1545
          %v1547 = vpop.f32.mrb[0].mxu0
          %v1548 = vadd.f32 0.0, %v1547
          %v1549 = vpop.f32.mrb[0].mxu0
          %v1550 = vadd.f32 0.0, %v1549
          %1551 = vdwg.mxu0
          %v1560 = vunpack.c.l.b16 %v1373
          %v1561 = vunpack.c.l.b16 %v1374
          %v1562 = vunpack.c.l.b16 %v1375
          %v1563 = vunpack.c.l.b16 %v1376
          %v1564 = vunpack.c.l.b16 %v1377
          %v1565 = vunpack.c.l.b16 %v1378
          %v1566 = vunpack.c.l.b16 %v1379
          %v1567 = vunpack.c.l.b16 %v1380
          %v1568 = vpack.c.b16 %v1561, %v1560
          %v1569 = vpack.c.b16 %v1563, %v1562
          %v1570 = vpack.c.b16 %v1565, %v1564
          %v1571 = vpack.c.b16 %v1567, %v1566
          %1584 = vrot.lane.b32.xlu0 %v1357, 17
          %v1585 = vpop.permute.xlu0 %1584
          %1586 = vrot.lane.b32.xlu0 %v1358, 17
          %v1587 = vpop.permute.xlu0 %1586
          %1588 = vrot.lane.b32.xlu0 %v1359, 17
          %v1589 = vpop.permute.xlu0 %1588
          %1590 = vrot.lane.b32.xlu0 %v1360, 17
          %v1591 = vpop.permute.xlu0 %1590
          %1592 = vrot.lane.b32.xlu0 %v1361, 17
          %v1593 = vpop.permute.xlu0 %1592
          %1594 = vrot.lane.b32.xlu0 %v1362, 17
          %v1595 = vpop.permute.xlu0 %1594
          %1596 = vrot.lane.b32.xlu0 %v1363, 17
          %v1597 = vpop.permute.xlu0 %1596
          %1598 = vrot.lane.b32.xlu0 %v1364, 17
          %v1599 = vpop.permute.xlu0 %1598
          %1600 = vrot.lane.b32.xlu0 %v1365, 17
          %v1601 = vpop.permute.xlu0 %1600
          %1602 = vrot.lane.b32.xlu0 %v1366, 17
          %v1603 = vpop.permute.xlu0 %1602
          %1604 = vrot.lane.b32.xlu0 %v1367, 17
          %v1605 = vpop.permute.xlu0 %1604
          %1606 = vrot.lane.b32.xlu0 %v1368, 17
          %v1607 = vpop.permute.xlu0 %1606
          %vm1608 = vcmask 138240
          %v1609 = vsel %vm1608, %v1585, %v1587
          %v1610 = vsel %vm1608, %v1587, %v1589
          %v1611 = vsel %vm1608, %v1591, %v1593
          %v1612 = vsel %vm1608, %v1593, %v1595
          %v1613 = vsel %vm1608, %v1597, %v1599
          %v1614 = vsel %vm1608, %v1599, %v1601
          %v1615 = vsel %vm1608, %v1603, %v1605
          %v1616 = vsel %vm1608, %v1605, %v1607
          %v1626 = vsel %vm1466, %v1568, 0
          %v1629 = vsel %vm1466, %v1569, 0
          %v1632 = vsel %vm1466, %v1570, 0
          %v1635 = vsel %vm1466, %v1571, 0
          %1637 = vmatprep.subr.bf16.mxu0 %v1610
          %1638 = vmatpush1.bf16.msra.mxu0 %v1609
          %1639 = vmatprep.subr.bf16.mxu0 %v1612
          %1640 = vmatpush1.bf16.msra.mxu0 %v1611
          %1641 = vmatprep.subr.bf16.mxu0 %v1614
          %1642 = vmatpush1.bf16.msra.mxu0 %v1613
          %1643 = vmatprep.subr.bf16.mxu0 %v1616
          %1644 = vmatpush1.bf16.msra.mxu0 %v1615
          %1645 = vmatprep.subr.bf16.mxu0 0
          %1646 = vmatpush1.bf16.msra.mxu0 0
          %1647 = vmatprep.subr.bf16.mxu0 0
          %1648 = vmatpush1.bf16.msra.mxu0 0
          %1649 = vmatprep.subr.bf16.mxu0 0
          %1650 = vmatpush1.bf16.msra.mxu0 0
          %1651 = vmatprep.subr.bf16.mxu0 0
          %1652 = vmatpush1.bf16.msra.mxu0 0
          %1653 = vmatprep.subr.bf16.mxu0 0
          %1654 = vmatpush1.bf16.msra.mxu0 0
          %1655 = vmatprep.subr.bf16.mxu0 0
          %1656 = vmatpush1.bf16.msra.mxu0 0
          %1657 = vmatprep.subr.bf16.mxu0 0
          %1658 = vmatpush1.bf16.msra.mxu0 0
          %1659 = vmatprep.subr.bf16.mxu0 0
          %1660 = vmatpush1.bf16.msra.mxu0 0
          %1661 = vmatprep.subr.bf16.mxu0 0
          %1662 = vmatpush1.bf16.msra.mxu0 0
          %1663 = vmatprep.subr.bf16.mxu0 0
          %1664 = vmatpush1.bf16.msra.mxu0 0
          %1665 = vmatprep.subr.bf16.mxu0 0
          %1666 = vmatpush1.bf16.msra.mxu0 0
          %1667 = vmatprep.subr.bf16.mxu0 0
          %1668 = vmatpush1.bf16.msra.mxu0 0
          %1669 = vmatprep.mubr.bf16.mxu0 0
          %1670 = vmatmul.mubr.bf16.gmra.mrb[0].mxu0 %v1626
          %v1671 = vpop.f32.mrb[0].mxu0
          %v1672 = vadd.f32 %v1514, %v1671
          %v1673 = vpop.f32.mrb[0].mxu0
          %v1674 = vadd.f32 %v1516, %v1673
          %v1675 = vpop.f32.mrb[0].mxu0
          %v1676 = vadd.f32 %v1518, %v1675
          %v1677 = vpop.f32.mrb[0].mxu0
          %v1678 = vadd.f32 %v1520, %v1677
          %1679 = vmatprep.mubr.bf16.mxu0 0
          %1680 = vmatmul.mubr.bf16.gmra.mrb[0].mxu0 %v1629
          %v1681 = vpop.f32.mrb[0].mxu0
          %v1682 = vadd.f32 %v1524, %v1681
          %v1683 = vpop.f32.mrb[0].mxu0
          %v1684 = vadd.f32 %v1526, %v1683
          %v1685 = vpop.f32.mrb[0].mxu0
          %v1686 = vadd.f32 %v1528, %v1685
          %v1687 = vpop.f32.mrb[0].mxu0
          %v1688 = vadd.f32 %v1530, %v1687
          %1689 = vmatprep.mubr.bf16.mxu0 0
          %1690 = vmatmul.mubr.bf16.gmra.mrb[0].mxu0 %v1632
          %v1691 = vpop.f32.mrb[0].mxu0
          %v1692 = vadd.f32 %v1534, %v1691
          %v1693 = vpop.f32.mrb[0].mxu0
          %v1694 = vadd.f32 %v1536, %v1693
          %v1695 = vpop.f32.mrb[0].mxu0
          %v1696 = vadd.f32 %v1538, %v1695
          %v1697 = vpop.f32.mrb[0].mxu0
          %v1698 = vadd.f32 %v1540, %v1697
          %1699 = vmatprep.mubr.bf16.mxu0 0
          %1700 = vmatmul.mubr.bf16.gmra.mrb[0].mxu0 %v1635
          %v1701 = vpop.f32.mrb[0].mxu0
          %v1702 = vadd.f32 %v1544, %v1701
          %v1703 = vpop.f32.mrb[0].mxu0
          %v1704 = vadd.f32 %v1546, %v1703
          %v1705 = vpop.f32.mrb[0].mxu0
          %v1706 = vadd.f32 %v1548, %v1705
          %v1707 = vpop.f32.mrb[0].mxu0
          %v1708 = vadd.f32 %v1550, %v1707
          %1709 = vdwg.mxu0
          %v1710 = vsel %vm284, 1, 0
          %v1711 = vsel %vm285, 1, 0
          %vm1712 = vcmp.eq.s32.totalorder %v1710, 1
          %vm1713 = vcmp.eq.s32.totalorder %v1711, 1
          %vm1714 = vmpackc.low %vm1713, %vm1712
          %v1715 = vsel %vm1714, 65537, 0
          %v1716 = vlaneseq
          %v1717 = vshrl.u32 %v1716, 7
          %v1718 = vsub.s32 0, %v1717
          %v1719 = vrot.slane %v1715, %v1718
          %v1720 = vlaneseq
          %v1721 = vshrl.u32 %v1720, 7
          %v1722 = vsub.s32 4, %v1721
          %v1723 = vrot.slane %v1715, %v1722
          %1724 = vrot.lane.b32.xlu0 %v1719, 113
          %v1725 = vpop.permute.xlu0 %1724
          %1726 = vrot.lane.b32.xlu0 %v1723, 113
          %v1727 = vpop.permute.xlu0 %1726
          %vm1728 = vcmask 924672
          %v1729 = vsel %vm1728, %v1725, %v1727
          %vm1730 = vcmp.ne.s16.totalorder %v1725, 0
          %vm1731 = vcmp.ne.s16.totalorder %v1729, 0
          %vm1732 = vcmp.ne.s16.totalorder %v1727, 0
          %v1733 = vsel %vm1730, %v1322, 0
          %v1734 = vsel %vm1731, %v1323, 0
          %v1735 = vsel %vm1732, %v1324, 0
          %v1736 = vsel %vm1730, %v1325, 0
          %v1737 = vsel %vm1731, %v1326, 0
          %v1738 = vsel %vm1732, %v1327, 0
          %v1739 = vsel %vm1730, %v1328, 0
          %v1740 = vsel %vm1731, %v1329, 0
          %v1741 = vsel %vm1732, %v1330, 0
          %v1742 = vsel %vm1730, %v1331, 0
          %v1743 = vsel %vm1731, %v1332, 0
          %v1744 = vsel %vm1732, %v1333, 0
          %s1745 = sadd.s32 %s1369, 2
          %s1746 = smul.u32 %s1745, 8
          %s1747 = smul.addr %s1746, 4
          %s1748 = scalar_lea.vmem %s2, %s1747
          %v1749 = vld [vmem:[%s1748] sm:$0xf]
          %v1750 = vld [vmem:[%s1748 + $0x4] sm:$0xf]
          %v1751 = vld [vmem:[%s1748 + $0x8] sm:$0xf]
          %v1752 = vld [vmem:[%s1748 + $0xc] sm:$0xf]
          %v1753 = vld [vmem:[%s1748 + $0x10] sm:$0xf]
          %v1754 = vld [vmem:[%s1748 + $0x14] sm:$0xf]
          %v1755 = vld [vmem:[%s1748 + $0x18] sm:$0xf]
          %v1756 = vld [vmem:[%s1748 + $0x1c] sm:$0xf]
          %v1765 = vunpack.c.l.b16 %v1749
          %v1766 = vunpack.c.l.b16 %v1750
          %v1767 = vunpack.c.l.b16 %v1751
          %v1768 = vunpack.c.l.b16 %v1752
          %v1769 = vunpack.c.l.b16 %v1753
          %v1770 = vunpack.c.l.b16 %v1754
          %v1771 = vunpack.c.l.b16 %v1755
          %v1772 = vunpack.c.l.b16 %v1756
          %v1773 = vpack.c.b16 %v1766, %v1765
          %v1774 = vpack.c.b16 %v1768, %v1767
          %v1775 = vpack.c.b16 %v1770, %v1769
          %v1776 = vpack.c.b16 %v1772, %v1771
          %1789 = vrot.lane.b32.xlu0 %v1733, 15
          %v1790 = vpop.permute.xlu0 %1789
          %1791 = vrot.lane.b32.xlu0 %v1734, 15
          %v1792 = vpop.permute.xlu0 %1791
          %1793 = vrot.lane.b32.xlu0 %v1735, 15
          %v1794 = vpop.permute.xlu0 %1793
          %1795 = vrot.lane.b32.xlu0 %v1736, 15
          %v1796 = vpop.permute.xlu0 %1795
          %1797 = vrot.lane.b32.xlu0 %v1737, 15
          %v1798 = vpop.permute.xlu0 %1797
          %1799 = vrot.lane.b32.xlu0 %v1738, 15
          %v1800 = vpop.permute.xlu0 %1799
          %1801 = vrot.lane.b32.xlu0 %v1739, 15
          %v1802 = vpop.permute.xlu0 %1801
          %1803 = vrot.lane.b32.xlu0 %v1740, 15
          %v1804 = vpop.permute.xlu0 %1803
          %1805 = vrot.lane.b32.xlu0 %v1741, 15
          %v1806 = vpop.permute.xlu0 %1805
          %1807 = vrot.lane.b32.xlu0 %v1742, 15
          %v1808 = vpop.permute.xlu0 %1807
          %1809 = vrot.lane.b32.xlu0 %v1743, 15
          %v1810 = vpop.permute.xlu0 %1809
          %1811 = vrot.lane.b32.xlu0 %v1744, 15
          %v1812 = vpop.permute.xlu0 %1811
          %vm1813 = vcmask 121856
          %v1814 = vsel %vm1813, %v1790, %v1792
          %v1815 = vsel %vm1813, %v1792, %v1794
          %v1816 = vsel %vm1813, %v1796, %v1798
          %v1817 = vsel %vm1813, %v1798, %v1800
          %v1818 = vsel %vm1813, %v1802, %v1804
          %v1819 = vsel %vm1813, %v1804, %v1806
          %v1820 = vsel %vm1813, %v1808, %v1810
          %v1821 = vsel %vm1813, %v1810, %v1812
          %v1831 = vsel %vm1466, %v1773, 0
          %v1834 = vsel %vm1466, %v1774, 0
          %v1837 = vsel %vm1466, %v1775, 0
          %v1840 = vsel %vm1466, %v1776, 0
          %1842 = vmatprep.subr.bf16.mxu0 %v1815
          %1843 = vmatpush1.bf16.msra.mxu0 %v1814
          %1844 = vmatprep.subr.bf16.mxu0 %v1817
          %1845 = vmatpush1.bf16.msra.mxu0 %v1816
          %1846 = vmatprep.subr.bf16.mxu0 %v1819
          %1847 = vmatpush1.bf16.msra.mxu0 %v1818
          %1848 = vmatprep.subr.bf16.mxu0 %v1821
          %1849 = vmatpush1.bf16.msra.mxu0 %v1820
          %1850 = vmatprep.subr.bf16.mxu0 0
          %1851 = vmatpush1.bf16.msra.mxu0 0
          %1852 = vmatprep.subr.bf16.mxu0 0
          %1853 = vmatpush1.bf16.msra.mxu0 0
          %1854 = vmatprep.subr.bf16.mxu0 0
          %1855 = vmatpush1.bf16.msra.mxu0 0
          %1856 = vmatprep.subr.bf16.mxu0 0
          %1857 = vmatpush1.bf16.msra.mxu0 0
          %1858 = vmatprep.subr.bf16.mxu0 0
          %1859 = vmatpush1.bf16.msra.mxu0 0
          %1860 = vmatprep.subr.bf16.mxu0 0
          %1861 = vmatpush1.bf16.msra.mxu0 0
          %1862 = vmatprep.subr.bf16.mxu0 0
          %1863 = vmatpush1.bf16.msra.mxu0 0
          %1864 = vmatprep.subr.bf16.mxu0 0
          %1865 = vmatpush1.bf16.msra.mxu0 0
          %1866 = vmatprep.subr.bf16.mxu0 0
          %1867 = vmatpush1.bf16.msra.mxu0 0
          %1868 = vmatprep.subr.bf16.mxu0 0
          %1869 = vmatpush1.bf16.msra.mxu0 0
          %1870 = vmatprep.subr.bf16.mxu0 0
          %1871 = vmatpush1.bf16.msra.mxu0 0
          %1872 = vmatprep.subr.bf16.mxu0 0
          %1873 = vmatpush1.bf16.msra.mxu0 0
          %1874 = vmatprep.mubr.bf16.mxu0 0
          %1875 = vmatmul.mubr.bf16.gmra.mrb[0].mxu0 %v1831
          %v1876 = vpop.f32.mrb[0].mxu0
          %v1877 = vadd.f32 0.0, %v1876
          %v1878 = vpop.f32.mrb[0].mxu0
          %v1879 = vadd.f32 0.0, %v1878
          %v1880 = vpop.f32.mrb[0].mxu0
          %v1881 = vadd.f32 0.0, %v1880
          %v1882 = vpop.f32.mrb[0].mxu0
          %v1883 = vadd.f32 0.0, %v1882
          %1884 = vmatprep.mubr.bf16.mxu0 0
          %1885 = vmatmul.mubr.bf16.gmra.mrb[0].mxu0 %v1834
          %v1886 = vpop.f32.mrb[0].mxu0
          %v1887 = vadd.f32 0.0, %v1886
          %v1888 = vpop.f32.mrb[0].mxu0
          %v1889 = vadd.f32 0.0, %v1888
          %v1890 = vpop.f32.mrb[0].mxu0
          %v1891 = vadd.f32 0.0, %v1890
          %v1892 = vpop.f32.mrb[0].mxu0
          %v1893 = vadd.f32 0.0, %v1892
          %1894 = vmatprep.mubr.bf16.mxu0 0
          %1895 = vmatmul.mubr.bf16.gmra.mrb[0].mxu0 %v1837
          %v1896 = vpop.f32.mrb[0].mxu0
          %v1897 = vadd.f32 0.0, %v1896
          %v1898 = vpop.f32.mrb[0].mxu0
          %v1899 = vadd.f32 0.0, %v1898
          %v1900 = vpop.f32.mrb[0].mxu0
          %v1901 = vadd.f32 0.0, %v1900
          %v1902 = vpop.f32.mrb[0].mxu0
          %v1903 = vadd.f32 0.0, %v1902
          %1904 = vmatprep.mubr.bf16.mxu0 0
          %1905 = vmatmul.mubr.bf16.gmra.mrb[0].mxu0 %v1840
          %v1906 = vpop.f32.mrb[0].mxu0
          %v1907 = vadd.f32 0.0, %v1906
          %v1908 = vpop.f32.mrb[0].mxu0
          %v1909 = vadd.f32 0.0, %v1908
          %v1910 = vpop.f32.mrb[0].mxu0
          %v1911 = vadd.f32 0.0, %v1910
          %v1912 = vpop.f32.mrb[0].mxu0
          %v1913 = vadd.f32 0.0, %v1912
          %1914 = vdwg.mxu0
          %v1915 = vadd.f32 %v1672, %v1877
          %v1916 = vadd.f32 %v1674, %v1879
          %v1917 = vadd.f32 %v1676, %v1881
          %v1918 = vadd.f32 %v1678, %v1883
          %v1919 = vadd.f32 %v1682, %v1887
          %v1920 = vadd.f32 %v1684, %v1889
          %v1921 = vadd.f32 %v1686, %v1891
          %v1922 = vadd.f32 %v1688, %v1893
          %v1923 = vadd.f32 %v1692, %v1897
          %v1924 = vadd.f32 %v1694, %v1899
          %v1925 = vadd.f32 %v1696, %v1901
          %v1926 = vadd.f32 %v1698, %v1903
          %v1927 = vadd.f32 %v1702, %v1907
          %v1928 = vadd.f32 %v1704, %v1909
          %v1929 = vadd.f32 %v1706, %v1911
          %v1930 = vadd.f32 %v1708, %v1913
          %1931 = vrot.lane.b32.xlu0 %v1343, 127
          %v1932 = vpop.permute.xlu0 %1931
          %1933 = vrot.lane.b32.xlu0 %v1347, 127
          %v1934 = vpop.permute.xlu0 %1933
          %vm1935 = vcmask 1039360
          %v1936 = vsel %vm1935, %v1932, %v1934
          %vm1937 = vcmp.ne.s16.totalorder %v1932, 0
          %vm1938 = vcmp.ne.s16.totalorder %v1936, 0
          %vm1939 = vcmp.ne.s16.totalorder %v1934, 0
          %v1940 = vsel %vm1937, %v1322, 0
          %v1941 = vsel %vm1938, %v1323, 0
          %v1942 = vsel %vm1939, %v1324, 0
          %v1943 = vsel %vm1937, %v1325, 0
          %v1944 = vsel %vm1938, %v1326, 0
          %v1945 = vsel %vm1939, %v1327, 0
          %v1946 = vsel %vm1937, %v1328, 0
          %v1947 = vsel %vm1938, %v1329, 0
          %v1948 = vsel %vm1939, %v1330, 0
          %v1949 = vsel %vm1937, %v1331, 0
          %v1950 = vsel %vm1938, %v1332, 0
          %v1951 = vsel %vm1939, %v1333, 0
          %s1952 = sadd.s32 %s1369, 3
          %s1953 = smul.u32 %s1952, 8
          %s1954 = smul.addr %s1953, 4
          %s1955 = scalar_lea.vmem %s2, %s1954
          %v1956 = vld [vmem:[%s1955] sm:$0xf]
          %v1957 = vld [vmem:[%s1955 + $0x4] sm:$0xf]
          %v1958 = vld [vmem:[%s1955 + $0x8] sm:$0xf]
          %v1959 = vld [vmem:[%s1955 + $0xc] sm:$0xf]
          %v1960 = vld [vmem:[%s1955 + $0x10] sm:$0xf]
          %v1961 = vld [vmem:[%s1955 + $0x14] sm:$0xf]
          %v1962 = vld [vmem:[%s1955 + $0x18] sm:$0xf]
          %v1963 = vld [vmem:[%s1955 + $0x1c] sm:$0xf]
          %v1972 = vunpack.c.l.b16 %v1956
          %v1973 = vunpack.c.l.b16 %v1957
          %v1974 = vunpack.c.l.b16 %v1958
          %v1975 = vunpack.c.l.b16 %v1959
          %v1976 = vunpack.c.l.b16 %v1960
          %v1977 = vunpack.c.l.b16 %v1961
          %v1978 = vunpack.c.l.b16 %v1962
          %v1979 = vunpack.c.l.b16 %v1963
          %v1980 = vpack.c.b16 %v1973, %v1972
          %v1981 = vpack.c.b16 %v1975, %v1974
          %v1982 = vpack.c.b16 %v1977, %v1976
          %v1983 = vpack.c.b16 %v1979, %v1978
          %1996 = vrot.lane.b32.xlu0 %v1940, 1
          %v1997 = vpop.permute.xlu0 %1996
          %1998 = vrot.lane.b32.xlu0 %v1941, 1
          %v1999 = vpop.permute.xlu0 %1998
          %2000 = vrot.lane.b32.xlu0 %v1942, 1
          %v2001 = vpop.permute.xlu0 %2000
          %2002 = vrot.lane.b32.xlu0 %v1943, 1
          %v2003 = vpop.permute.xlu0 %2002
          %2004 = vrot.lane.b32.xlu0 %v1944, 1
          %v2005 = vpop.permute.xlu0 %2004
          %2006 = vrot.lane.b32.xlu0 %v1945, 1
          %v2007 = vpop.permute.xlu0 %2006
          %2008 = vrot.lane.b32.xlu0 %v1946, 1
          %v2009 = vpop.permute.xlu0 %2008
          %2010 = vrot.lane.b32.xlu0 %v1947, 1
          %v2011 = vpop.permute.xlu0 %2010
          %2012 = vrot.lane.b32.xlu0 %v1948, 1
          %v2013 = vpop.permute.xlu0 %2012
          %2014 = vrot.lane.b32.xlu0 %v1949, 1
          %v2015 = vpop.permute.xlu0 %2014
          %2016 = vrot.lane.b32.xlu0 %v1950, 1
          %v2017 = vpop.permute.xlu0 %2016
          %2018 = vrot.lane.b32.xlu0 %v1951, 1
          %v2019 = vpop.permute.xlu0 %2018
          %vm2020 = vcmask 7168
          %v2021 = vsel %vm2020, %v1997, %v1999
          %v2022 = vsel %vm2020, %v1999, %v2001
          %v2023 = vsel %vm2020, %v2003, %v2005
          %v2024 = vsel %vm2020, %v2005, %v2007
          %v2025 = vsel %vm2020, %v2009, %v2011
          %v2026 = vsel %vm2020, %v2011, %v2013
          %v2027 = vsel %vm2020, %v2015, %v2017
          %v2028 = vsel %vm2020, %v2017, %v2019
          %v2038 = vsel %vm1466, %v1980, 0
          %v2041 = vsel %vm1466, %v1981, 0
          %v2044 = vsel %vm1466, %v1982, 0
          %v2047 = vsel %vm1466, %v1983, 0
          %2049 = vmatprep.subr.bf16.mxu0 %v2022
          %2050 = vmatpush1.bf16.msra.mxu0 %v2021
          %2051 = vmatprep.subr.bf16.mxu0 %v2024
          %2052 = vmatpush1.bf16.msra.mxu0 %v2023
          %2053 = vmatprep.subr.bf16.mxu0 %v2026
          %2054 = vmatpush1.bf16.msra.mxu0 %v2025
          %2055 = vmatprep.subr.bf16.mxu0 %v2028
          %2056 = vmatpush1.bf16.msra.mxu0 %v2027
          %2057 = vmatprep.subr.bf16.mxu0 0
          %2058 = vmatpush1.bf16.msra.mxu0 0
          %2059 = vmatprep.subr.bf16.mxu0 0
          %2060 = vmatpush1.bf16.msra.mxu0 0
          %2061 = vmatprep.subr.bf16.mxu0 0
          %2062 = vmatpush1.bf16.msra.mxu0 0
          %2063 = vmatprep.subr.bf16.mxu0 0
          %2064 = vmatpush1.bf16.msra.mxu0 0
          %2065 = vmatprep.subr.bf16.mxu0 0
          %2066 = vmatpush1.bf16.msra.mxu0 0
          %2067 = vmatprep.subr.bf16.mxu0 0
          %2068 = vmatpush1.bf16.msra.mxu0 0
          %2069 = vmatprep.subr.bf16.mxu0 0
          %2070 = vmatpush1.bf16.msra.mxu0 0
          %2071 = vmatprep.subr.bf16.mxu0 0
          %2072 = vmatpush1.bf16.msra.mxu0 0
          %2073 = vmatprep.subr.bf16.mxu0 0
          %2074 = vmatpush1.bf16.msra.mxu0 0
          %2075 = vmatprep.subr.bf16.mxu0 0
          %2076 = vmatpush1.bf16.msra.mxu0 0
          %2077 = vmatprep.subr.bf16.mxu0 0
          %2078 = vmatpush1.bf16.msra.mxu0 0
          %2079 = vmatprep.subr.bf16.mxu0 0
          %2080 = vmatpush1.bf16.msra.mxu0 0
          %2081 = vmatprep.mubr.bf16.mxu0 0
          %2082 = vmatmul.mubr.bf16.gmra.mrb[0].mxu0 %v2038
          %v2083 = vpop.f32.mrb[0].mxu0
          %v2084 = vadd.f32 0.0, %v2083
          %v2085 = vpop.f32.mrb[0].mxu0
          %v2086 = vadd.f32 0.0, %v2085
          %v2087 = vpop.f32.mrb[0].mxu0
          %v2088 = vadd.f32 0.0, %v2087
          %v2089 = vpop.f32.mrb[0].mxu0
          %v2090 = vadd.f32 0.0, %v2089
          %2091 = vmatprep.mubr.bf16.mxu0 0
          %2092 = vmatmul.mubr.bf16.gmra.mrb[0].mxu0 %v2041
          %v2093 = vpop.f32.mrb[0].mxu0
          %v2094 = vadd.f32 0.0, %v2093
          %v2095 = vpop.f32.mrb[0].mxu0
          %v2096 = vadd.f32 0.0, %v2095
          %v2097 = vpop.f32.mrb[0].mxu0
          %v2098 = vadd.f32 0.0, %v2097
          %v2099 = vpop.f32.mrb[0].mxu0
          %v2100 = vadd.f32 0.0, %v2099
          %2101 = vmatprep.mubr.bf16.mxu0 0
          %2102 = vmatmul.mubr.bf16.gmra.mrb[0].mxu0 %v2044
          %v2103 = vpop.f32.mrb[0].mxu0
          %v2104 = vadd.f32 0.0, %v2103
          %v2105 = vpop.f32.mrb[0].mxu0
          %v2106 = vadd.f32 0.0, %v2105
          %v2107 = vpop.f32.mrb[0].mxu0
          %v2108 = vadd.f32 0.0, %v2107
          %v2109 = vpop.f32.mrb[0].mxu0
          %v2110 = vadd.f32 0.0, %v2109
          %2111 = vmatprep.mubr.bf16.mxu0 0
          %2112 = vmatmul.mubr.bf16.gmra.mrb[0].mxu0 %v2047
          %v2113 = vpop.f32.mrb[0].mxu0
          %v2114 = vadd.f32 0.0, %v2113
          %v2115 = vpop.f32.mrb[0].mxu0
          %v2116 = vadd.f32 0.0, %v2115
          %v2117 = vpop.f32.mrb[0].mxu0
          %v2118 = vadd.f32 0.0, %v2117
          %v2119 = vpop.f32.mrb[0].mxu0
          %v2120 = vadd.f32 0.0, %v2119
          %2121 = vdwg.mxu0
          %v2122 = vadd.f32 %v1915, %v2084
          %v2123 = vadd.f32 %v1916, %v2086
          %v2124 = vadd.f32 %v1917, %v2088
          %v2125 = vadd.f32 %v1918, %v2090
          %v2126 = vadd.f32 %v1919, %v2094
          %v2127 = vadd.f32 %v1920, %v2096
          %v2128 = vadd.f32 %v1921, %v2098
          %v2129 = vadd.f32 %v1922, %v2100
          %v2130 = vadd.f32 %v1923, %v2104
          %v2131 = vadd.f32 %v1924, %v2106
          %v2132 = vadd.f32 %v1925, %v2108
          %v2133 = vadd.f32 %v1926, %v2110
          %v2134 = vadd.f32 %v1927, %v2114
          %v2135 = vadd.f32 %v1928, %v2116
          %v2136 = vadd.f32 %v1929, %v2118
          %v2137 = vadd.f32 %v1930, %v2120
          %s2138 = sadd.s32 %s1369, 4
          %s2139 = smul.u32 %s2138, 8
          %s2140 = smul.addr %s2139, 4
          %s2141 = scalar_lea.vmem %s2, %s2140
          %v2142 = vld [vmem:[%s2141] sm:$0xf]
          %v2143 = vld [vmem:[%s2141 + $0x4] sm:$0xf]
          %v2144 = vld [vmem:[%s2141 + $0x8] sm:$0xf]
          %v2145 = vld [vmem:[%s2141 + $0xc] sm:$0xf]
          %v2146 = vld [vmem:[%s2141 + $0x10] sm:$0xf]
          %v2147 = vld [vmem:[%s2141 + $0x14] sm:$0xf]
          %v2148 = vld [vmem:[%s2141 + $0x18] sm:$0xf]
          %v2149 = vld [vmem:[%s2141 + $0x1c] sm:$0xf]
          %v2158 = vunpack.c.l.b16 %v2142
          %v2159 = vunpack.c.l.b16 %v2143
          %v2160 = vunpack.c.l.b16 %v2144
          %v2161 = vunpack.c.l.b16 %v2145
          %v2162 = vunpack.c.l.b16 %v2146
          %v2163 = vunpack.c.l.b16 %v2147
          %v2164 = vunpack.c.l.b16 %v2148
          %v2165 = vunpack.c.l.b16 %v2149
          %v2166 = vpack.c.b16 %v2159, %v2158
          %v2167 = vpack.c.b16 %v2161, %v2160
          %v2168 = vpack.c.b16 %v2163, %v2162
          %v2169 = vpack.c.b16 %v2165, %v2164
          %v2171 = vsel %vm1466, %v2166, 0
          %v2174 = vsel %vm1466, %v2167, 0
          %v2177 = vsel %vm1466, %v2168, 0
          %v2180 = vsel %vm1466, %v2169, 0
          %2182 = vmatprep.subr.bf16.mxu0 %v1324
          %2183 = vmatpush1.bf16.msra.mxu0 %v1323
          %2184 = vmatprep.subr.bf16.mxu0 %v1327
          %2185 = vmatpush1.bf16.msra.mxu0 %v1326
          %2186 = vmatprep.subr.bf16.mxu0 %v1330
          %2187 = vmatpush1.bf16.msra.mxu0 %v1329
          %2188 = vmatprep.subr.bf16.mxu0 %v1333
          %2189 = vmatpush1.bf16.msra.mxu0 %v1332
          %2190 = vmatprep.subr.bf16.mxu0 0
          %2191 = vmatpush1.bf16.msra.mxu0 0
          %2192 = vmatprep.subr.bf16.mxu0 0
          %2193 = vmatpush1.bf16.msra.mxu0 0
          %2194 = vmatprep.subr.bf16.mxu0 0
          %2195 = vmatpush1.bf16.msra.mxu0 0
          %2196 = vmatprep.subr.bf16.mxu0 0
          %2197 = vmatpush1.bf16.msra.mxu0 0
          %2198 = vmatprep.subr.bf16.mxu0 0
          %2199 = vmatpush1.bf16.msra.mxu0 0
          %2200 = vmatprep.subr.bf16.mxu0 0
          %2201 = vmatpush1.bf16.msra.mxu0 0
          %2202 = vmatprep.subr.bf16.mxu0 0
          %2203 = vmatpush1.bf16.msra.mxu0 0
          %2204 = vmatprep.subr.bf16.mxu0 0
          %2205 = vmatpush1.bf16.msra.mxu0 0
          %2206 = vmatprep.subr.bf16.mxu0 0
          %2207 = vmatpush1.bf16.msra.mxu0 0
          %2208 = vmatprep.subr.bf16.mxu0 0
          %2209 = vmatpush1.bf16.msra.mxu0 0
          %2210 = vmatprep.subr.bf16.mxu0 0
          %2211 = vmatpush1.bf16.msra.mxu0 0
          %2212 = vmatprep.subr.bf16.mxu0 0
          %2213 = vmatpush1.bf16.msra.mxu0 0
          %2214 = vmatprep.mubr.bf16.mxu0 0
          %2215 = vmatmul.mubr.bf16.gmra.mrb[0].mxu0 %v2171
          %v2216 = vpop.f32.mrb[0].mxu0
          %v2217 = vadd.f32 0.0, %v2216
          %v2218 = vpop.f32.mrb[0].mxu0
          %v2219 = vadd.f32 0.0, %v2218
          %v2220 = vpop.f32.mrb[0].mxu0
          %v2221 = vadd.f32 0.0, %v2220
          %v2222 = vpop.f32.mrb[0].mxu0
          %v2223 = vadd.f32 0.0, %v2222
          %2224 = vmatprep.mubr.bf16.mxu0 0
          %2225 = vmatmul.mubr.bf16.gmra.mrb[0].mxu0 %v2174
          %v2226 = vpop.f32.mrb[0].mxu0
          %v2227 = vadd.f32 0.0, %v2226
          %v2228 = vpop.f32.mrb[0].mxu0
          %v2229 = vadd.f32 0.0, %v2228
          %v2230 = vpop.f32.mrb[0].mxu0
          %v2231 = vadd.f32 0.0, %v2230
          %v2232 = vpop.f32.mrb[0].mxu0
          %v2233 = vadd.f32 0.0, %v2232
          %2234 = vmatprep.mubr.bf16.mxu0 0
          %2235 = vmatmul.mubr.bf16.gmra.mrb[0].mxu0 %v2177
          %v2236 = vpop.f32.mrb[0].mxu0
          %v2237 = vadd.f32 0.0, %v2236
          %v2238 = vpop.f32.mrb[0].mxu0
          %v2239 = vadd.f32 0.0, %v2238
          %v2240 = vpop.f32.mrb[0].mxu0
          %v2241 = vadd.f32 0.0, %v2240
          %v2242 = vpop.f32.mrb[0].mxu0
          %v2243 = vadd.f32 0.0, %v2242
          %2244 = vmatprep.mubr.bf16.mxu0 0
          %2245 = vmatmul.mubr.bf16.gmra.mrb[0].mxu0 %v2180
          %v2246 = vpop.f32.mrb[0].mxu0
          %v2247 = vadd.f32 0.0, %v2246
          %v2248 = vpop.f32.mrb[0].mxu0
          %v2249 = vadd.f32 0.0, %v2248
          %v2250 = vpop.f32.mrb[0].mxu0
          %v2251 = vadd.f32 0.0, %v2250
          %v2252 = vpop.f32.mrb[0].mxu0
          %v2253 = vadd.f32 0.0, %v2252
          %2254 = vdwg.mxu0
          %v2255 = vadd.f32 %v2122, %v2217
          %v2256 = vadd.f32 %v2123, %v2219
          %v2257 = vadd.f32 %v2124, %v2221
          %v2258 = vadd.f32 %v2125, %v2223
          %v2259 = vadd.f32 %v2126, %v2227
          %v2260 = vadd.f32 %v2127, %v2229
          %v2261 = vadd.f32 %v2128, %v2231
          %v2262 = vadd.f32 %v2129, %v2233
          %v2263 = vadd.f32 %v2130, %v2237
          %v2264 = vadd.f32 %v2131, %v2239
          %v2265 = vadd.f32 %v2132, %v2241
          %v2266 = vadd.f32 %v2133, %v2243
          %v2267 = vadd.f32 %v2134, %v2247
          %v2268 = vadd.f32 %v2135, %v2249
          %v2269 = vadd.f32 %v2136, %v2251
          %v2270 = vadd.f32 %v2137, %v2253
          %v2271 = vld [vmem:[#allocation2 + $0x8] sm:$0xff]
          %v2272 = vld [vmem:[#allocation2 + $0x10] sm:$0xff]
          %v2273 = vld [vmem:[#allocation2 + $0x18] sm:$0xff]
          %v2274 = vld [vmem:[#allocation2 + $0x28] sm:$0xff]
          %v2275 = vld [vmem:[#allocation2 + $0x30] sm:$0xff]
          %v2276 = vld [vmem:[#allocation2 + $0x38] sm:$0xff]
          %v2277 = vld [vmem:[#allocation2 + $0x48] sm:$0xff]
          %v2278 = vld [vmem:[#allocation2 + $0x50] sm:$0xff]
          %v2279 = vld [vmem:[#allocation2 + $0x58] sm:$0xff]
          %v2280 = vld [vmem:[#allocation2 + $0x68] sm:$0xff]
          %v2281 = vld [vmem:[#allocation2 + $0x70] sm:$0xff]
          %v2282 = vld [vmem:[#allocation2 + $0x78] sm:$0xff]
          %2283 = vrot.lane.b32.xlu0 %v1719, 1
          %v2284 = vpop.permute.xlu0 %2283
          %2285 = vrot.lane.b32.xlu0 %v1723, 1
          %v2286 = vpop.permute.xlu0 %2285
          %v2287 = vsel %vm2020, %v2284, %v2286
          %vm2288 = vcmp.ne.s16.totalorder %v2284, 0
          %vm2289 = vcmp.ne.s16.totalorder %v2287, 0
          %vm2290 = vcmp.ne.s16.totalorder %v2286, 0
          %v2291 = vsel %vm2288, %v2271, 0
          %v2292 = vsel %vm2289, %v2272, 0
          %v2293 = vsel %vm2290, %v2273, 0
          %v2294 = vsel %vm2288, %v2274, 0
          %v2295 = vsel %vm2289, %v2275, 0
          %v2296 = vsel %vm2290, %v2276, 0
          %v2297 = vsel %vm2288, %v2277, 0
          %v2298 = vsel %vm2289, %v2278, 0
          %v2299 = vsel %vm2290, %v2279, 0
          %v2300 = vsel %vm2288, %v2280, 0
          %v2301 = vsel %vm2289, %v2281, 0
          %v2302 = vsel %vm2290, %v2282, 0
          %s2303 = sadd.s32 %s1369, 5
          %s2304 = smul.u32 %s2303, 8
          %s2305 = smul.addr %s2304, 4
          %s2306 = scalar_lea.vmem %s2, %s2305
          %v2307 = vld [vmem:[%s2306] sm:$0xf]
          %v2308 = vld [vmem:[%s2306 + $0x4] sm:$0xf]
          %v2309 = vld [vmem:[%s2306 + $0x8] sm:$0xf]
          %v2310 = vld [vmem:[%s2306 + $0xc] sm:$0xf]
          %v2311 = vld [vmem:[%s2306 + $0x10] sm:$0xf]
          %v2312 = vld [vmem:[%s2306 + $0x14] sm:$0xf]
          %v2313 = vld [vmem:[%s2306 + $0x18] sm:$0xf]
          %v2314 = vld [vmem:[%s2306 + $0x1c] sm:$0xf]
          %v2323 = vunpack.c.l.b16 %v2307
          %v2324 = vunpack.c.l.b16 %v2308
          %v2325 = vunpack.c.l.b16 %v2309
          %v2326 = vunpack.c.l.b16 %v2310
          %v2327 = vunpack.c.l.b16 %v2311
          %v2328 = vunpack.c.l.b16 %v2312
          %v2329 = vunpack.c.l.b16 %v2313
          %v2330 = vunpack.c.l.b16 %v2314
          %v2331 = vpack.c.b16 %v2324, %v2323
          %v2332 = vpack.c.b16 %v2326, %v2325
          %v2333 = vpack.c.b16 %v2328, %v2327
          %v2334 = vpack.c.b16 %v2330, %v2329
          %2347 = vrot.lane.b32.xlu0 %v2291, 127
          %v2348 = vpop.permute.xlu0 %2347
          %2349 = vrot.lane.b32.xlu0 %v2292, 127
          %v2350 = vpop.permute.xlu0 %2349
          %2351 = vrot.lane.b32.xlu0 %v2293, 127
          %v2352 = vpop.permute.xlu0 %2351
          %2353 = vrot.lane.b32.xlu0 %v2294, 127
          %v2354 = vpop.permute.xlu0 %2353
          %2355 = vrot.lane.b32.xlu0 %v2295, 127
          %v2356 = vpop.permute.xlu0 %2355
          %2357 = vrot.lane.b32.xlu0 %v2296, 127
          %v2358 = vpop.permute.xlu0 %2357
          %2359 = vrot.lane.b32.xlu0 %v2297, 127
          %v2360 = vpop.permute.xlu0 %2359
          %2361 = vrot.lane.b32.xlu0 %v2298, 127
          %v2362 = vpop.permute.xlu0 %2361
          %2363 = vrot.lane.b32.xlu0 %v2299, 127
          %v2364 = vpop.permute.xlu0 %2363
          %2365 = vrot.lane.b32.xlu0 %v2300, 127
          %v2366 = vpop.permute.xlu0 %2365
          %2367 = vrot.lane.b32.xlu0 %v2301, 127
          %v2368 = vpop.permute.xlu0 %2367
          %2369 = vrot.lane.b32.xlu0 %v2302, 127
          %v2370 = vpop.permute.xlu0 %2369
          %v2371 = vsel %vm1935, %v2348, %v2350
          %v2372 = vsel %vm1935, %v2350, %v2352
          %v2373 = vsel %vm1935, %v2354, %v2356
          %v2374 = vsel %vm1935, %v2356, %v2358
          %v2375 = vsel %vm1935, %v2360, %v2362
          %v2376 = vsel %vm1935, %v2362, %v2364
          %v2377 = vsel %vm1935, %v2366, %v2368
          %v2378 = vsel %vm1935, %v2368, %v2370
          %v2388 = vsel %vm1466, %v2331, 0
          %v2391 = vsel %vm1466, %v2332, 0
          %v2394 = vsel %vm1466, %v2333, 0
          %v2397 = vsel %vm1466, %v2334, 0
          %2399 = vmatprep.subr.bf16.mxu0 %v2372
          %2400 = vmatpush1.bf16.msra.mxu0 %v2371
          %2401 = vmatprep.subr.bf16.mxu0 %v2374
          %2402 = vmatpush1.bf16.msra.mxu0 %v2373
          %2403 = vmatprep.subr.bf16.mxu0 %v2376
          %2404 = vmatpush1.bf16.msra.mxu0 %v2375
          %2405 = vmatprep.subr.bf16.mxu0 %v2378
          %2406 = vmatpush1.bf16.msra.mxu0 %v2377
          %2407 = vmatprep.subr.bf16.mxu0 0
          %2408 = vmatpush1.bf16.msra.mxu0 0
          %2409 = vmatprep.subr.bf16.mxu0 0
          %2410 = vmatpush1.bf16.msra.mxu0 0
          %2411 = vmatprep.subr.bf16.mxu0 0
          %2412 = vmatpush1.bf16.msra.mxu0 0
          %2413 = vmatprep.subr.bf16.mxu0 0
          %2414 = vmatpush1.bf16.msra.mxu0 0
          %2415 = vmatprep.subr.bf16.mxu0 0
          %2416 = vmatpush1.bf16.msra.mxu0 0
          %2417 = vmatprep.subr.bf16.mxu0 0
          %2418 = vmatpush1.bf16.msra.mxu0 0
          %2419 = vmatprep.subr.bf16.mxu0 0
          %2420 = vmatpush1.bf16.msra.mxu0 0
          %2421 = vmatprep.subr.bf16.mxu0 0
          %2422 = vmatpush1.bf16.msra.mxu0 0
          %2423 = vmatprep.subr.bf16.mxu0 0
          %2424 = vmatpush1.bf16.msra.mxu0 0
          %2425 = vmatprep.subr.bf16.mxu0 0
          %2426 = vmatpush1.bf16.msra.mxu0 0
          %2427 = vmatprep.subr.bf16.mxu0 0
          %2428 = vmatpush1.bf16.msra.mxu0 0
          %2429 = vmatprep.subr.bf16.mxu0 0
          %2430 = vmatpush1.bf16.msra.mxu0 0
          %2431 = vmatprep.mubr.bf16.mxu0 0
          %2432 = vmatmul.mubr.bf16.gmra.mrb[0].mxu0 %v2388
          %v2433 = vpop.f32.mrb[0].mxu0
          %v2434 = vadd.f32 0.0, %v2433
          %v2435 = vpop.f32.mrb[0].mxu0
          %v2436 = vadd.f32 0.0, %v2435
          %v2437 = vpop.f32.mrb[0].mxu0
          %v2438 = vadd.f32 0.0, %v2437
          %v2439 = vpop.f32.mrb[0].mxu0
          %v2440 = vadd.f32 0.0, %v2439
          %2441 = vmatprep.mubr.bf16.mxu0 0
          %2442 = vmatmul.mubr.bf16.gmra.mrb[0].mxu0 %v2391
          %v2443 = vpop.f32.mrb[0].mxu0
          %v2444 = vadd.f32 0.0, %v2443
          %v2445 = vpop.f32.mrb[0].mxu0
          %v2446 = vadd.f32 0.0, %v2445
          %v2447 = vpop.f32.mrb[0].mxu0
          %v2448 = vadd.f32 0.0, %v2447
          %v2449 = vpop.f32.mrb[0].mxu0
          %v2450 = vadd.f32 0.0, %v2449
          %2451 = vmatprep.mubr.bf16.mxu0 0
          %2452 = vmatmul.mubr.bf16.gmra.mrb[0].mxu0 %v2394
          %v2453 = vpop.f32.mrb[0].mxu0
          %v2454 = vadd.f32 0.0, %v2453
          %v2455 = vpop.f32.mrb[0].mxu0
          %v2456 = vadd.f32 0.0, %v2455
          %v2457 = vpop.f32.mrb[0].mxu0
          %v2458 = vadd.f32 0.0, %v2457
          %v2459 = vpop.f32.mrb[0].mxu0
          %v2460 = vadd.f32 0.0, %v2459
          %2461 = vmatprep.mubr.bf16.mxu0 0
          %2462 = vmatmul.mubr.bf16.gmra.mrb[0].mxu0 %v2397
          %v2463 = vpop.f32.mrb[0].mxu0
          %v2464 = vadd.f32 0.0, %v2463
          %v2465 = vpop.f32.mrb[0].mxu0
          %v2466 = vadd.f32 0.0, %v2465
          %v2467 = vpop.f32.mrb[0].mxu0
          %v2468 = vadd.f32 0.0, %v2467
          %v2469 = vpop.f32.mrb[0].mxu0
          %v2470 = vadd.f32 0.0, %v2469
          %2471 = vdwg.mxu0
          %v2472 = vadd.f32 %v2255, %v2434
          %v2473 = vadd.f32 %v2256, %v2436
          %v2474 = vadd.f32 %v2257, %v2438
          %v2475 = vadd.f32 %v2258, %v2440
          %v2476 = vadd.f32 %v2259, %v2444
          %v2477 = vadd.f32 %v2260, %v2446
          %v2478 = vadd.f32 %v2261, %v2448
          %v2479 = vadd.f32 %v2262, %v2450
          %v2480 = vadd.f32 %v2263, %v2454
          %v2481 = vadd.f32 %v2264, %v2456
          %v2482 = vadd.f32 %v2265, %v2458
          %v2483 = vadd.f32 %v2266, %v2460
          %v2484 = vadd.f32 %v2267, %v2464
          %v2485 = vadd.f32 %v2268, %v2466
          %v2486 = vadd.f32 %v2269, %v2468
          %v2487 = vadd.f32 %v2270, %v2470
          %2488 = vrot.lane.b32.xlu0 %v1343, 15
          %v2489 = vpop.permute.xlu0 %2488
          %2490 = vrot.lane.b32.xlu0 %v1347, 15
          %v2491 = vpop.permute.xlu0 %2490
          %v2492 = vsel %vm1813, %v2489, %v2491
          %vm2493 = vcmp.ne.s16.totalorder %v2489, 0
          %vm2494 = vcmp.ne.s16.totalorder %v2492, 0
          %vm2495 = vcmp.ne.s16.totalorder %v2491, 0
          %v2496 = vsel %vm2493, %v2271, 0
          %v2497 = vsel %vm2494, %v2272, 0
          %v2498 = vsel %vm2495, %v2273, 0
          %v2499 = vsel %vm2493, %v2274, 0
          %v2500 = vsel %vm2494, %v2275, 0
          %v2501 = vsel %vm2495, %v2276, 0
          %v2502 = vsel %vm2493, %v2277, 0
          %v2503 = vsel %vm2494, %v2278, 0
          %v2504 = vsel %vm2495, %v2279, 0
          %v2505 = vsel %vm2493, %v2280, 0
          %v2506 = vsel %vm2494, %v2281, 0
          %v2507 = vsel %vm2495, %v2282, 0
          %s2508 = sadd.s32 %s1369, 6
          %s2509 = smul.u32 %s2508, 8
          %s2510 = smul.addr %s2509, 4
          %s2511 = scalar_lea.vmem %s2, %s2510
          %v2512 = vld [vmem:[%s2511] sm:$0xf]
          %v2513 = vld [vmem:[%s2511 + $0x4] sm:$0xf]
          %v2514 = vld [vmem:[%s2511 + $0x8] sm:$0xf]
          %v2515 = vld [vmem:[%s2511 + $0xc] sm:$0xf]
          %v2516 = vld [vmem:[%s2511 + $0x10] sm:$0xf]
          %v2517 = vld [vmem:[%s2511 + $0x14] sm:$0xf]
          %v2518 = vld [vmem:[%s2511 + $0x18] sm:$0xf]
          %v2519 = vld [vmem:[%s2511 + $0x1c] sm:$0xf]
          %v2528 = vunpack.c.l.b16 %v2512
          %v2529 = vunpack.c.l.b16 %v2513
          %v2530 = vunpack.c.l.b16 %v2514
          %v2531 = vunpack.c.l.b16 %v2515
          %v2532 = vunpack.c.l.b16 %v2516
          %v2533 = vunpack.c.l.b16 %v2517
          %v2534 = vunpack.c.l.b16 %v2518
          %v2535 = vunpack.c.l.b16 %v2519
          %v2536 = vpack.c.b16 %v2529, %v2528
          %v2537 = vpack.c.b16 %v2531, %v2530
          %v2538 = vpack.c.b16 %v2533, %v2532
          %v2539 = vpack.c.b16 %v2535, %v2534
          %2552 = vrot.lane.b32.xlu0 %v2496, 113
          %v2553 = vpop.permute.xlu0 %2552
          %2554 = vrot.lane.b32.xlu0 %v2497, 113
          %v2555 = vpop.permute.xlu0 %2554
          %2556 = vrot.lane.b32.xlu0 %v2498, 113
          %v2557 = vpop.permute.xlu0 %2556
          %2558 = vrot.lane.b32.xlu0 %v2499, 113
          %v2559 = vpop.permute.xlu0 %2558
          %2560 = vrot.lane.b32.xlu0 %v2500, 113
          %v2561 = vpop.permute.xlu0 %2560
          %2562 = vrot.lane.b32.xlu0 %v2501, 113
          %v2563 = vpop.permute.xlu0 %2562
          %2564 = vrot.lane.b32.xlu0 %v2502, 113
          %v2565 = vpop.permute.xlu0 %2564
          %2566 = vrot.lane.b32.xlu0 %v2503, 113
          %v2567 = vpop.permute.xlu0 %2566
          %2568 = vrot.lane.b32.xlu0 %v2504, 113
          %v2569 = vpop.permute.xlu0 %2568
          %2570 = vrot.lane.b32.xlu0 %v2505, 113
          %v2571 = vpop.permute.xlu0 %2570
          %2572 = vrot.lane.b32.xlu0 %v2506, 113
          %v2573 = vpop.permute.xlu0 %2572
          %2574 = vrot.lane.b32.xlu0 %v2507, 113
          %v2575 = vpop.permute.xlu0 %2574
          %v2576 = vsel %vm1728, %v2553, %v2555
          %v2577 = vsel %vm1728, %v2555, %v2557
          %v2578 = vsel %vm1728, %v2559, %v2561
          %v2579 = vsel %vm1728, %v2561, %v2563
          %v2580 = vsel %vm1728, %v2565, %v2567
          %v2581 = vsel %vm1728, %v2567, %v2569
          %v2582 = vsel %vm1728, %v2571, %v2573
          %v2583 = vsel %vm1728, %v2573, %v2575
          %v2593 = vsel %vm1466, %v2536, 0
          %v2596 = vsel %vm1466, %v2537, 0
          %v2599 = vsel %vm1466, %v2538, 0
          %v2602 = vsel %vm1466, %v2539, 0
          %2604 = vmatprep.subr.bf16.mxu0 %v2577
          %2605 = vmatpush1.bf16.msra.mxu0 %v2576
          %2606 = vmatprep.subr.bf16.mxu0 %v2579
          %2607 = vmatpush1.bf16.msra.mxu0 %v2578
          %2608 = vmatprep.subr.bf16.mxu0 %v2581
          %2609 = vmatpush1.bf16.msra.mxu0 %v2580
          %2610 = vmatprep.subr.bf16.mxu0 %v2583
          %2611 = vmatpush1.bf16.msra.mxu0 %v2582
          %2612 = vmatprep.subr.bf16.mxu0 0
          %2613 = vmatpush1.bf16.msra.mxu0 0
          %2614 = vmatprep.subr.bf16.mxu0 0
          %2615 = vmatpush1.bf16.msra.mxu0 0
          %2616 = vmatprep.subr.bf16.mxu0 0
          %2617 = vmatpush1.bf16.msra.mxu0 0
          %2618 = vmatprep.subr.bf16.mxu0 0
          %2619 = vmatpush1.bf16.msra.mxu0 0
          %2620 = vmatprep.subr.bf16.mxu0 0
          %2621 = vmatpush1.bf16.msra.mxu0 0
          %2622 = vmatprep.subr.bf16.mxu0 0
          %2623 = vmatpush1.bf16.msra.mxu0 0
          %2624 = vmatprep.subr.bf16.mxu0 0
          %2625 = vmatpush1.bf16.msra.mxu0 0
          %2626 = vmatprep.subr.bf16.mxu0 0
          %2627 = vmatpush1.bf16.msra.mxu0 0
          %2628 = vmatprep.subr.bf16.mxu0 0
          %2629 = vmatpush1.bf16.msra.mxu0 0
          %2630 = vmatprep.subr.bf16.mxu0 0
          %2631 = vmatpush1.bf16.msra.mxu0 0
          %2632 = vmatprep.subr.bf16.mxu0 0
          %2633 = vmatpush1.bf16.msra.mxu0 0
          %2634 = vmatprep.subr.bf16.mxu0 0
          %2635 = vmatpush1.bf16.msra.mxu0 0
          %2636 = vmatprep.mubr.bf16.mxu0 0
          %2637 = vmatmul.mubr.bf16.gmra.mrb[0].mxu0 %v2593
          %v2638 = vpop.f32.mrb[0].mxu0
          %v2639 = vadd.f32 0.0, %v2638
          %v2640 = vpop.f32.mrb[0].mxu0
          %v2641 = vadd.f32 0.0, %v2640
          %v2642 = vpop.f32.mrb[0].mxu0
          %v2643 = vadd.f32 0.0, %v2642
          %v2644 = vpop.f32.mrb[0].mxu0
          %v2645 = vadd.f32 0.0, %v2644
          %2646 = vmatprep.mubr.bf16.mxu0 0
          %2647 = vmatmul.mubr.bf16.gmra.mrb[0].mxu0 %v2596
          %v2648 = vpop.f32.mrb[0].mxu0
          %v2649 = vadd.f32 0.0, %v2648
          %v2650 = vpop.f32.mrb[0].mxu0
          %v2651 = vadd.f32 0.0, %v2650
          %v2652 = vpop.f32.mrb[0].mxu0
          %v2653 = vadd.f32 0.0, %v2652
          %v2654 = vpop.f32.mrb[0].mxu0
          %v2655 = vadd.f32 0.0, %v2654
          %2656 = vmatprep.mubr.bf16.mxu0 0
          %2657 = vmatmul.mubr.bf16.gmra.mrb[0].mxu0 %v2599
          %v2658 = vpop.f32.mrb[0].mxu0
          %v2659 = vadd.f32 0.0, %v2658
          %v2660 = vpop.f32.mrb[0].mxu0
          %v2661 = vadd.f32 0.0, %v2660
          %v2662 = vpop.f32.mrb[0].mxu0
          %v2663 = vadd.f32 0.0, %v2662
          %v2664 = vpop.f32.mrb[0].mxu0
          %v2665 = vadd.f32 0.0, %v2664
          %2666 = vmatprep.mubr.bf16.mxu0 0
          %2667 = vmatmul.mubr.bf16.gmra.mrb[0].mxu0 %v2602
          %v2668 = vpop.f32.mrb[0].mxu0
          %v2669 = vadd.f32 0.0, %v2668
          %v2670 = vpop.f32.mrb[0].mxu0
          %v2671 = vadd.f32 0.0, %v2670
          %v2672 = vpop.f32.mrb[0].mxu0
          %v2673 = vadd.f32 0.0, %v2672
          %v2674 = vpop.f32.mrb[0].mxu0
          %v2675 = vadd.f32 0.0, %v2674
          %2676 = vdwg.mxu0
          %v2677 = vadd.f32 %v2472, %v2639
          %v2678 = vadd.f32 %v2473, %v2641
          %v2679 = vadd.f32 %v2474, %v2643
          %v2680 = vadd.f32 %v2475, %v2645
          %v2681 = vadd.f32 %v2476, %v2649
          %v2682 = vadd.f32 %v2477, %v2651
          %v2683 = vadd.f32 %v2478, %v2653
          %v2684 = vadd.f32 %v2479, %v2655
          %v2685 = vadd.f32 %v2480, %v2659
          %v2686 = vadd.f32 %v2481, %v2661
          %v2687 = vadd.f32 %v2482, %v2663
          %v2688 = vadd.f32 %v2483, %v2665
          %v2689 = vadd.f32 %v2484, %v2669
          %v2690 = vadd.f32 %v2485, %v2671
          %v2691 = vadd.f32 %v2486, %v2673
          %v2692 = vadd.f32 %v2487, %v2675
          %s2693 = sadd.s32 %s1369, 7
          %s2694 = smul.u32 %s2693, 8
          %s2695 = smul.addr %s2694, 4
          %s2696 = scalar_lea.vmem %s2, %s2695
          %v2697 = vld [vmem:[%s2696] sm:$0xf]
          %v2698 = vld [vmem:[%s2696 + $0x4] sm:$0xf]
          %v2699 = vld [vmem:[%s2696 + $0x8] sm:$0xf]
          %v2700 = vld [vmem:[%s2696 + $0xc] sm:$0xf]
          %v2701 = vld [vmem:[%s2696 + $0x10] sm:$0xf]
          %v2702 = vld [vmem:[%s2696 + $0x14] sm:$0xf]
          %v2703 = vld [vmem:[%s2696 + $0x18] sm:$0xf]
          %v2704 = vld [vmem:[%s2696 + $0x1c] sm:$0xf]
          %v2713 = vunpack.c.l.b16 %v2697
          %v2714 = vunpack.c.l.b16 %v2698
          %v2715 = vunpack.c.l.b16 %v2699
          %v2716 = vunpack.c.l.b16 %v2700
          %v2717 = vunpack.c.l.b16 %v2701
          %v2718 = vunpack.c.l.b16 %v2702
          %v2719 = vunpack.c.l.b16 %v2703
          %v2720 = vunpack.c.l.b16 %v2704
          %v2721 = vpack.c.b16 %v2714, %v2713
          %v2722 = vpack.c.b16 %v2716, %v2715
          %v2723 = vpack.c.b16 %v2718, %v2717
          %v2724 = vpack.c.b16 %v2720, %v2719
          %2737 = vrot.lane.b32.xlu0 %v2271, 112
          %v2738 = vpop.permute.xlu0 %2737
          %2739 = vrot.lane.b32.xlu0 %v2272, 112
          %v2740 = vpop.permute.xlu0 %2739
          %2741 = vrot.lane.b32.xlu0 %v2273, 112
          %v2742 = vpop.permute.xlu0 %2741
          %2743 = vrot.lane.b32.xlu0 %v2274, 112
          %v2744 = vpop.permute.xlu0 %2743
          %2745 = vrot.lane.b32.xlu0 %v2275, 112
          %v2746 = vpop.permute.xlu0 %2745
          %2747 = vrot.lane.b32.xlu0 %v2276, 112
          %v2748 = vpop.permute.xlu0 %2747
          %2749 = vrot.lane.b32.xlu0 %v2277, 112
          %v2750 = vpop.permute.xlu0 %2749
          %2751 = vrot.lane.b32.xlu0 %v2278, 112
          %v2752 = vpop.permute.xlu0 %2751
          %2753 = vrot.lane.b32.xlu0 %v2279, 112
          %v2754 = vpop.permute.xlu0 %2753
          %2755 = vrot.lane.b32.xlu0 %v2280, 112
          %v2756 = vpop.permute.xlu0 %2755
          %2757 = vrot.lane.b32.xlu0 %v2281, 112
          %v2758 = vpop.permute.xlu0 %2757
          %2759 = vrot.lane.b32.xlu0 %v2282, 112
          %v2760 = vpop.permute.xlu0 %2759
          %vm2761 = vcmask 916480
          %v2762 = vsel %vm2761, %v2738, %v2740
          %v2763 = vsel %vm2761, %v2740, %v2742
          %v2764 = vsel %vm2761, %v2744, %v2746
          %v2765 = vsel %vm2761, %v2746, %v2748
          %v2766 = vsel %vm2761, %v2750, %v2752
          %v2767 = vsel %vm2761, %v2752, %v2754
          %v2768 = vsel %vm2761, %v2756, %v2758
          %v2769 = vsel %vm2761, %v2758, %v2760
          %v2779 = vsel %vm1466, %v2721, 0
          %v2782 = vsel %vm1466, %v2722, 0
          %v2785 = vsel %vm1466, %v2723, 0
          %v2788 = vsel %vm1466, %v2724, 0
          %2790 = vmatprep.subr.bf16.mxu0 %v2763
          %2791 = vmatpush1.bf16.msra.mxu0 %v2762
          %2792 = vmatprep.subr.bf16.mxu0 %v2765
          %2793 = vmatpush1.bf16.msra.mxu0 %v2764
          %2794 = vmatprep.subr.bf16.mxu0 %v2767
          %2795 = vmatpush1.bf16.msra.mxu0 %v2766
          %2796 = vmatprep.subr.bf16.mxu0 %v2769
          %2797 = vmatpush1.bf16.msra.mxu0 %v2768
          %2798 = vmatprep.subr.bf16.mxu0 0
          %2799 = vmatpush1.bf16.msra.mxu0 0
          %2800 = vmatprep.subr.bf16.mxu0 0
          %2801 = vmatpush1.bf16.msra.mxu0 0
          %2802 = vmatprep.subr.bf16.mxu0 0
          %2803 = vmatpush1.bf16.msra.mxu0 0
          %2804 = vmatprep.subr.bf16.mxu0 0
          %2805 = vmatpush1.bf16.msra.mxu0 0
          %2806 = vmatprep.subr.bf16.mxu0 0
          %2807 = vmatpush1.bf16.msra.mxu0 0
          %2808 = vmatprep.subr.bf16.mxu0 0
          %2809 = vmatpush1.bf16.msra.mxu0 0
          %2810 = vmatprep.subr.bf16.mxu0 0
          %2811 = vmatpush1.bf16.msra.mxu0 0
          %2812 = vmatprep.subr.bf16.mxu0 0
          %2813 = vmatpush1.bf16.msra.mxu0 0
          %2814 = vmatprep.subr.bf16.mxu0 0
          %2815 = vmatpush1.bf16.msra.mxu0 0
          %2816 = vmatprep.subr.bf16.mxu0 0
          %2817 = vmatpush1.bf16.msra.mxu0 0
          %2818 = vmatprep.subr.bf16.mxu0 0
          %2819 = vmatpush1.bf16.msra.mxu0 0
          %2820 = vmatprep.subr.bf16.mxu0 0
          %2821 = vmatpush1.bf16.msra.mxu0 0
          %2822 = vmatprep.mubr.bf16.mxu0 0
          %2823 = vmatmul.mubr.bf16.gmra.mrb[0].mxu0 %v2779
          %v2824 = vpop.f32.mrb[0].mxu0
          %v2825 = vadd.f32 0.0, %v2824
          %v2826 = vpop.f32.mrb[0].mxu0
          %v2827 = vadd.f32 0.0, %v2826
          %v2828 = vpop.f32.mrb[0].mxu0
          %v2829 = vadd.f32 0.0, %v2828
          %v2830 = vpop.f32.mrb[0].mxu0
          %v2831 = vadd.f32 0.0, %v2830
          %2832 = vmatprep.mubr.bf16.mxu0 0
          %2833 = vmatmul.mubr.bf16.gmra.mrb[0].mxu0 %v2782
          %v2834 = vpop.f32.mrb[0].mxu0
          %v2835 = vadd.f32 0.0, %v2834
          %v2836 = vpop.f32.mrb[0].mxu0
          %v2837 = vadd.f32 0.0, %v2836
          %v2838 = vpop.f32.mrb[0].mxu0
          %v2839 = vadd.f32 0.0, %v2838
          %v2840 = vpop.f32.mrb[0].mxu0
          %v2841 = vadd.f32 0.0, %v2840
          %2842 = vmatprep.mubr.bf16.mxu0 0
          %2843 = vmatmul.mubr.bf16.gmra.mrb[0].mxu0 %v2785
          %v2844 = vpop.f32.mrb[0].mxu0
          %v2845 = vadd.f32 0.0, %v2844
          %v2846 = vpop.f32.mrb[0].mxu0
          %v2847 = vadd.f32 0.0, %v2846
          %v2848 = vpop.f32.mrb[0].mxu0
          %v2849 = vadd.f32 0.0, %v2848
          %v2850 = vpop.f32.mrb[0].mxu0
          %v2851 = vadd.f32 0.0, %v2850
          %2852 = vmatprep.mubr.bf16.mxu0 0
          %2853 = vmatmul.mubr.bf16.gmra.mrb[0].mxu0 %v2788
          %v2854 = vpop.f32.mrb[0].mxu0
          %v2855 = vadd.f32 0.0, %v2854
          %v2856 = vpop.f32.mrb[0].mxu0
          %v2857 = vadd.f32 0.0, %v2856
          %v2858 = vpop.f32.mrb[0].mxu0
          %v2859 = vadd.f32 0.0, %v2858
          %v2860 = vpop.f32.mrb[0].mxu0
          %v2861 = vadd.f32 0.0, %v2860
          %2862 = vdwg.mxu0
          %v2863 = vadd.f32 %v2677, %v2825
          %v2864 = vadd.f32 %v2678, %v2827
          %v2865 = vadd.f32 %v2679, %v2829
          %v2866 = vadd.f32 %v2680, %v2831
          %v2867 = vadd.f32 %v2681, %v2835
          %v2868 = vadd.f32 %v2682, %v2837
          %v2869 = vadd.f32 %v2683, %v2839
          %v2870 = vadd.f32 %v2684, %v2841
          %v2871 = vadd.f32 %v2685, %v2845
          %v2872 = vadd.f32 %v2686, %v2847
          %v2873 = vadd.f32 %v2687, %v2849
          %v2874 = vadd.f32 %v2688, %v2851
          %v2875 = vadd.f32 %v2689, %v2855
          %v2876 = vadd.f32 %v2690, %v2857
          %v2877 = vadd.f32 %v2691, %v2859
          %v2878 = vadd.f32 %v2692, %v2861
          %2879 = vrot.lane.b32.xlu0 %v1719, 17
          %v2880 = vpop.permute.xlu0 %2879
          %2881 = vrot.lane.b32.xlu0 %v1723, 17
          %v2882 = vpop.permute.xlu0 %2881
          %v2883 = vsel %vm1608, %v2880, %v2882
          %vm2884 = vcmp.ne.s16.totalorder %v2880, 0
          %vm2885 = vcmp.ne.s16.totalorder %v2883, 0
          %vm2886 = vcmp.ne.s16.totalorder %v2882, 0
          %v2887 = vsel %vm2884, %v2271, 0
          %v2888 = vsel %vm2885, %v2272, 0
          %v2889 = vsel %vm2886, %v2273, 0
          %v2890 = vsel %vm2884, %v2274, 0
          %v2891 = vsel %vm2885, %v2275, 0
          %v2892 = vsel %vm2886, %v2276, 0
          %v2893 = vsel %vm2884, %v2277, 0
          %v2894 = vsel %vm2885, %v2278, 0
          %v2895 = vsel %vm2886, %v2279, 0
          %v2896 = vsel %vm2884, %v2280, 0
          %v2897 = vsel %vm2885, %v2281, 0
          %v2898 = vsel %vm2886, %v2282, 0
          %s2899 = sadd.s32 %s1369, 8
          %s2900 = smul.u32 %s2899, 8
          %s2901 = smul.addr %s2900, 4
          %s2902 = scalar_lea.vmem %s2, %s2901
          %v2903 = vld [vmem:[%s2902] sm:$0xf]
          %v2904 = vld [vmem:[%s2902 + $0x4] sm:$0xf]
          %v2905 = vld [vmem:[%s2902 + $0x8] sm:$0xf]
          %v2906 = vld [vmem:[%s2902 + $0xc] sm:$0xf]
          %v2907 = vld [vmem:[%s2902 + $0x10] sm:$0xf]
          %v2908 = vld [vmem:[%s2902 + $0x14] sm:$0xf]
          %v2909 = vld [vmem:[%s2902 + $0x18] sm:$0xf]
          %v2910 = vld [vmem:[%s2902 + $0x1c] sm:$0xf]
          %v2919 = vunpack.c.l.b16 %v2903
          %v2920 = vunpack.c.l.b16 %v2904
          %v2921 = vunpack.c.l.b16 %v2905
          %v2922 = vunpack.c.l.b16 %v2906
          %v2923 = vunpack.c.l.b16 %v2907
          %v2924 = vunpack.c.l.b16 %v2908
          %v2925 = vunpack.c.l.b16 %v2909
          %v2926 = vunpack.c.l.b16 %v2910
          %v2927 = vpack.c.b16 %v2920, %v2919
          %v2928 = vpack.c.b16 %v2922, %v2921
          %v2929 = vpack.c.b16 %v2924, %v2923
          %v2930 = vpack.c.b16 %v2926, %v2925
          %2943 = vrot.lane.b32.xlu0 %v2887, 111
          %v2944 = vpop.permute.xlu0 %2943
          %2945 = vrot.lane.b32.xlu0 %v2888, 111
          %v2946 = vpop.permute.xlu0 %2945
          %2947 = vrot.lane.b32.xlu0 %v2889, 111
          %v2948 = vpop.permute.xlu0 %2947
          %2949 = vrot.lane.b32.xlu0 %v2890, 111
          %v2950 = vpop.permute.xlu0 %2949
          %2951 = vrot.lane.b32.xlu0 %v2891, 111
          %v2952 = vpop.permute.xlu0 %2951
          %2953 = vrot.lane.b32.xlu0 %v2892, 111
          %v2954 = vpop.permute.xlu0 %2953
          %2955 = vrot.lane.b32.xlu0 %v2893, 111
          %v2956 = vpop.permute.xlu0 %2955
          %2957 = vrot.lane.b32.xlu0 %v2894, 111
          %v2958 = vpop.permute.xlu0 %2957
          %2959 = vrot.lane.b32.xlu0 %v2895, 111
          %v2960 = vpop.permute.xlu0 %2959
          %2961 = vrot.lane.b32.xlu0 %v2896, 111
          %v2962 = vpop.permute.xlu0 %2961
          %2963 = vrot.lane.b32.xlu0 %v2897, 111
          %v2964 = vpop.permute.xlu0 %2963
          %2965 = vrot.lane.b32.xlu0 %v2898, 111
          %v2966 = vpop.permute.xlu0 %2965
          %v2967 = vsel %vm1352, %v2944, %v2946
          %v2968 = vsel %vm1352, %v2946, %v2948
          %v2969 = vsel %vm1352, %v2950, %v2952
          %v2970 = vsel %vm1352, %v2952, %v2954
          %v2971 = vsel %vm1352, %v2956, %v2958
          %v2972 = vsel %vm1352, %v2958, %v2960
          %v2973 = vsel %vm1352, %v2962, %v2964
          %v2974 = vsel %vm1352, %v2964, %v2966
          %v2984 = vsel %vm1466, %v2927, 0
          %v2987 = vsel %vm1466, %v2928, 0
          %v2990 = vsel %vm1466, %v2929, 0
          %v2993 = vsel %vm1466, %v2930, 0
          %2995 = vmatprep.subr.bf16.mxu0 %v2968
          %2996 = vmatpush1.bf16.msra.mxu0 %v2967
          %2997 = vmatprep.subr.bf16.mxu0 %v2970
          %2998 = vmatpush1.bf16.msra.mxu0 %v2969
          %2999 = vmatprep.subr.bf16.mxu0 %v2972
          %3000 = vmatpush1.bf16.msra.mxu0 %v2971
          %3001 = vmatprep.subr.bf16.mxu0 %v2974
          %3002 = vmatpush1.bf16.msra.mxu0 %v2973
          %3003 = vmatprep.subr.bf16.mxu0 0
          %3004 = vmatpush1.bf16.msra.mxu0 0
          %3005 = vmatprep.subr.bf16.mxu0 0
          %3006 = vmatpush1.bf16.msra.mxu0 0
          %3007 = vmatprep.subr.bf16.mxu0 0
          %3008 = vmatpush1.bf16.msra.mxu0 0
          %3009 = vmatprep.subr.bf16.mxu0 0
          %3010 = vmatpush1.bf16.msra.mxu0 0
          %3011 = vmatprep.subr.bf16.mxu0 0
          %3012 = vmatpush1.bf16.msra.mxu0 0
          %3013 = vmatprep.subr.bf16.mxu0 0
          %3014 = vmatpush1.bf16.msra.mxu0 0
          %3015 = vmatprep.subr.bf16.mxu0 0
          %3016 = vmatpush1.bf16.msra.mxu0 0
          %3017 = vmatprep.subr.bf16.mxu0 0
          %3018 = vmatpush1.bf16.msra.mxu0 0
          %3019 = vmatprep.subr.bf16.mxu0 0
          %3020 = vmatpush1.bf16.msra.mxu0 0
          %3021 = vmatprep.subr.bf16.mxu0 0
          %3022 = vmatpush1.bf16.msra.mxu0 0
          %3023 = vmatprep.subr.bf16.mxu0 0
          %3024 = vmatpush1.bf16.msra.mxu0 0
          %3025 = vmatprep.subr.bf16.mxu0 0
          %3026 = vmatpush1.bf16.msra.mxu0 0
          %3027 = vmatprep.mubr.bf16.mxu0 0
          %3028 = vmatmul.mubr.bf16.gmra.mrb[0].mxu0 %v2984
          %v3029 = vpop.f32.mrb[0].mxu0
          %v3030 = vadd.f32 0.0, %v3029
          %v3031 = vpop.f32.mrb[0].mxu0
          %v3032 = vadd.f32 0.0, %v3031
          %v3033 = vpop.f32.mrb[0].mxu0
          %v3034 = vadd.f32 0.0, %v3033
          %v3035 = vpop.f32.mrb[0].mxu0
          %v3036 = vadd.f32 0.0, %v3035
          %3037 = vmatprep.mubr.bf16.mxu0 0
          %3038 = vmatmul.mubr.bf16.gmra.mrb[0].mxu0 %v2987
          %v3039 = vpop.f32.mrb[0].mxu0
          %v3040 = vadd.f32 0.0, %v3039
          %v3041 = vpop.f32.mrb[0].mxu0
          %v3042 = vadd.f32 0.0, %v3041
          %v3043 = vpop.f32.mrb[0].mxu0
          %v3044 = vadd.f32 0.0, %v3043
          %v3045 = vpop.f32.mrb[0].mxu0
          %v3046 = vadd.f32 0.0, %v3045
          %3047 = vmatprep.mubr.bf16.mxu0 0
          %3048 = vmatmul.mubr.bf16.gmra.mrb[0].mxu0 %v2990
          %v3049 = vpop.f32.mrb[0].mxu0
          %v3050 = vadd.f32 0.0, %v3049
          %v3051 = vpop.f32.mrb[0].mxu0
          %v3052 = vadd.f32 0.0, %v3051
          %v3053 = vpop.f32.mrb[0].mxu0
          %v3054 = vadd.f32 0.0, %v3053
          %v3055 = vpop.f32.mrb[0].mxu0
          %v3056 = vadd.f32 0.0, %v3055
          %3057 = vmatprep.mubr.bf16.mxu0 0
          %3058 = vmatmul.mubr.bf16.gmra.mrb[0].mxu0 %v2993
          %v3059 = vpop.f32.mrb[0].mxu0
          %v3060 = vadd.f32 0.0, %v3059
          %v3061 = vpop.f32.mrb[0].mxu0
          %v3062 = vadd.f32 0.0, %v3061
          %v3063 = vpop.f32.mrb[0].mxu0
          %v3064 = vadd.f32 0.0, %v3063
          %v3065 = vpop.f32.mrb[0].mxu0
          %v3066 = vadd.f32 0.0, %v3065
          %3067 = vdwg.mxu0
          %v3068 = vadd.f32 %v2863, %v3030
          %v3069 = vadd.f32 %v2864, %v3032
          %v3070 = vadd.f32 %v2865, %v3034
          %v3071 = vadd.f32 %v2866, %v3036
          %v3072 = vadd.f32 %v2867, %v3040
          %v3073 = vadd.f32 %v2868, %v3042
          %v3074 = vadd.f32 %v2869, %v3044
          %v3075 = vadd.f32 %v2870, %v3046
          %v3076 = vadd.f32 %v2871, %v3050
          %v3077 = vadd.f32 %v2872, %v3052
          %v3078 = vadd.f32 %v2873, %v3054
          %v3079 = vadd.f32 %v2874, %v3056
          %v3080 = vadd.f32 %v2875, %v3060
          %v3081 = vadd.f32 %v2876, %v3062
          %v3082 = vadd.f32 %v2877, %v3064
          %v3083 = vadd.f32 %v2878, %v3066
          %v3084 = vmax.f32 %v3068, 0.0
          %v3085 = vmax.f32 %v3069, 0.0
          %v3086 = vmax.f32 %v3070, 0.0
          %v3087 = vmax.f32 %v3071, 0.0
          %v3088 = vmax.f32 %v3072, 0.0
          %v3089 = vmax.f32 %v3073, 0.0
          %v3090 = vmax.f32 %v3074, 0.0
          %v3091 = vmax.f32 %v3075, 0.0
          %v3092 = vmax.f32 %v3076, 0.0
          %v3093 = vmax.f32 %v3077, 0.0
          %v3094 = vmax.f32 %v3078, 0.0
          %v3095 = vmax.f32 %v3079, 0.0
          %v3096 = vmax.f32 %v3080, 0.0
          %v3097 = vmax.f32 %v3081, 0.0
          %v3098 = vmax.f32 %v3082, 0.0
          %v3099 = vmax.f32 %v3083, 0.0
          %v3100 = vpack.c.bf16 %v3086, %v3084
          %v3101 = vpack.c.bf16 %v3087, %v3085
          %v3102 = vpack.c.bf16 %v3090, %v3088
          %v3103 = vpack.c.bf16 %v3091, %v3089
          %v3104 = vpack.c.bf16 %v3094, %v3092
          %v3105 = vpack.c.bf16 %v3095, %v3093
          %v3106 = vpack.c.bf16 %v3098, %v3096
          %v3107 = vpack.c.bf16 %v3099, %v3097
          %3108 = vst [vmem:[#allocation3 + $0x8] sm:$0xff] %v3100
          %3109 = vst [vmem:[#allocation3 + $0x10] sm:$0xff] %v3101
          %3110 = vst [vmem:[#allocation3 + $0x28] sm:$0xff] %v3102
          %3111 = vst [vmem:[#allocation3 + $0x30] sm:$0xff] %v3103
          %3112 = vst [vmem:[#allocation3 + $0x48] sm:$0xff] %v3104
          %3113 = vst [vmem:[#allocation3 + $0x50] sm:$0xff] %v3105
          %3114 = vst [vmem:[#allocation3 + $0x68] sm:$0xff] %v3106
          %3115 = vst [vmem:[#allocation3 + $0x70] sm:$0xff] %v3107
          %s3116 = smul.u32 %s1317, 2
          %s3117 = sadd.s32 %s3116, 1
          %v3118 = vld [vmem:[#allocation3] sm:$0xff]
          %v3119 = vld [vmem:[#allocation3 + $0x8] sm:$0xff]
          %v3120 = vld [vmem:[#allocation3 + $0x10] sm:$0xff]
          %v3121 = vld [vmem:[#allocation3 + $0x20] sm:$0xff]
          %v3122 = vld [vmem:[#allocation3 + $0x28] sm:$0xff]
          %v3123 = vld [vmem:[#allocation3 + $0x30] sm:$0xff]
          %v3124 = vld [vmem:[#allocation3 + $0x40] sm:$0xff]
          %v3125 = vld [vmem:[#allocation3 + $0x48] sm:$0xff]
          %v3126 = vld [vmem:[#allocation3 + $0x50] sm:$0xff]
          %v3127 = vld [vmem:[#allocation3 + $0x60] sm:$0xff]
          %v3128 = vld [vmem:[#allocation3 + $0x68] sm:$0xff]
          %v3129 = vld [vmem:[#allocation3 + $0x70] sm:$0xff]
          %v3130 = vsel %vm1354, %v3118, 0
          %v3131 = vsel %vm1355, %v3119, 0
          %v3132 = vsel %vm1356, %v3120, 0
          %v3133 = vsel %vm1354, %v3121, 0
          %v3134 = vsel %vm1355, %v3122, 0
          %v3135 = vsel %vm1356, %v3123, 0
          %v3136 = vsel %vm1354, %v3124, 0
          %v3137 = vsel %vm1355, %v3125, 0
          %v3138 = vsel %vm1356, %v3126, 0
          %v3139 = vsel %vm1354, %v3127, 0
          %v3140 = vsel %vm1355, %v3128, 0
          %v3141 = vsel %vm1356, %v3129, 0
          %s3142 = smul.u32 %s3117, 9
          %s3143 = smul.u32 %s3142, 8
          %s3144 = smul.addr %s3143, 4
          %s3145 = scalar_lea.vmem %s2, %s3144
          %v3146 = vld [vmem:[%s3145] sm:$0xf]
          %v3147 = vld [vmem:[%s3145 + $0x4] sm:$0xf]
          %v3148 = vld [vmem:[%s3145 + $0x8] sm:$0xf]
          %v3149 = vld [vmem:[%s3145 + $0xc] sm:$0xf]
          %v3150 = vld [vmem:[%s3145 + $0x10] sm:$0xf]
          %v3151 = vld [vmem:[%s3145 + $0x14] sm:$0xf]
          %v3152 = vld [vmem:[%s3145 + $0x18] sm:$0xf]
          %v3153 = vld [vmem:[%s3145 + $0x1c] sm:$0xf]
          %s3154 = sadd.s32 %s3142, 1
          %s3155 = smul.u32 %s3154, 8
          %s3156 = smul.addr %s3155, 4
          %s3157 = scalar_lea.vmem %s2, %s3156
          %v3158 = vld [vmem:[%s3157] sm:$0xf]
          %v3159 = vld [vmem:[%s3157 + $0x4] sm:$0xf]
          %v3160 = vld [vmem:[%s3157 + $0x8] sm:$0xf]
          %v3161 = vld [vmem:[%s3157 + $0xc] sm:$0xf]
          %v3162 = vld [vmem:[%s3157 + $0x10] sm:$0xf]
          %v3163 = vld [vmem:[%s3157 + $0x14] sm:$0xf]
          %v3164 = vld [vmem:[%s3157 + $0x18] sm:$0xf]
          %v3165 = vld [vmem:[%s3157 + $0x1c] sm:$0xf]
          %v3174 = vunpack.c.l.b16 %v3158
          %v3175 = vunpack.c.l.b16 %v3159
          %v3176 = vunpack.c.l.b16 %v3160
          %v3177 = vunpack.c.l.b16 %v3161
          %v3178 = vunpack.c.l.b16 %v3162
          %v3179 = vunpack.c.l.b16 %v3163
          %v3180 = vunpack.c.l.b16 %v3164
          %v3181 = vunpack.c.l.b16 %v3165
          %v3182 = vpack.c.b16 %v3175, %v3174
          %v3183 = vpack.c.b16 %v3177, %v3176
          %v3184 = vpack.c.b16 %v3179, %v3178
          %v3185 = vpack.c.b16 %v3181, %v3180
          %3198 = vrot.lane.b32.xlu0 %v3118, 16
          %v3199 = vpop.permute.xlu0 %3198
          %3200 = vrot.lane.b32.xlu0 %v3119, 16
          %v3201 = vpop.permute.xlu0 %3200
          %3202 = vrot.lane.b32.xlu0 %v3120, 16
          %v3203 = vpop.permute.xlu0 %3202
          %3204 = vrot.lane.b32.xlu0 %v3121, 16
          %v3205 = vpop.permute.xlu0 %3204
          %3206 = vrot.lane.b32.xlu0 %v3122, 16
          %v3207 = vpop.permute.xlu0 %3206
          %3208 = vrot.lane.b32.xlu0 %v3123, 16
          %v3209 = vpop.permute.xlu0 %3208
          %3210 = vrot.lane.b32.xlu0 %v3124, 16
          %v3211 = vpop.permute.xlu0 %3210
          %3212 = vrot.lane.b32.xlu0 %v3125, 16
          %v3213 = vpop.permute.xlu0 %3212
          %3214 = vrot.lane.b32.xlu0 %v3126, 16
          %v3215 = vpop.permute.xlu0 %3214
          %3216 = vrot.lane.b32.xlu0 %v3127, 16
          %v3217 = vpop.permute.xlu0 %3216
          %3218 = vrot.lane.b32.xlu0 %v3128, 16
          %v3219 = vpop.permute.xlu0 %3218
          %3220 = vrot.lane.b32.xlu0 %v3129, 16
          %v3221 = vpop.permute.xlu0 %3220
          %v3222 = vsel %vm1449, %v3199, %v3201
          %v3223 = vsel %vm1449, %v3201, %v3203
          %v3224 = vsel %vm1449, %v3205, %v3207
          %v3225 = vsel %vm1449, %v3207, %v3209
          %v3226 = vsel %vm1449, %v3211, %v3213
          %v3227 = vsel %vm1449, %v3213, %v3215
          %v3228 = vsel %vm1449, %v3217, %v3219
          %v3229 = vsel %vm1449, %v3219, %v3221
          %v3239 = vsel %vm1466, %v3182, 0
          %v3242 = vsel %vm1466, %v3183, 0
          %v3245 = vsel %vm1466, %v3184, 0
          %v3248 = vsel %vm1466, %v3185, 0
          %3250 = vmatprep.subr.bf16.mxu0 %v3223
          %3251 = vmatpush1.bf16.msra.mxu0 %v3222
          %3252 = vmatprep.subr.bf16.mxu0 %v3225
          %3253 = vmatpush1.bf16.msra.mxu0 %v3224
          %3254 = vmatprep.subr.bf16.mxu0 %v3227
          %3255 = vmatpush1.bf16.msra.mxu0 %v3226
          %3256 = vmatprep.subr.bf16.mxu0 %v3229
          %3257 = vmatpush1.bf16.msra.mxu0 %v3228
          %3258 = vmatprep.subr.bf16.mxu0 0
          %3259 = vmatpush1.bf16.msra.mxu0 0
          %3260 = vmatprep.subr.bf16.mxu0 0
          %3261 = vmatpush1.bf16.msra.mxu0 0
          %3262 = vmatprep.subr.bf16.mxu0 0
          %3263 = vmatpush1.bf16.msra.mxu0 0
          %3264 = vmatprep.subr.bf16.mxu0 0
          %3265 = vmatpush1.bf16.msra.mxu0 0
          %3266 = vmatprep.subr.bf16.mxu0 0
          %3267 = vmatpush1.bf16.msra.mxu0 0
          %3268 = vmatprep.subr.bf16.mxu0 0
          %3269 = vmatpush1.bf16.msra.mxu0 0
          %3270 = vmatprep.subr.bf16.mxu0 0
          %3271 = vmatpush1.bf16.msra.mxu0 0
          %3272 = vmatprep.subr.bf16.mxu0 0
          %3273 = vmatpush1.bf16.msra.mxu0 0
          %3274 = vmatprep.subr.bf16.mxu0 0
          %3275 = vmatpush1.bf16.msra.mxu0 0
          %3276 = vmatprep.subr.bf16.mxu0 0
          %3277 = vmatpush1.bf16.msra.mxu0 0
          %3278 = vmatprep.subr.bf16.mxu0 0
          %3279 = vmatpush1.bf16.msra.mxu0 0
          %3280 = vmatprep.subr.bf16.mxu0 0
          %3281 = vmatpush1.bf16.msra.mxu0 0
          %3282 = vmatprep.mubr.bf16.mxu0 0
          %3283 = vmatmul.mubr.bf16.gmra.mrb[0].mxu0 %v3239
          %v3284 = vpop.f32.mrb[0].mxu0
          %v3285 = vadd.f32 0.0, %v3284
          %v3286 = vpop.f32.mrb[0].mxu0
          %v3287 = vadd.f32 0.0, %v3286
          %v3288 = vpop.f32.mrb[0].mxu0
          %v3289 = vadd.f32 0.0, %v3288
          %v3290 = vpop.f32.mrb[0].mxu0
          %v3291 = vadd.f32 0.0, %v3290
          %3292 = vmatprep.mubr.bf16.mxu0 0
          %3293 = vmatmul.mubr.bf16.gmra.mrb[0].mxu0 %v3242
          %v3294 = vpop.f32.mrb[0].mxu0
          %v3295 = vadd.f32 0.0, %v3294
          %v3296 = vpop.f32.mrb[0].mxu0
          %v3297 = vadd.f32 0.0, %v3296
          %v3298 = vpop.f32.mrb[0].mxu0
          %v3299 = vadd.f32 0.0, %v3298
          %v3300 = vpop.f32.mrb[0].mxu0
          %v3301 = vadd.f32 0.0, %v3300
          %3302 = vmatprep.mubr.bf16.mxu0 0
          %3303 = vmatmul.mubr.bf16.gmra.mrb[0].mxu0 %v3245
          %v3304 = vpop.f32.mrb[0].mxu0
          %v3305 = vadd.f32 0.0, %v3304
          %v3306 = vpop.f32.mrb[0].mxu0
          %v3307 = vadd.f32 0.0, %v3306
          %v3308 = vpop.f32.mrb[0].mxu0
          %v3309 = vadd.f32 0.0, %v3308
          %v3310 = vpop.f32.mrb[0].mxu0
          %v3311 = vadd.f32 0.0, %v3310
          %3312 = vmatprep.mubr.bf16.mxu0 0
          %3313 = vmatmul.mubr.bf16.gmra.mrb[0].mxu0 %v3248
          %v3314 = vpop.f32.mrb[0].mxu0
          %v3315 = vadd.f32 0.0, %v3314
          %v3316 = vpop.f32.mrb[0].mxu0
          %v3317 = vadd.f32 0.0, %v3316
          %v3318 = vpop.f32.mrb[0].mxu0
          %v3319 = vadd.f32 0.0, %v3318
          %v3320 = vpop.f32.mrb[0].mxu0
          %v3321 = vadd.f32 0.0, %v3320
          %3322 = vdwg.mxu0
          %v3331 = vunpack.c.l.b16 %v3146
          %v3332 = vunpack.c.l.b16 %v3147
          %v3333 = vunpack.c.l.b16 %v3148
          %v3334 = vunpack.c.l.b16 %v3149
          %v3335 = vunpack.c.l.b16 %v3150
          %v3336 = vunpack.c.l.b16 %v3151
          %v3337 = vunpack.c.l.b16 %v3152
          %v3338 = vunpack.c.l.b16 %v3153
          %v3339 = vpack.c.b16 %v3332, %v3331
          %v3340 = vpack.c.b16 %v3334, %v3333
          %v3341 = vpack.c.b16 %v3336, %v3335
          %v3342 = vpack.c.b16 %v3338, %v3337
          %3355 = vrot.lane.b32.xlu0 %v3130, 17
          %v3356 = vpop.permute.xlu0 %3355
          %3357 = vrot.lane.b32.xlu0 %v3131, 17
          %v3358 = vpop.permute.xlu0 %3357
          %3359 = vrot.lane.b32.xlu0 %v3132, 17
          %v3360 = vpop.permute.xlu0 %3359
          %3361 = vrot.lane.b32.xlu0 %v3133, 17
          %v3362 = vpop.permute.xlu0 %3361
          %3363 = vrot.lane.b32.xlu0 %v3134, 17
          %v3364 = vpop.permute.xlu0 %3363
          %3365 = vrot.lane.b32.xlu0 %v3135, 17
          %v3366 = vpop.permute.xlu0 %3365
          %3367 = vrot.lane.b32.xlu0 %v3136, 17
          %v3368 = vpop.permute.xlu0 %3367
          %3369 = vrot.lane.b32.xlu0 %v3137, 17
          %v3370 = vpop.permute.xlu0 %3369
          %3371 = vrot.lane.b32.xlu0 %v3138, 17
          %v3372 = vpop.permute.xlu0 %3371
          %3373 = vrot.lane.b32.xlu0 %v3139, 17
          %v3374 = vpop.permute.xlu0 %3373
          %3375 = vrot.lane.b32.xlu0 %v3140, 17
          %v3376 = vpop.permute.xlu0 %3375
          %3377 = vrot.lane.b32.xlu0 %v3141, 17
          %v3378 = vpop.permute.xlu0 %3377
          %v3379 = vsel %vm1608, %v3356, %v3358
          %v3380 = vsel %vm1608, %v3358, %v3360
          %v3381 = vsel %vm1608, %v3362, %v3364
          %v3382 = vsel %vm1608, %v3364, %v3366
          %v3383 = vsel %vm1608, %v3368, %v3370
          %v3384 = vsel %vm1608, %v3370, %v3372
          %v3385 = vsel %vm1608, %v3374, %v3376
          %v3386 = vsel %vm1608, %v3376, %v3378
          %v3396 = vsel %vm1466, %v3339, 0
          %v3399 = vsel %vm1466, %v3340, 0
          %v3402 = vsel %vm1466, %v3341, 0
          %v3405 = vsel %vm1466, %v3342, 0
          %3407 = vmatprep.subr.bf16.mxu0 %v3380
          %3408 = vmatpush1.bf16.msra.mxu0 %v3379
          %3409 = vmatprep.subr.bf16.mxu0 %v3382
          %3410 = vmatpush1.bf16.msra.mxu0 %v3381
          %3411 = vmatprep.subr.bf16.mxu0 %v3384
          %3412 = vmatpush1.bf16.msra.mxu0 %v3383
          %3413 = vmatprep.subr.bf16.mxu0 %v3386
          %3414 = vmatpush1.bf16.msra.mxu0 %v3385
          %3415 = vmatprep.subr.bf16.mxu0 0
          %3416 = vmatpush1.bf16.msra.mxu0 0
          %3417 = vmatprep.subr.bf16.mxu0 0
          %3418 = vmatpush1.bf16.msra.mxu0 0
          %3419 = vmatprep.subr.bf16.mxu0 0
          %3420 = vmatpush1.bf16.msra.mxu0 0
          %3421 = vmatprep.subr.bf16.mxu0 0
          %3422 = vmatpush1.bf16.msra.mxu0 0
          %3423 = vmatprep.subr.bf16.mxu0 0
          %3424 = vmatpush1.bf16.msra.mxu0 0
          %3425 = vmatprep.subr.bf16.mxu0 0
          %3426 = vmatpush1.bf16.msra.mxu0 0
          %3427 = vmatprep.subr.bf16.mxu0 0
          %3428 = vmatpush1.bf16.msra.mxu0 0
          %3429 = vmatprep.subr.bf16.mxu0 0
          %3430 = vmatpush1.bf16.msra.mxu0 0
          %3431 = vmatprep.subr.bf16.mxu0 0
          %3432 = vmatpush1.bf16.msra.mxu0 0
          %3433 = vmatprep.subr.bf16.mxu0 0
          %3434 = vmatpush1.bf16.msra.mxu0 0
          %3435 = vmatprep.subr.bf16.mxu0 0
          %3436 = vmatpush1.bf16.msra.mxu0 0
          %3437 = vmatprep.subr.bf16.mxu0 0
          %3438 = vmatpush1.bf16.msra.mxu0 0
          %3439 = vmatprep.mubr.bf16.mxu0 0
          %3440 = vmatmul.mubr.bf16.gmra.mrb[0].mxu0 %v3396
          %v3441 = vpop.f32.mrb[0].mxu0
          %v3442 = vadd.f32 %v3285, %v3441
          %v3443 = vpop.f32.mrb[0].mxu0
          %v3444 = vadd.f32 %v3287, %v3443
          %v3445 = vpop.f32.mrb[0].mxu0
          %v3446 = vadd.f32 %v3289, %v3445
          %v3447 = vpop.f32.mrb[0].mxu0
          %v3448 = vadd.f32 %v3291, %v3447
          %3449 = vmatprep.mubr.bf16.mxu0 0
          %3450 = vmatmul.mubr.bf16.gmra.mrb[0].mxu0 %v3399
          %v3451 = vpop.f32.mrb[0].mxu0
          %v3452 = vadd.f32 %v3295, %v3451
          %v3453 = vpop.f32.mrb[0].mxu0
          %v3454 = vadd.f32 %v3297, %v3453
          %v3455 = vpop.f32.mrb[0].mxu0
          %v3456 = vadd.f32 %v3299, %v3455
          %v3457 = vpop.f32.mrb[0].mxu0
          %v3458 = vadd.f32 %v3301, %v3457
          %3459 = vmatprep.mubr.bf16.mxu0 0
          %3460 = vmatmul.mubr.bf16.gmra.mrb[0].mxu0 %v3402
          %v3461 = vpop.f32.mrb[0].mxu0
          %v3462 = vadd.f32 %v3305, %v3461
          %v3463 = vpop.f32.mrb[0].mxu0
          %v3464 = vadd.f32 %v3307, %v3463
          %v3465 = vpop.f32.mrb[0].mxu0
          %v3466 = vadd.f32 %v3309, %v3465
          %v3467 = vpop.f32.mrb[0].mxu0
          %v3468 = vadd.f32 %v3311, %v3467
          %3469 = vmatprep.mubr.bf16.mxu0 0
          %3470 = vmatmul.mubr.bf16.gmra.mrb[0].mxu0 %v3405
          %v3471 = vpop.f32.mrb[0].mxu0
          %v3472 = vadd.f32 %v3315, %v3471
          %v3473 = vpop.f32.mrb[0].mxu0
          %v3474 = vadd.f32 %v3317, %v3473
          %v3475 = vpop.f32.mrb[0].mxu0
          %v3476 = vadd.f32 %v3319, %v3475
          %v3477 = vpop.f32.mrb[0].mxu0
          %v3478 = vadd.f32 %v3321, %v3477
          %3479 = vdwg.mxu0
          %v3480 = vsel %vm1730, %v3118, 0
          %v3481 = vsel %vm1731, %v3119, 0
          %v3482 = vsel %vm1732, %v3120, 0
          %v3483 = vsel %vm1730, %v3121, 0
          %v3484 = vsel %vm1731, %v3122, 0
          %v3485 = vsel %vm1732, %v3123, 0
          %v3486 = vsel %vm1730, %v3124, 0
          %v3487 = vsel %vm1731, %v3125, 0
          %v3488 = vsel %vm1732, %v3126, 0
          %v3489 = vsel %vm1730, %v3127, 0
          %v3490 = vsel %vm1731, %v3128, 0
          %v3491 = vsel %vm1732, %v3129, 0
          %s3492 = sadd.s32 %s3142, 2
          %s3493 = smul.u32 %s3492, 8
          %s3494 = smul.addr %s3493, 4
          %s3495 = scalar_lea.vmem %s2, %s3494
          %v3496 = vld [vmem:[%s3495] sm:$0xf]
          %v3497 = vld [vmem:[%s3495 + $0x4] sm:$0xf]
          %v3498 = vld [vmem:[%s3495 + $0x8] sm:$0xf]
          %v3499 = vld [vmem:[%s3495 + $0xc] sm:$0xf]
          %v3500 = vld [vmem:[%s3495 + $0x10] sm:$0xf]
          %v3501 = vld [vmem:[%s3495 + $0x14] sm:$0xf]
          %v3502 = vld [vmem:[%s3495 + $0x18] sm:$0xf]
          %v3503 = vld [vmem:[%s3495 + $0x1c] sm:$0xf]
          %v3512 = vunpack.c.l.b16 %v3496
          %v3513 = vunpack.c.l.b16 %v3497
          %v3514 = vunpack.c.l.b16 %v3498
          %v3515 = vunpack.c.l.b16 %v3499
          %v3516 = vunpack.c.l.b16 %v3500
          %v3517 = vunpack.c.l.b16 %v3501
          %v3518 = vunpack.c.l.b16 %v3502
          %v3519 = vunpack.c.l.b16 %v3503
          %v3520 = vpack.c.b16 %v3513, %v3512
          %v3521 = vpack.c.b16 %v3515, %v3514
          %v3522 = vpack.c.b16 %v3517, %v3516
          %v3523 = vpack.c.b16 %v3519, %v3518
          %3536 = vrot.lane.b32.xlu0 %v3480, 15
          %v3537 = vpop.permute.xlu0 %3536
          %3538 = vrot.lane.b32.xlu0 %v3481, 15
          %v3539 = vpop.permute.xlu0 %3538
          %3540 = vrot.lane.b32.xlu0 %v3482, 15
          %v3541 = vpop.permute.xlu0 %3540
          %3542 = vrot.lane.b32.xlu0 %v3483, 15
          %v3543 = vpop.permute.xlu0 %3542
          %3544 = vrot.lane.b32.xlu0 %v3484, 15
          %v3545 = vpop.permute.xlu0 %3544
          %3546 = vrot.lane.b32.xlu0 %v3485, 15
          %v3547 = vpop.permute.xlu0 %3546
          %3548 = vrot.lane.b32.xlu0 %v3486, 15
          %v3549 = vpop.permute.xlu0 %3548
          %3550 = vrot.lane.b32.xlu0 %v3487, 15
          %v3551 = vpop.permute.xlu0 %3550
          %3552 = vrot.lane.b32.xlu0 %v3488, 15
          %v3553 = vpop.permute.xlu0 %3552
          %3554 = vrot.lane.b32.xlu0 %v3489, 15
          %v3555 = vpop.permute.xlu0 %3554
          %3556 = vrot.lane.b32.xlu0 %v3490, 15
          %v3557 = vpop.permute.xlu0 %3556
          %3558 = vrot.lane.b32.xlu0 %v3491, 15
          %v3559 = vpop.permute.xlu0 %3558
          %v3560 = vsel %vm1813, %v3537, %v3539
          %v3561 = vsel %vm1813, %v3539, %v3541
          %v3562 = vsel %vm1813, %v3543, %v3545
          %v3563 = vsel %vm1813, %v3545, %v3547
          %v3564 = vsel %vm1813, %v3549, %v3551
          %v3565 = vsel %vm1813, %v3551, %v3553
          %v3566 = vsel %vm1813, %v3555, %v3557
          %v3567 = vsel %vm1813, %v3557, %v3559
          %v3577 = vsel %vm1466, %v3520, 0
          %v3580 = vsel %vm1466, %v3521, 0
          %v3583 = vsel %vm1466, %v3522, 0
          %v3586 = vsel %vm1466, %v3523, 0
          %3588 = vmatprep.subr.bf16.mxu0 %v3561
          %3589 = vmatpush1.bf16.msra.mxu0 %v3560
          %3590 = vmatprep.subr.bf16.mxu0 %v3563
          %3591 = vmatpush1.bf16.msra.mxu0 %v3562
          %3592 = vmatprep.subr.bf16.mxu0 %v3565
          %3593 = vmatpush1.bf16.msra.mxu0 %v3564
          %3594 = vmatprep.subr.bf16.mxu0 %v3567
          %3595 = vmatpush1.bf16.msra.mxu0 %v3566
          %3596 = vmatprep.subr.bf16.mxu0 0
          %3597 = vmatpush1.bf16.msra.mxu0 0
          %3598 = vmatprep.subr.bf16.mxu0 0
          %3599 = vmatpush1.bf16.msra.mxu0 0
          %3600 = vmatprep.subr.bf16.mxu0 0
          %3601 = vmatpush1.bf16.msra.mxu0 0
          %3602 = vmatprep.subr.bf16.mxu0 0
          %3603 = vmatpush1.bf16.msra.mxu0 0
          %3604 = vmatprep.subr.bf16.mxu0 0
          %3605 = vmatpush1.bf16.msra.mxu0 0
          %3606 = vmatprep.subr.bf16.mxu0 0
          %3607 = vmatpush1.bf16.msra.mxu0 0
          %3608 = vmatprep.subr.bf16.mxu0 0
          %3609 = vmatpush1.bf16.msra.mxu0 0
          %3610 = vmatprep.subr.bf16.mxu0 0
          %3611 = vmatpush1.bf16.msra.mxu0 0
          %3612 = vmatprep.subr.bf16.mxu0 0
          %3613 = vmatpush1.bf16.msra.mxu0 0
          %3614 = vmatprep.subr.bf16.mxu0 0
          %3615 = vmatpush1.bf16.msra.mxu0 0
          %3616 = vmatprep.subr.bf16.mxu0 0
          %3617 = vmatpush1.bf16.msra.mxu0 0
          %3618 = vmatprep.subr.bf16.mxu0 0
          %3619 = vmatpush1.bf16.msra.mxu0 0
          %3620 = vmatprep.mubr.bf16.mxu0 0
          %3621 = vmatmul.mubr.bf16.gmra.mrb[0].mxu0 %v3577
          %v3622 = vpop.f32.mrb[0].mxu0
          %v3623 = vadd.f32 0.0, %v3622
          %v3624 = vpop.f32.mrb[0].mxu0
          %v3625 = vadd.f32 0.0, %v3624
          %v3626 = vpop.f32.mrb[0].mxu0
          %v3627 = vadd.f32 0.0, %v3626
          %v3628 = vpop.f32.mrb[0].mxu0
          %v3629 = vadd.f32 0.0, %v3628
          %3630 = vmatprep.mubr.bf16.mxu0 0
          %3631 = vmatmul.mubr.bf16.gmra.mrb[0].mxu0 %v3580
          %v3632 = vpop.f32.mrb[0].mxu0
          %v3633 = vadd.f32 0.0, %v3632
          %v3634 = vpop.f32.mrb[0].mxu0
          %v3635 = vadd.f32 0.0, %v3634
          %v3636 = vpop.f32.mrb[0].mxu0
          %v3637 = vadd.f32 0.0, %v3636
          %v3638 = vpop.f32.mrb[0].mxu0
          %v3639 = vadd.f32 0.0, %v3638
          %3640 = vmatprep.mubr.bf16.mxu0 0
          %3641 = vmatmul.mubr.bf16.gmra.mrb[0].mxu0 %v3583
          %v3642 = vpop.f32.mrb[0].mxu0
          %v3643 = vadd.f32 0.0, %v3642
          %v3644 = vpop.f32.mrb[0].mxu0
          %v3645 = vadd.f32 0.0, %v3644
          %v3646 = vpop.f32.mrb[0].mxu0
          %v3647 = vadd.f32 0.0, %v3646
          %v3648 = vpop.f32.mrb[0].mxu0
          %v3649 = vadd.f32 0.0, %v3648
          %3650 = vmatprep.mubr.bf16.mxu0 0
          %3651 = vmatmul.mubr.bf16.gmra.mrb[0].mxu0 %v3586
          %v3652 = vpop.f32.mrb[0].mxu0
          %v3653 = vadd.f32 0.0, %v3652
          %v3654 = vpop.f32.mrb[0].mxu0
          %v3655 = vadd.f32 0.0, %v3654
          %v3656 = vpop.f32.mrb[0].mxu0
          %v3657 = vadd.f32 0.0, %v3656
          %v3658 = vpop.f32.mrb[0].mxu0
          %v3659 = vadd.f32 0.0, %v3658
          %3660 = vdwg.mxu0
          %v3661 = vadd.f32 %v3442, %v3623
          %v3662 = vadd.f32 %v3444, %v3625
          %v3663 = vadd.f32 %v3446, %v3627
          %v3664 = vadd.f32 %v3448, %v3629
          %v3665 = vadd.f32 %v3452, %v3633
          %v3666 = vadd.f32 %v3454, %v3635
          %v3667 = vadd.f32 %v3456, %v3637
          %v3668 = vadd.f32 %v3458, %v3639
          %v3669 = vadd.f32 %v3462, %v3643
          %v3670 = vadd.f32 %v3464, %v3645
          %v3671 = vadd.f32 %v3466, %v3647
          %v3672 = vadd.f32 %v3468, %v3649
          %v3673 = vadd.f32 %v3472, %v3653
          %v3674 = vadd.f32 %v3474, %v3655
          %v3675 = vadd.f32 %v3476, %v3657
          %v3676 = vadd.f32 %v3478, %v3659
          %v3677 = vsel %vm1937, %v3118, 0
          %v3678 = vsel %vm1938, %v3119, 0
          %v3679 = vsel %vm1939, %v3120, 0
          %v3680 = vsel %vm1937, %v3121, 0
          %v3681 = vsel %vm1938, %v3122, 0
          %v3682 = vsel %vm1939, %v3123, 0
          %v3683 = vsel %vm1937, %v3124, 0
          %v3684 = vsel %vm1938, %v3125, 0
          %v3685 = vsel %vm1939, %v3126, 0
          %v3686 = vsel %vm1937, %v3127, 0
          %v3687 = vsel %vm1938, %v3128, 0
          %v3688 = vsel %vm1939, %v3129, 0
          %s3689 = sadd.s32 %s3142, 3
          %s3690 = smul.u32 %s3689, 8
          %s3691 = smul.addr %s3690, 4
          %s3692 = scalar_lea.vmem %s2, %s3691
          %v3693 = vld [vmem:[%s3692] sm:$0xf]
          %v3694 = vld [vmem:[%s3692 + $0x4] sm:$0xf]
          %v3695 = vld [vmem:[%s3692 + $0x8] sm:$0xf]
          %v3696 = vld [vmem:[%s3692 + $0xc] sm:$0xf]
          %v3697 = vld [vmem:[%s3692 + $0x10] sm:$0xf]
          %v3698 = vld [vmem:[%s3692 + $0x14] sm:$0xf]
          %v3699 = vld [vmem:[%s3692 + $0x18] sm:$0xf]
          %v3700 = vld [vmem:[%s3692 + $0x1c] sm:$0xf]
          %v3709 = vunpack.c.l.b16 %v3693
          %v3710 = vunpack.c.l.b16 %v3694
          %v3711 = vunpack.c.l.b16 %v3695
          %v3712 = vunpack.c.l.b16 %v3696
          %v3713 = vunpack.c.l.b16 %v3697
          %v3714 = vunpack.c.l.b16 %v3698
          %v3715 = vunpack.c.l.b16 %v3699
          %v3716 = vunpack.c.l.b16 %v3700
          %v3717 = vpack.c.b16 %v3710, %v3709
          %v3718 = vpack.c.b16 %v3712, %v3711
          %v3719 = vpack.c.b16 %v3714, %v3713
          %v3720 = vpack.c.b16 %v3716, %v3715
          %3733 = vrot.lane.b32.xlu0 %v3677, 1
          %v3734 = vpop.permute.xlu0 %3733
          %3735 = vrot.lane.b32.xlu0 %v3678, 1
          %v3736 = vpop.permute.xlu0 %3735
          %3737 = vrot.lane.b32.xlu0 %v3679, 1
          %v3738 = vpop.permute.xlu0 %3737
          %3739 = vrot.lane.b32.xlu0 %v3680, 1
          %v3740 = vpop.permute.xlu0 %3739
          %3741 = vrot.lane.b32.xlu0 %v3681, 1
          %v3742 = vpop.permute.xlu0 %3741
          %3743 = vrot.lane.b32.xlu0 %v3682, 1
          %v3744 = vpop.permute.xlu0 %3743
          %3745 = vrot.lane.b32.xlu0 %v3683, 1
          %v3746 = vpop.permute.xlu0 %3745
          %3747 = vrot.lane.b32.xlu0 %v3684, 1
          %v3748 = vpop.permute.xlu0 %3747
          %3749 = vrot.lane.b32.xlu0 %v3685, 1
          %v3750 = vpop.permute.xlu0 %3749
          %3751 = vrot.lane.b32.xlu0 %v3686, 1
          %v3752 = vpop.permute.xlu0 %3751
          %3753 = vrot.lane.b32.xlu0 %v3687, 1
          %v3754 = vpop.permute.xlu0 %3753
          %3755 = vrot.lane.b32.xlu0 %v3688, 1
          %v3756 = vpop.permute.xlu0 %3755
          %v3757 = vsel %vm2020, %v3734, %v3736
          %v3758 = vsel %vm2020, %v3736, %v3738
          %v3759 = vsel %vm2020, %v3740, %v3742
          %v3760 = vsel %vm2020, %v3742, %v3744
          %v3761 = vsel %vm2020, %v3746, %v3748
          %v3762 = vsel %vm2020, %v3748, %v3750
          %v3763 = vsel %vm2020, %v3752, %v3754
          %v3764 = vsel %vm2020, %v3754, %v3756
          %v3774 = vsel %vm1466, %v3717, 0
          %v3777 = vsel %vm1466, %v3718, 0
          %v3780 = vsel %vm1466, %v3719, 0
          %v3783 = vsel %vm1466, %v3720, 0
          %3785 = vmatprep.subr.bf16.mxu0 %v3758
          %3786 = vmatpush1.bf16.msra.mxu0 %v3757
          %3787 = vmatprep.subr.bf16.mxu0 %v3760
          %3788 = vmatpush1.bf16.msra.mxu0 %v3759
          %3789 = vmatprep.subr.bf16.mxu0 %v3762
          %3790 = vmatpush1.bf16.msra.mxu0 %v3761
          %3791 = vmatprep.subr.bf16.mxu0 %v3764
          %3792 = vmatpush1.bf16.msra.mxu0 %v3763
          %3793 = vmatprep.subr.bf16.mxu0 0
          %3794 = vmatpush1.bf16.msra.mxu0 0
          %3795 = vmatprep.subr.bf16.mxu0 0
          %3796 = vmatpush1.bf16.msra.mxu0 0
          %3797 = vmatprep.subr.bf16.mxu0 0
          %3798 = vmatpush1.bf16.msra.mxu0 0
          %3799 = vmatprep.subr.bf16.mxu0 0
          %3800 = vmatpush1.bf16.msra.mxu0 0
          %3801 = vmatprep.subr.bf16.mxu0 0
          %3802 = vmatpush1.bf16.msra.mxu0 0
          %3803 = vmatprep.subr.bf16.mxu0 0
          %3804 = vmatpush1.bf16.msra.mxu0 0
          %3805 = vmatprep.subr.bf16.mxu0 0
          %3806 = vmatpush1.bf16.msra.mxu0 0
          %3807 = vmatprep.subr.bf16.mxu0 0
          %3808 = vmatpush1.bf16.msra.mxu0 0
          %3809 = vmatprep.subr.bf16.mxu0 0
          %3810 = vmatpush1.bf16.msra.mxu0 0
          %3811 = vmatprep.subr.bf16.mxu0 0
          %3812 = vmatpush1.bf16.msra.mxu0 0
          %3813 = vmatprep.subr.bf16.mxu0 0
          %3814 = vmatpush1.bf16.msra.mxu0 0
          %3815 = vmatprep.subr.bf16.mxu0 0
          %3816 = vmatpush1.bf16.msra.mxu0 0
          %3817 = vmatprep.mubr.bf16.mxu0 0
          %3818 = vmatmul.mubr.bf16.gmra.mrb[0].mxu0 %v3774
          %v3819 = vpop.f32.mrb[0].mxu0
          %v3820 = vadd.f32 0.0, %v3819
          %v3821 = vpop.f32.mrb[0].mxu0
          %v3822 = vadd.f32 0.0, %v3821
          %v3823 = vpop.f32.mrb[0].mxu0
          %v3824 = vadd.f32 0.0, %v3823
          %v3825 = vpop.f32.mrb[0].mxu0
          %v3826 = vadd.f32 0.0, %v3825
          %3827 = vmatprep.mubr.bf16.mxu0 0
          %3828 = vmatmul.mubr.bf16.gmra.mrb[0].mxu0 %v3777
          %v3829 = vpop.f32.mrb[0].mxu0
          %v3830 = vadd.f32 0.0, %v3829
          %v3831 = vpop.f32.mrb[0].mxu0
          %v3832 = vadd.f32 0.0, %v3831
          %v3833 = vpop.f32.mrb[0].mxu0
          %v3834 = vadd.f32 0.0, %v3833
          %v3835 = vpop.f32.mrb[0].mxu0
          %v3836 = vadd.f32 0.0, %v3835
          %3837 = vmatprep.mubr.bf16.mxu0 0
          %3838 = vmatmul.mubr.bf16.gmra.mrb[0].mxu0 %v3780
          %v3839 = vpop.f32.mrb[0].mxu0
          %v3840 = vadd.f32 0.0, %v3839
          %v3841 = vpop.f32.mrb[0].mxu0
          %v3842 = vadd.f32 0.0, %v3841
          %v3843 = vpop.f32.mrb[0].mxu0
          %v3844 = vadd.f32 0.0, %v3843
          %v3845 = vpop.f32.mrb[0].mxu0
          %v3846 = vadd.f32 0.0, %v3845
          %3847 = vmatprep.mubr.bf16.mxu0 0
          %3848 = vmatmul.mubr.bf16.gmra.mrb[0].mxu0 %v3783
          %v3849 = vpop.f32.mrb[0].mxu0
          %v3850 = vadd.f32 0.0, %v3849
          %v3851 = vpop.f32.mrb[0].mxu0
          %v3852 = vadd.f32 0.0, %v3851
          %v3853 = vpop.f32.mrb[0].mxu0
          %v3854 = vadd.f32 0.0, %v3853
          %v3855 = vpop.f32.mrb[0].mxu0
          %v3856 = vadd.f32 0.0, %v3855
          %3857 = vdwg.mxu0
          %v3858 = vadd.f32 %v3661, %v3820
          %v3859 = vadd.f32 %v3662, %v3822
          %v3860 = vadd.f32 %v3663, %v3824
          %v3861 = vadd.f32 %v3664, %v3826
          %v3862 = vadd.f32 %v3665, %v3830
          %v3863 = vadd.f32 %v3666, %v3832
          %v3864 = vadd.f32 %v3667, %v3834
          %v3865 = vadd.f32 %v3668, %v3836
          %v3866 = vadd.f32 %v3669, %v3840
          %v3867 = vadd.f32 %v3670, %v3842
          %v3868 = vadd.f32 %v3671, %v3844
          %v3869 = vadd.f32 %v3672, %v3846
          %v3870 = vadd.f32 %v3673, %v3850
          %v3871 = vadd.f32 %v3674, %v3852
          %v3872 = vadd.f32 %v3675, %v3854
          %v3873 = vadd.f32 %v3676, %v3856
          %s3874 = sadd.s32 %s3142, 4
          %s3875 = smul.u32 %s3874, 8
          %s3876 = smul.addr %s3875, 4
          %s3877 = scalar_lea.vmem %s2, %s3876
          %v3878 = vld [vmem:[%s3877] sm:$0xf]
          %v3879 = vld [vmem:[%s3877 + $0x4] sm:$0xf]
          %v3880 = vld [vmem:[%s3877 + $0x8] sm:$0xf]
          %v3881 = vld [vmem:[%s3877 + $0xc] sm:$0xf]
          %v3882 = vld [vmem:[%s3877 + $0x10] sm:$0xf]
          %v3883 = vld [vmem:[%s3877 + $0x14] sm:$0xf]
          %v3884 = vld [vmem:[%s3877 + $0x18] sm:$0xf]
          %v3885 = vld [vmem:[%s3877 + $0x1c] sm:$0xf]
          %v3894 = vunpack.c.l.b16 %v3878
          %v3895 = vunpack.c.l.b16 %v3879
          %v3896 = vunpack.c.l.b16 %v3880
          %v3897 = vunpack.c.l.b16 %v3881
          %v3898 = vunpack.c.l.b16 %v3882
          %v3899 = vunpack.c.l.b16 %v3883
          %v3900 = vunpack.c.l.b16 %v3884
          %v3901 = vunpack.c.l.b16 %v3885
          %v3902 = vpack.c.b16 %v3895, %v3894
          %v3903 = vpack.c.b16 %v3897, %v3896
          %v3904 = vpack.c.b16 %v3899, %v3898
          %v3905 = vpack.c.b16 %v3901, %v3900
          %v3907 = vsel %vm1466, %v3902, 0
          %v3910 = vsel %vm1466, %v3903, 0
          %v3913 = vsel %vm1466, %v3904, 0
          %v3916 = vsel %vm1466, %v3905, 0
          %3918 = vmatprep.subr.bf16.mxu0 %v3120
          %3919 = vmatpush1.bf16.msra.mxu0 %v3119
          %3920 = vmatprep.subr.bf16.mxu0 %v3123
          %3921 = vmatpush1.bf16.msra.mxu0 %v3122
          %3922 = vmatprep.subr.bf16.mxu0 %v3126
          %3923 = vmatpush1.bf16.msra.mxu0 %v3125
          %3924 = vmatprep.subr.bf16.mxu0 %v3129
          %3925 = vmatpush1.bf16.msra.mxu0 %v3128
          %3926 = vmatprep.subr.bf16.mxu0 0
          %3927 = vmatpush1.bf16.msra.mxu0 0
          %3928 = vmatprep.subr.bf16.mxu0 0
          %3929 = vmatpush1.bf16.msra.mxu0 0
          %3930 = vmatprep.subr.bf16.mxu0 0
          %3931 = vmatpush1.bf16.msra.mxu0 0
          %3932 = vmatprep.subr.bf16.mxu0 0
          %3933 = vmatpush1.bf16.msra.mxu0 0
          %3934 = vmatprep.subr.bf16.mxu0 0
          %3935 = vmatpush1.bf16.msra.mxu0 0
          %3936 = vmatprep.subr.bf16.mxu0 0
          %3937 = vmatpush1.bf16.msra.mxu0 0
          %3938 = vmatprep.subr.bf16.mxu0 0
          %3939 = vmatpush1.bf16.msra.mxu0 0
          %3940 = vmatprep.subr.bf16.mxu0 0
          %3941 = vmatpush1.bf16.msra.mxu0 0
          %3942 = vmatprep.subr.bf16.mxu0 0
          %3943 = vmatpush1.bf16.msra.mxu0 0
          %3944 = vmatprep.subr.bf16.mxu0 0
          %3945 = vmatpush1.bf16.msra.mxu0 0
          %3946 = vmatprep.subr.bf16.mxu0 0
          %3947 = vmatpush1.bf16.msra.mxu0 0
          %3948 = vmatprep.subr.bf16.mxu0 0
          %3949 = vmatpush1.bf16.msra.mxu0 0
          %3950 = vmatprep.mubr.bf16.mxu0 0
          %3951 = vmatmul.mubr.bf16.gmra.mrb[0].mxu0 %v3907
          %v3952 = vpop.f32.mrb[0].mxu0
          %v3953 = vadd.f32 0.0, %v3952
          %v3954 = vpop.f32.mrb[0].mxu0
          %v3955 = vadd.f32 0.0, %v3954
          %v3956 = vpop.f32.mrb[0].mxu0
          %v3957 = vadd.f32 0.0, %v3956
          %v3958 = vpop.f32.mrb[0].mxu0
          %v3959 = vadd.f32 0.0, %v3958
          %3960 = vmatprep.mubr.bf16.mxu0 0
          %3961 = vmatmul.mubr.bf16.gmra.mrb[0].mxu0 %v3910
          %v3962 = vpop.f32.mrb[0].mxu0
          %v3963 = vadd.f32 0.0, %v3962
          %v3964 = vpop.f32.mrb[0].mxu0
          %v3965 = vadd.f32 0.0, %v3964
          %v3966 = vpop.f32.mrb[0].mxu0
          %v3967 = vadd.f32 0.0, %v3966
          %v3968 = vpop.f32.mrb[0].mxu0
          %v3969 = vadd.f32 0.0, %v3968
          %3970 = vmatprep.mubr.bf16.mxu0 0
          %3971 = vmatmul.mubr.bf16.gmra.mrb[0].mxu0 %v3913
          %v3972 = vpop.f32.mrb[0].mxu0
          %v3973 = vadd.f32 0.0, %v3972
          %v3974 = vpop.f32.mrb[0].mxu0
          %v3975 = vadd.f32 0.0, %v3974
          %v3976 = vpop.f32.mrb[0].mxu0
          %v3977 = vadd.f32 0.0, %v3976
          %v3978 = vpop.f32.mrb[0].mxu0
          %v3979 = vadd.f32 0.0, %v3978
          %3980 = vmatprep.mubr.bf16.mxu0 0
          %3981 = vmatmul.mubr.bf16.gmra.mrb[0].mxu0 %v3916
          %v3982 = vpop.f32.mrb[0].mxu0
          %v3983 = vadd.f32 0.0, %v3982
          %v3984 = vpop.f32.mrb[0].mxu0
          %v3985 = vadd.f32 0.0, %v3984
          %v3986 = vpop.f32.mrb[0].mxu0
          %v3987 = vadd.f32 0.0, %v3986
          %v3988 = vpop.f32.mrb[0].mxu0
          %v3989 = vadd.f32 0.0, %v3988
          %3990 = vdwg.mxu0
          %v3991 = vadd.f32 %v3858, %v3953
          %v3992 = vadd.f32 %v3859, %v3955
          %v3993 = vadd.f32 %v3860, %v3957
          %v3994 = vadd.f32 %v3861, %v3959
          %v3995 = vadd.f32 %v3862, %v3963
          %v3996 = vadd.f32 %v3863, %v3965
          %v3997 = vadd.f32 %v3864, %v3967
          %v3998 = vadd.f32 %v3865, %v3969
          %v3999 = vadd.f32 %v3866, %v3973
          %v4000 = vadd.f32 %v3867, %v3975
          %v4001 = vadd.f32 %v3868, %v3977
          %v4002 = vadd.f32 %v3869, %v3979
          %v4003 = vadd.f32 %v3870, %v3983
          %v4004 = vadd.f32 %v3871, %v3985
          %v4005 = vadd.f32 %v3872, %v3987
          %v4006 = vadd.f32 %v3873, %v3989
          %v4007 = vld [vmem:[#allocation3 + $0x8] sm:$0xff]
          %v4008 = vld [vmem:[#allocation3 + $0x10] sm:$0xff]
          %v4009 = vld [vmem:[#allocation3 + $0x18] sm:$0xff]
          %v4010 = vld [vmem:[#allocation3 + $0x28] sm:$0xff]
          %v4011 = vld [vmem:[#allocation3 + $0x30] sm:$0xff]
          %v4012 = vld [vmem:[#allocation3 + $0x38] sm:$0xff]
          %v4013 = vld [vmem:[#allocation3 + $0x48] sm:$0xff]
          %v4014 = vld [vmem:[#allocation3 + $0x50] sm:$0xff]
          %v4015 = vld [vmem:[#allocation3 + $0x58] sm:$0xff]
          %v4016 = vld [vmem:[#allocation3 + $0x68] sm:$0xff]
          %v4017 = vld [vmem:[#allocation3 + $0x70] sm:$0xff]
          %v4018 = vld [vmem:[#allocation3 + $0x78] sm:$0xff]
          %v4019 = vsel %vm2288, %v4007, 0
          %v4020 = vsel %vm2289, %v4008, 0
          %v4021 = vsel %vm2290, %v4009, 0
          %v4022 = vsel %vm2288, %v4010, 0
          %v4023 = vsel %vm2289, %v4011, 0
          %v4024 = vsel %vm2290, %v4012, 0
          %v4025 = vsel %vm2288, %v4013, 0
          %v4026 = vsel %vm2289, %v4014, 0
          %v4027 = vsel %vm2290, %v4015, 0
          %v4028 = vsel %vm2288, %v4016, 0
          %v4029 = vsel %vm2289, %v4017, 0
          %v4030 = vsel %vm2290, %v4018, 0
          %s4031 = sadd.s32 %s3142, 5
          %s4032 = smul.u32 %s4031, 8
          %s4033 = smul.addr %s4032, 4
          %s4034 = scalar_lea.vmem %s2, %s4033
          %v4035 = vld [vmem:[%s4034] sm:$0xf]
          %v4036 = vld [vmem:[%s4034 + $0x4] sm:$0xf]
          %v4037 = vld [vmem:[%s4034 + $0x8] sm:$0xf]
          %v4038 = vld [vmem:[%s4034 + $0xc] sm:$0xf]
          %v4039 = vld [vmem:[%s4034 + $0x10] sm:$0xf]
          %v4040 = vld [vmem:[%s4034 + $0x14] sm:$0xf]
          %v4041 = vld [vmem:[%s4034 + $0x18] sm:$0xf]
          %v4042 = vld [vmem:[%s4034 + $0x1c] sm:$0xf]
          %v4051 = vunpack.c.l.b16 %v4035
          %v4052 = vunpack.c.l.b16 %v4036
          %v4053 = vunpack.c.l.b16 %v4037
          %v4054 = vunpack.c.l.b16 %v4038
          %v4055 = vunpack.c.l.b16 %v4039
          %v4056 = vunpack.c.l.b16 %v4040
          %v4057 = vunpack.c.l.b16 %v4041
          %v4058 = vunpack.c.l.b16 %v4042
          %v4059 = vpack.c.b16 %v4052, %v4051
          %v4060 = vpack.c.b16 %v4054, %v4053
          %v4061 = vpack.c.b16 %v4056, %v4055
          %v4062 = vpack.c.b16 %v4058, %v4057
          %4075 = vrot.lane.b32.xlu0 %v4019, 127
          %v4076 = vpop.permute.xlu0 %4075
          %4077 = vrot.lane.b32.xlu0 %v4020, 127
          %v4078 = vpop.permute.xlu0 %4077
          %4079 = vrot.lane.b32.xlu0 %v4021, 127
          %v4080 = vpop.permute.xlu0 %4079
          %4081 = vrot.lane.b32.xlu0 %v4022, 127
          %v4082 = vpop.permute.xlu0 %4081
          %4083 = vrot.lane.b32.xlu0 %v4023, 127
          %v4084 = vpop.permute.xlu0 %4083
          %4085 = vrot.lane.b32.xlu0 %v4024, 127
          %v4086 = vpop.permute.xlu0 %4085
          %4087 = vrot.lane.b32.xlu0 %v4025, 127
          %v4088 = vpop.permute.xlu0 %4087
          %4089 = vrot.lane.b32.xlu0 %v4026, 127
          %v4090 = vpop.permute.xlu0 %4089
          %4091 = vrot.lane.b32.xlu0 %v4027, 127
          %v4092 = vpop.permute.xlu0 %4091
          %4093 = vrot.lane.b32.xlu0 %v4028, 127
          %v4094 = vpop.permute.xlu0 %4093
          %4095 = vrot.lane.b32.xlu0 %v4029, 127
          %v4096 = vpop.permute.xlu0 %4095
          %4097 = vrot.lane.b32.xlu0 %v4030, 127
          %v4098 = vpop.permute.xlu0 %4097
          %v4099 = vsel %vm1935, %v4076, %v4078
          %v4100 = vsel %vm1935, %v4078, %v4080
          %v4101 = vsel %vm1935, %v4082, %v4084
          %v4102 = vsel %vm1935, %v4084, %v4086
          %v4103 = vsel %vm1935, %v4088, %v4090
          %v4104 = vsel %vm1935, %v4090, %v4092
          %v4105 = vsel %vm1935, %v4094, %v4096
          %v4106 = vsel %vm1935, %v4096, %v4098
          %v4116 = vsel %vm1466, %v4059, 0
          %v4119 = vsel %vm1466, %v4060, 0
          %v4122 = vsel %vm1466, %v4061, 0
          %v4125 = vsel %vm1466, %v4062, 0
          %4127 = vmatprep.subr.bf16.mxu0 %v4100
          %4128 = vmatpush1.bf16.msra.mxu0 %v4099
          %4129 = vmatprep.subr.bf16.mxu0 %v4102
          %4130 = vmatpush1.bf16.msra.mxu0 %v4101
          %4131 = vmatprep.subr.bf16.mxu0 %v4104
          %4132 = vmatpush1.bf16.msra.mxu0 %v4103
          %4133 = vmatprep.subr.bf16.mxu0 %v4106
          %4134 = vmatpush1.bf16.msra.mxu0 %v4105
          %4135 = vmatprep.subr.bf16.mxu0 0
          %4136 = vmatpush1.bf16.msra.mxu0 0
          %4137 = vmatprep.subr.bf16.mxu0 0
          %4138 = vmatpush1.bf16.msra.mxu0 0
          %4139 = vmatprep.subr.bf16.mxu0 0
          %4140 = vmatpush1.bf16.msra.mxu0 0
          %4141 = vmatprep.subr.bf16.mxu0 0
          %4142 = vmatpush1.bf16.msra.mxu0 0
          %4143 = vmatprep.subr.bf16.mxu0 0
          %4144 = vmatpush1.bf16.msra.mxu0 0
          %4145 = vmatprep.subr.bf16.mxu0 0
          %4146 = vmatpush1.bf16.msra.mxu0 0
          %4147 = vmatprep.subr.bf16.mxu0 0
          %4148 = vmatpush1.bf16.msra.mxu0 0
          %4149 = vmatprep.subr.bf16.mxu0 0
          %4150 = vmatpush1.bf16.msra.mxu0 0
          %4151 = vmatprep.subr.bf16.mxu0 0
          %4152 = vmatpush1.bf16.msra.mxu0 0
          %4153 = vmatprep.subr.bf16.mxu0 0
          %4154 = vmatpush1.bf16.msra.mxu0 0
          %4155 = vmatprep.subr.bf16.mxu0 0
          %4156 = vmatpush1.bf16.msra.mxu0 0
          %4157 = vmatprep.subr.bf16.mxu0 0
          %4158 = vmatpush1.bf16.msra.mxu0 0
          %4159 = vmatprep.mubr.bf16.mxu0 0
          %4160 = vmatmul.mubr.bf16.gmra.mrb[0].mxu0 %v4116
          %v4161 = vpop.f32.mrb[0].mxu0
          %v4162 = vadd.f32 0.0, %v4161
          %v4163 = vpop.f32.mrb[0].mxu0
          %v4164 = vadd.f32 0.0, %v4163
          %v4165 = vpop.f32.mrb[0].mxu0
          %v4166 = vadd.f32 0.0, %v4165
          %v4167 = vpop.f32.mrb[0].mxu0
          %v4168 = vadd.f32 0.0, %v4167
          %4169 = vmatprep.mubr.bf16.mxu0 0
          %4170 = vmatmul.mubr.bf16.gmra.mrb[0].mxu0 %v4119
          %v4171 = vpop.f32.mrb[0].mxu0
          %v4172 = vadd.f32 0.0, %v4171
          %v4173 = vpop.f32.mrb[0].mxu0
          %v4174 = vadd.f32 0.0, %v4173
          %v4175 = vpop.f32.mrb[0].mxu0
          %v4176 = vadd.f32 0.0, %v4175
          %v4177 = vpop.f32.mrb[0].mxu0
          %v4178 = vadd.f32 0.0, %v4177
          %4179 = vmatprep.mubr.bf16.mxu0 0
          %4180 = vmatmul.mubr.bf16.gmra.mrb[0].mxu0 %v4122
          %v4181 = vpop.f32.mrb[0].mxu0
          %v4182 = vadd.f32 0.0, %v4181
          %v4183 = vpop.f32.mrb[0].mxu0
          %v4184 = vadd.f32 0.0, %v4183
          %v4185 = vpop.f32.mrb[0].mxu0
          %v4186 = vadd.f32 0.0, %v4185
          %v4187 = vpop.f32.mrb[0].mxu0
          %v4188 = vadd.f32 0.0, %v4187
          %4189 = vmatprep.mubr.bf16.mxu0 0
          %4190 = vmatmul.mubr.bf16.gmra.mrb[0].mxu0 %v4125
          %v4191 = vpop.f32.mrb[0].mxu0
          %v4192 = vadd.f32 0.0, %v4191
          %v4193 = vpop.f32.mrb[0].mxu0
          %v4194 = vadd.f32 0.0, %v4193
          %v4195 = vpop.f32.mrb[0].mxu0
          %v4196 = vadd.f32 0.0, %v4195
          %v4197 = vpop.f32.mrb[0].mxu0
          %v4198 = vadd.f32 0.0, %v4197
          %4199 = vdwg.mxu0
          %v4200 = vadd.f32 %v3991, %v4162
          %v4201 = vadd.f32 %v3992, %v4164
          %v4202 = vadd.f32 %v3993, %v4166
          %v4203 = vadd.f32 %v3994, %v4168
          %v4204 = vadd.f32 %v3995, %v4172
          %v4205 = vadd.f32 %v3996, %v4174
          %v4206 = vadd.f32 %v3997, %v4176
          %v4207 = vadd.f32 %v3998, %v4178
          %v4208 = vadd.f32 %v3999, %v4182
          %v4209 = vadd.f32 %v4000, %v4184
          %v4210 = vadd.f32 %v4001, %v4186
          %v4211 = vadd.f32 %v4002, %v4188
          %v4212 = vadd.f32 %v4003, %v4192
          %v4213 = vadd.f32 %v4004, %v4194
          %v4214 = vadd.f32 %v4005, %v4196
          %v4215 = vadd.f32 %v4006, %v4198
          %v4216 = vsel %vm2493, %v4007, 0
          %v4217 = vsel %vm2494, %v4008, 0
          %v4218 = vsel %vm2495, %v4009, 0
          %v4219 = vsel %vm2493, %v4010, 0
          %v4220 = vsel %vm2494, %v4011, 0
          %v4221 = vsel %vm2495, %v4012, 0
          %v4222 = vsel %vm2493, %v4013, 0
          %v4223 = vsel %vm2494, %v4014, 0
          %v4224 = vsel %vm2495, %v4015, 0
          %v4225 = vsel %vm2493, %v4016, 0
          %v4226 = vsel %vm2494, %v4017, 0
          %v4227 = vsel %vm2495, %v4018, 0
          %s4228 = sadd.s32 %s3142, 6
          %s4229 = smul.u32 %s4228, 8
          %s4230 = smul.addr %s4229, 4
          %s4231 = scalar_lea.vmem %s2, %s4230
          %v4232 = vld [vmem:[%s4231] sm:$0xf]
          %v4233 = vld [vmem:[%s4231 + $0x4] sm:$0xf]
          %v4234 = vld [vmem:[%s4231 + $0x8] sm:$0xf]
          %v4235 = vld [vmem:[%s4231 + $0xc] sm:$0xf]
          %v4236 = vld [vmem:[%s4231 + $0x10] sm:$0xf]
          %v4237 = vld [vmem:[%s4231 + $0x14] sm:$0xf]
          %v4238 = vld [vmem:[%s4231 + $0x18] sm:$0xf]
          %v4239 = vld [vmem:[%s4231 + $0x1c] sm:$0xf]
          %v4248 = vunpack.c.l.b16 %v4232
          %v4249 = vunpack.c.l.b16 %v4233
          %v4250 = vunpack.c.l.b16 %v4234
          %v4251 = vunpack.c.l.b16 %v4235
          %v4252 = vunpack.c.l.b16 %v4236
          %v4253 = vunpack.c.l.b16 %v4237
          %v4254 = vunpack.c.l.b16 %v4238
          %v4255 = vunpack.c.l.b16 %v4239
          %v4256 = vpack.c.b16 %v4249, %v4248
          %v4257 = vpack.c.b16 %v4251, %v4250
          %v4258 = vpack.c.b16 %v4253, %v4252
          %v4259 = vpack.c.b16 %v4255, %v4254
          %4272 = vrot.lane.b32.xlu0 %v4216, 113
          %v4273 = vpop.permute.xlu0 %4272
          %4274 = vrot.lane.b32.xlu0 %v4217, 113
          %v4275 = vpop.permute.xlu0 %4274
          %4276 = vrot.lane.b32.xlu0 %v4218, 113
          %v4277 = vpop.permute.xlu0 %4276
          %4278 = vrot.lane.b32.xlu0 %v4219, 113
          %v4279 = vpop.permute.xlu0 %4278
          %4280 = vrot.lane.b32.xlu0 %v4220, 113
          %v4281 = vpop.permute.xlu0 %4280
          %4282 = vrot.lane.b32.xlu0 %v4221, 113
          %v4283 = vpop.permute.xlu0 %4282
          %4284 = vrot.lane.b32.xlu0 %v4222, 113
          %v4285 = vpop.permute.xlu0 %4284
          %4286 = vrot.lane.b32.xlu0 %v4223, 113
          %v4287 = vpop.permute.xlu0 %4286
          %4288 = vrot.lane.b32.xlu0 %v4224, 113
          %v4289 = vpop.permute.xlu0 %4288
          %4290 = vrot.lane.b32.xlu0 %v4225, 113
          %v4291 = vpop.permute.xlu0 %4290
          %4292 = vrot.lane.b32.xlu0 %v4226, 113
          %v4293 = vpop.permute.xlu0 %4292
          %4294 = vrot.lane.b32.xlu0 %v4227, 113
          %v4295 = vpop.permute.xlu0 %4294
          %v4296 = vsel %vm1728, %v4273, %v4275
          %v4297 = vsel %vm1728, %v4275, %v4277
          %v4298 = vsel %vm1728, %v4279, %v4281
          %v4299 = vsel %vm1728, %v4281, %v4283
          %v4300 = vsel %vm1728, %v4285, %v4287
          %v4301 = vsel %vm1728, %v4287, %v4289
          %v4302 = vsel %vm1728, %v4291, %v4293
          %v4303 = vsel %vm1728, %v4293, %v4295
          %v4313 = vsel %vm1466, %v4256, 0
          %v4316 = vsel %vm1466, %v4257, 0
          %v4319 = vsel %vm1466, %v4258, 0
          %v4322 = vsel %vm1466, %v4259, 0
          %4324 = vmatprep.subr.bf16.mxu0 %v4297
          %4325 = vmatpush1.bf16.msra.mxu0 %v4296
          %4326 = vmatprep.subr.bf16.mxu0 %v4299
          %4327 = vmatpush1.bf16.msra.mxu0 %v4298
          %4328 = vmatprep.subr.bf16.mxu0 %v4301
          %4329 = vmatpush1.bf16.msra.mxu0 %v4300
          %4330 = vmatprep.subr.bf16.mxu0 %v4303
          %4331 = vmatpush1.bf16.msra.mxu0 %v4302
          %4332 = vmatprep.subr.bf16.mxu0 0
          %4333 = vmatpush1.bf16.msra.mxu0 0
          %4334 = vmatprep.subr.bf16.mxu0 0
          %4335 = vmatpush1.bf16.msra.mxu0 0
          %4336 = vmatprep.subr.bf16.mxu0 0
          %4337 = vmatpush1.bf16.msra.mxu0 0
          %4338 = vmatprep.subr.bf16.mxu0 0
          %4339 = vmatpush1.bf16.msra.mxu0 0
          %4340 = vmatprep.subr.bf16.mxu0 0
          %4341 = vmatpush1.bf16.msra.mxu0 0
          %4342 = vmatprep.subr.bf16.mxu0 0
          %4343 = vmatpush1.bf16.msra.mxu0 0
          %4344 = vmatprep.subr.bf16.mxu0 0
          %4345 = vmatpush1.bf16.msra.mxu0 0
          %4346 = vmatprep.subr.bf16.mxu0 0
          %4347 = vmatpush1.bf16.msra.mxu0 0
          %4348 = vmatprep.subr.bf16.mxu0 0
          %4349 = vmatpush1.bf16.msra.mxu0 0
          %4350 = vmatprep.subr.bf16.mxu0 0
          %4351 = vmatpush1.bf16.msra.mxu0 0
          %4352 = vmatprep.subr.bf16.mxu0 0
          %4353 = vmatpush1.bf16.msra.mxu0 0
          %4354 = vmatprep.subr.bf16.mxu0 0
          %4355 = vmatpush1.bf16.msra.mxu0 0
          %4356 = vmatprep.mubr.bf16.mxu0 0
          %4357 = vmatmul.mubr.bf16.gmra.mrb[0].mxu0 %v4313
          %v4358 = vpop.f32.mrb[0].mxu0
          %v4359 = vadd.f32 0.0, %v4358
          %v4360 = vpop.f32.mrb[0].mxu0
          %v4361 = vadd.f32 0.0, %v4360
          %v4362 = vpop.f32.mrb[0].mxu0
          %v4363 = vadd.f32 0.0, %v4362
          %v4364 = vpop.f32.mrb[0].mxu0
          %v4365 = vadd.f32 0.0, %v4364
          %4366 = vmatprep.mubr.bf16.mxu0 0
          %4367 = vmatmul.mubr.bf16.gmra.mrb[0].mxu0 %v4316
          %v4368 = vpop.f32.mrb[0].mxu0
          %v4369 = vadd.f32 0.0, %v4368
          %v4370 = vpop.f32.mrb[0].mxu0
          %v4371 = vadd.f32 0.0, %v4370
          %v4372 = vpop.f32.mrb[0].mxu0
          %v4373 = vadd.f32 0.0, %v4372
          %v4374 = vpop.f32.mrb[0].mxu0
          %v4375 = vadd.f32 0.0, %v4374
          %4376 = vmatprep.mubr.bf16.mxu0 0
          %4377 = vmatmul.mubr.bf16.gmra.mrb[0].mxu0 %v4319
          %v4378 = vpop.f32.mrb[0].mxu0
          %v4379 = vadd.f32 0.0, %v4378
          %v4380 = vpop.f32.mrb[0].mxu0
          %v4381 = vadd.f32 0.0, %v4380
          %v4382 = vpop.f32.mrb[0].mxu0
          %v4383 = vadd.f32 0.0, %v4382
          %v4384 = vpop.f32.mrb[0].mxu0
          %v4385 = vadd.f32 0.0, %v4384
          %4386 = vmatprep.mubr.bf16.mxu0 0
          %4387 = vmatmul.mubr.bf16.gmra.mrb[0].mxu0 %v4322
          %v4388 = vpop.f32.mrb[0].mxu0
          %v4389 = vadd.f32 0.0, %v4388
          %v4390 = vpop.f32.mrb[0].mxu0
          %v4391 = vadd.f32 0.0, %v4390
          %v4392 = vpop.f32.mrb[0].mxu0
          %v4393 = vadd.f32 0.0, %v4392
          %v4394 = vpop.f32.mrb[0].mxu0
          %v4395 = vadd.f32 0.0, %v4394
          %4396 = vdwg.mxu0
          %v4397 = vadd.f32 %v4200, %v4359
          %v4398 = vadd.f32 %v4201, %v4361
          %v4399 = vadd.f32 %v4202, %v4363
          %v4400 = vadd.f32 %v4203, %v4365
          %v4401 = vadd.f32 %v4204, %v4369
          %v4402 = vadd.f32 %v4205, %v4371
          %v4403 = vadd.f32 %v4206, %v4373
          %v4404 = vadd.f32 %v4207, %v4375
          %v4405 = vadd.f32 %v4208, %v4379
          %v4406 = vadd.f32 %v4209, %v4381
          %v4407 = vadd.f32 %v4210, %v4383
          %v4408 = vadd.f32 %v4211, %v4385
          %v4409 = vadd.f32 %v4212, %v4389
          %v4410 = vadd.f32 %v4213, %v4391
          %v4411 = vadd.f32 %v4214, %v4393
          %v4412 = vadd.f32 %v4215, %v4395
          %s4413 = sadd.s32 %s3142, 7
          %s4414 = smul.u32 %s4413, 8
          %s4415 = smul.addr %s4414, 4
          %s4416 = scalar_lea.vmem %s2, %s4415
          %v4417 = vld [vmem:[%s4416] sm:$0xf]
          %v4418 = vld [vmem:[%s4416 + $0x4] sm:$0xf]
          %v4419 = vld [vmem:[%s4416 + $0x8] sm:$0xf]
          %v4420 = vld [vmem:[%s4416 + $0xc] sm:$0xf]
          %v4421 = vld [vmem:[%s4416 + $0x10] sm:$0xf]
          %v4422 = vld [vmem:[%s4416 + $0x14] sm:$0xf]
          %v4423 = vld [vmem:[%s4416 + $0x18] sm:$0xf]
          %v4424 = vld [vmem:[%s4416 + $0x1c] sm:$0xf]
          %v4433 = vunpack.c.l.b16 %v4417
          %v4434 = vunpack.c.l.b16 %v4418
          %v4435 = vunpack.c.l.b16 %v4419
          %v4436 = vunpack.c.l.b16 %v4420
          %v4437 = vunpack.c.l.b16 %v4421
          %v4438 = vunpack.c.l.b16 %v4422
          %v4439 = vunpack.c.l.b16 %v4423
          %v4440 = vunpack.c.l.b16 %v4424
          %v4441 = vpack.c.b16 %v4434, %v4433
          %v4442 = vpack.c.b16 %v4436, %v4435
          %v4443 = vpack.c.b16 %v4438, %v4437
          %v4444 = vpack.c.b16 %v4440, %v4439
          %4457 = vrot.lane.b32.xlu0 %v4007, 112
          %v4458 = vpop.permute.xlu0 %4457
          %4459 = vrot.lane.b32.xlu0 %v4008, 112
          %v4460 = vpop.permute.xlu0 %4459
          %4461 = vrot.lane.b32.xlu0 %v4009, 112
          %v4462 = vpop.permute.xlu0 %4461
          %4463 = vrot.lane.b32.xlu0 %v4010, 112
          %v4464 = vpop.permute.xlu0 %4463
          %4465 = vrot.lane.b32.xlu0 %v4011, 112
          %v4466 = vpop.permute.xlu0 %4465
          %4467 = vrot.lane.b32.xlu0 %v4012, 112
          %v4468 = vpop.permute.xlu0 %4467
          %4469 = vrot.lane.b32.xlu0 %v4013, 112
          %v4470 = vpop.permute.xlu0 %4469
          %4471 = vrot.lane.b32.xlu0 %v4014, 112
          %v4472 = vpop.permute.xlu0 %4471
          %4473 = vrot.lane.b32.xlu0 %v4015, 112
          %v4474 = vpop.permute.xlu0 %4473
          %4475 = vrot.lane.b32.xlu0 %v4016, 112
          %v4476 = vpop.permute.xlu0 %4475
          %4477 = vrot.lane.b32.xlu0 %v4017, 112
          %v4478 = vpop.permute.xlu0 %4477
          %4479 = vrot.lane.b32.xlu0 %v4018, 112
          %v4480 = vpop.permute.xlu0 %4479
          %v4481 = vsel %vm2761, %v4458, %v4460
          %v4482 = vsel %vm2761, %v4460, %v4462
          %v4483 = vsel %vm2761, %v4464, %v4466
          %v4484 = vsel %vm2761, %v4466, %v4468
          %v4485 = vsel %vm2761, %v4470, %v4472
          %v4486 = vsel %vm2761, %v4472, %v4474
          %v4487 = vsel %vm2761, %v4476, %v4478
          %v4488 = vsel %vm2761, %v4478, %v4480
          %v4498 = vsel %vm1466, %v4441, 0
          %v4501 = vsel %vm1466, %v4442, 0
          %v4504 = vsel %vm1466, %v4443, 0
          %v4507 = vsel %vm1466, %v4444, 0
          %4509 = vmatprep.subr.bf16.mxu0 %v4482
          %4510 = vmatpush1.bf16.msra.mxu0 %v4481
          %4511 = vmatprep.subr.bf16.mxu0 %v4484
          %4512 = vmatpush1.bf16.msra.mxu0 %v4483
          %4513 = vmatprep.subr.bf16.mxu0 %v4486
          %4514 = vmatpush1.bf16.msra.mxu0 %v4485
          %4515 = vmatprep.subr.bf16.mxu0 %v4488
          %4516 = vmatpush1.bf16.msra.mxu0 %v4487
          %4517 = vmatprep.subr.bf16.mxu0 0
          %4518 = vmatpush1.bf16.msra.mxu0 0
          %4519 = vmatprep.subr.bf16.mxu0 0
          %4520 = vmatpush1.bf16.msra.mxu0 0
          %4521 = vmatprep.subr.bf16.mxu0 0
          %4522 = vmatpush1.bf16.msra.mxu0 0
          %4523 = vmatprep.subr.bf16.mxu0 0
          %4524 = vmatpush1.bf16.msra.mxu0 0
          %4525 = vmatprep.subr.bf16.mxu0 0
          %4526 = vmatpush1.bf16.msra.mxu0 0
          %4527 = vmatprep.subr.bf16.mxu0 0
          %4528 = vmatpush1.bf16.msra.mxu0 0
          %4529 = vmatprep.subr.bf16.mxu0 0
          %4530 = vmatpush1.bf16.msra.mxu0 0
          %4531 = vmatprep.subr.bf16.mxu0 0
          %4532 = vmatpush1.bf16.msra.mxu0 0
          %4533 = vmatprep.subr.bf16.mxu0 0
          %4534 = vmatpush1.bf16.msra.mxu0 0
          %4535 = vmatprep.subr.bf16.mxu0 0
          %4536 = vmatpush1.bf16.msra.mxu0 0
          %4537 = vmatprep.subr.bf16.mxu0 0
          %4538 = vmatpush1.bf16.msra.mxu0 0
          %4539 = vmatprep.subr.bf16.mxu0 0
          %4540 = vmatpush1.bf16.msra.mxu0 0
          %4541 = vmatprep.mubr.bf16.mxu0 0
          %4542 = vmatmul.mubr.bf16.gmra.mrb[0].mxu0 %v4498
          %v4543 = vpop.f32.mrb[0].mxu0
          %v4544 = vadd.f32 0.0, %v4543
          %v4545 = vpop.f32.mrb[0].mxu0
          %v4546 = vadd.f32 0.0, %v4545
          %v4547 = vpop.f32.mrb[0].mxu0
          %v4548 = vadd.f32 0.0, %v4547
          %v4549 = vpop.f32.mrb[0].mxu0
          %v4550 = vadd.f32 0.0, %v4549
          %4551 = vmatprep.mubr.bf16.mxu0 0
          %4552 = vmatmul.mubr.bf16.gmra.mrb[0].mxu0 %v4501
          %v4553 = vpop.f32.mrb[0].mxu0
          %v4554 = vadd.f32 0.0, %v4553
          %v4555 = vpop.f32.mrb[0].mxu0
          %v4556 = vadd.f32 0.0, %v4555
          %v4557 = vpop.f32.mrb[0].mxu0
          %v4558 = vadd.f32 0.0, %v4557
          %v4559 = vpop.f32.mrb[0].mxu0
          %v4560 = vadd.f32 0.0, %v4559
          %4561 = vmatprep.mubr.bf16.mxu0 0
          %4562 = vmatmul.mubr.bf16.gmra.mrb[0].mxu0 %v4504
          %v4563 = vpop.f32.mrb[0].mxu0
          %v4564 = vadd.f32 0.0, %v4563
          %v4565 = vpop.f32.mrb[0].mxu0
          %v4566 = vadd.f32 0.0, %v4565
          %v4567 = vpop.f32.mrb[0].mxu0
          %v4568 = vadd.f32 0.0, %v4567
          %v4569 = vpop.f32.mrb[0].mxu0
          %v4570 = vadd.f32 0.0, %v4569
          %4571 = vmatprep.mubr.bf16.mxu0 0
          %4572 = vmatmul.mubr.bf16.gmra.mrb[0].mxu0 %v4507
          %v4573 = vpop.f32.mrb[0].mxu0
          %v4574 = vadd.f32 0.0, %v4573
          %v4575 = vpop.f32.mrb[0].mxu0
          %v4576 = vadd.f32 0.0, %v4575
          %v4577 = vpop.f32.mrb[0].mxu0
          %v4578 = vadd.f32 0.0, %v4577
          %v4579 = vpop.f32.mrb[0].mxu0
          %v4580 = vadd.f32 0.0, %v4579
          %4581 = vdwg.mxu0
          %v4582 = vadd.f32 %v4397, %v4544
          %v4583 = vadd.f32 %v4398, %v4546
          %v4584 = vadd.f32 %v4399, %v4548
          %v4585 = vadd.f32 %v4400, %v4550
          %v4586 = vadd.f32 %v4401, %v4554
          %v4587 = vadd.f32 %v4402, %v4556
          %v4588 = vadd.f32 %v4403, %v4558
          %v4589 = vadd.f32 %v4404, %v4560
          %v4590 = vadd.f32 %v4405, %v4564
          %v4591 = vadd.f32 %v4406, %v4566
          %v4592 = vadd.f32 %v4407, %v4568
          %v4593 = vadd.f32 %v4408, %v4570
          %v4594 = vadd.f32 %v4409, %v4574
          %v4595 = vadd.f32 %v4410, %v4576
          %v4596 = vadd.f32 %v4411, %v4578
          %v4597 = vadd.f32 %v4412, %v4580
          %v4598 = vsel %vm2884, %v4007, 0
          %v4599 = vsel %vm2885, %v4008, 0
          %v4600 = vsel %vm2886, %v4009, 0
          %v4601 = vsel %vm2884, %v4010, 0
          %v4602 = vsel %vm2885, %v4011, 0
          %v4603 = vsel %vm2886, %v4012, 0
          %v4604 = vsel %vm2884, %v4013, 0
          %v4605 = vsel %vm2885, %v4014, 0
          %v4606 = vsel %vm2886, %v4015, 0
          %v4607 = vsel %vm2884, %v4016, 0
          %v4608 = vsel %vm2885, %v4017, 0
          %v4609 = vsel %vm2886, %v4018, 0
          %s4610 = sadd.s32 %s3142, 8
          %s4611 = smul.u32 %s4610, 8
          %s4612 = smul.addr %s4611, 4
          %s4613 = scalar_lea.vmem %s2, %s4612
          %v4614 = vld [vmem:[%s4613] sm:$0xf]
          %v4615 = vld [vmem:[%s4613 + $0x4] sm:$0xf]
          %v4616 = vld [vmem:[%s4613 + $0x8] sm:$0xf]
          %v4617 = vld [vmem:[%s4613 + $0xc] sm:$0xf]
          %v4618 = vld [vmem:[%s4613 + $0x10] sm:$0xf]
          %v4619 = vld [vmem:[%s4613 + $0x14] sm:$0xf]
          %v4620 = vld [vmem:[%s4613 + $0x18] sm:$0xf]
          %v4621 = vld [vmem:[%s4613 + $0x1c] sm:$0xf]
          %v4630 = vunpack.c.l.b16 %v4614
          %v4631 = vunpack.c.l.b16 %v4615
          %v4632 = vunpack.c.l.b16 %v4616
          %v4633 = vunpack.c.l.b16 %v4617
          %v4634 = vunpack.c.l.b16 %v4618
          %v4635 = vunpack.c.l.b16 %v4619
          %v4636 = vunpack.c.l.b16 %v4620
          %v4637 = vunpack.c.l.b16 %v4621
          %v4638 = vpack.c.b16 %v4631, %v4630
          %v4639 = vpack.c.b16 %v4633, %v4632
          %v4640 = vpack.c.b16 %v4635, %v4634
          %v4641 = vpack.c.b16 %v4637, %v4636
          %4654 = vrot.lane.b32.xlu0 %v4598, 111
          %v4655 = vpop.permute.xlu0 %4654
          %4656 = vrot.lane.b32.xlu0 %v4599, 111
          %v4657 = vpop.permute.xlu0 %4656
          %4658 = vrot.lane.b32.xlu0 %v4600, 111
          %v4659 = vpop.permute.xlu0 %4658
          %4660 = vrot.lane.b32.xlu0 %v4601, 111
          %v4661 = vpop.permute.xlu0 %4660
          %4662 = vrot.lane.b32.xlu0 %v4602, 111
          %v4663 = vpop.permute.xlu0 %4662
          %4664 = vrot.lane.b32.xlu0 %v4603, 111
          %v4665 = vpop.permute.xlu0 %4664
          %4666 = vrot.lane.b32.xlu0 %v4604, 111
          %v4667 = vpop.permute.xlu0 %4666
          %4668 = vrot.lane.b32.xlu0 %v4605, 111
          %v4669 = vpop.permute.xlu0 %4668
          %4670 = vrot.lane.b32.xlu0 %v4606, 111
          %v4671 = vpop.permute.xlu0 %4670
          %4672 = vrot.lane.b32.xlu0 %v4607, 111
          %v4673 = vpop.permute.xlu0 %4672
          %4674 = vrot.lane.b32.xlu0 %v4608, 111
          %v4675 = vpop.permute.xlu0 %4674
          %4676 = vrot.lane.b32.xlu0 %v4609, 111
          %v4677 = vpop.permute.xlu0 %4676
          %v4678 = vsel %vm1352, %v4655, %v4657
          %v4679 = vsel %vm1352, %v4657, %v4659
          %v4680 = vsel %vm1352, %v4661, %v4663
          %v4681 = vsel %vm1352, %v4663, %v4665
          %v4682 = vsel %vm1352, %v4667, %v4669
          %v4683 = vsel %vm1352, %v4669, %v4671
          %v4684 = vsel %vm1352, %v4673, %v4675
          %v4685 = vsel %vm1352, %v4675, %v4677
          %v4695 = vsel %vm1466, %v4638, 0
          %v4698 = vsel %vm1466, %v4639, 0
          %v4701 = vsel %vm1466, %v4640, 0
          %v4704 = vsel %vm1466, %v4641, 0
          %4706 = vmatprep.subr.bf16.mxu0 %v4679
          %4707 = vmatpush1.bf16.msra.mxu0 %v4678
          %4708 = vmatprep.subr.bf16.mxu0 %v4681
          %4709 = vmatpush1.bf16.msra.mxu0 %v4680
          %4710 = vmatprep.subr.bf16.mxu0 %v4683
          %4711 = vmatpush1.bf16.msra.mxu0 %v4682
          %4712 = vmatprep.subr.bf16.mxu0 %v4685
          %4713 = vmatpush1.bf16.msra.mxu0 %v4684
          %4714 = vmatprep.subr.bf16.mxu0 0
          %4715 = vmatpush1.bf16.msra.mxu0 0
          %4716 = vmatprep.subr.bf16.mxu0 0
          %4717 = vmatpush1.bf16.msra.mxu0 0
          %4718 = vmatprep.subr.bf16.mxu0 0
          %4719 = vmatpush1.bf16.msra.mxu0 0
          %4720 = vmatprep.subr.bf16.mxu0 0
          %4721 = vmatpush1.bf16.msra.mxu0 0
          %4722 = vmatprep.subr.bf16.mxu0 0
          %4723 = vmatpush1.bf16.msra.mxu0 0
          %4724 = vmatprep.subr.bf16.mxu0 0
          %4725 = vmatpush1.bf16.msra.mxu0 0
          %4726 = vmatprep.subr.bf16.mxu0 0
          %4727 = vmatpush1.bf16.msra.mxu0 0
          %4728 = vmatprep.subr.bf16.mxu0 0
          %4729 = vmatpush1.bf16.msra.mxu0 0
          %4730 = vmatprep.subr.bf16.mxu0 0
          %4731 = vmatpush1.bf16.msra.mxu0 0
          %4732 = vmatprep.subr.bf16.mxu0 0
          %4733 = vmatpush1.bf16.msra.mxu0 0
          %4734 = vmatprep.subr.bf16.mxu0 0
          %4735 = vmatpush1.bf16.msra.mxu0 0
          %4736 = vmatprep.subr.bf16.mxu0 0
          %4737 = vmatpush1.bf16.msra.mxu0 0
          %4738 = vmatprep.mubr.bf16.mxu0 0
          %4739 = vmatmul.mubr.bf16.gmra.mrb[0].mxu0 %v4695
          %v4740 = vpop.f32.mrb[0].mxu0
          %v4741 = vadd.f32 0.0, %v4740
          %v4742 = vpop.f32.mrb[0].mxu0
          %v4743 = vadd.f32 0.0, %v4742
          %v4744 = vpop.f32.mrb[0].mxu0
          %v4745 = vadd.f32 0.0, %v4744
          %v4746 = vpop.f32.mrb[0].mxu0
          %v4747 = vadd.f32 0.0, %v4746
          %4748 = vmatprep.mubr.bf16.mxu0 0
          %4749 = vmatmul.mubr.bf16.gmra.mrb[0].mxu0 %v4698
          %v4750 = vpop.f32.mrb[0].mxu0
          %v4751 = vadd.f32 0.0, %v4750
          %v4752 = vpop.f32.mrb[0].mxu0
          %v4753 = vadd.f32 0.0, %v4752
          %v4754 = vpop.f32.mrb[0].mxu0
          %v4755 = vadd.f32 0.0, %v4754
          %v4756 = vpop.f32.mrb[0].mxu0
          %v4757 = vadd.f32 0.0, %v4756
          %4758 = vmatprep.mubr.bf16.mxu0 0
          %4759 = vmatmul.mubr.bf16.gmra.mrb[0].mxu0 %v4701
          %v4760 = vpop.f32.mrb[0].mxu0
          %v4761 = vadd.f32 0.0, %v4760
          %v4762 = vpop.f32.mrb[0].mxu0
          %v4763 = vadd.f32 0.0, %v4762
          %v4764 = vpop.f32.mrb[0].mxu0
          %v4765 = vadd.f32 0.0, %v4764
          %v4766 = vpop.f32.mrb[0].mxu0
          %v4767 = vadd.f32 0.0, %v4766
          %4768 = vmatprep.mubr.bf16.mxu0 0
          %4769 = vmatmul.mubr.bf16.gmra.mrb[0].mxu0 %v4704
          %v4770 = vpop.f32.mrb[0].mxu0
          %v4771 = vadd.f32 0.0, %v4770
          %v4772 = vpop.f32.mrb[0].mxu0
          %v4773 = vadd.f32 0.0, %v4772
          %v4774 = vpop.f32.mrb[0].mxu0
          %v4775 = vadd.f32 0.0, %v4774
          %v4776 = vpop.f32.mrb[0].mxu0
          %v4777 = vadd.f32 0.0, %v4776
          %4778 = vdwg.mxu0
          %v4779 = vadd.f32 %v4582, %v4741
          %v4780 = vadd.f32 %v4583, %v4743
          %v4781 = vadd.f32 %v4584, %v4745
          %v4782 = vadd.f32 %v4585, %v4747
          %v4783 = vadd.f32 %v4586, %v4751
          %v4784 = vadd.f32 %v4587, %v4753
          %v4785 = vadd.f32 %v4588, %v4755
          %v4786 = vadd.f32 %v4589, %v4757
          %v4787 = vadd.f32 %v4590, %v4761
          %v4788 = vadd.f32 %v4591, %v4763
          %v4789 = vadd.f32 %v4592, %v4765
          %v4790 = vadd.f32 %v4593, %v4767
          %v4791 = vadd.f32 %v4594, %v4771
          %v4792 = vadd.f32 %v4595, %v4773
          %v4793 = vadd.f32 %v4596, %v4775
          %v4794 = vadd.f32 %v4597, %v4777
          %v4795 = vmax.f32 %v4779, 0.0
          %v4796 = vmax.f32 %v4780, 0.0
          %v4797 = vmax.f32 %v4781, 0.0
          %v4798 = vmax.f32 %v4782, 0.0
          %v4799 = vmax.f32 %v4783, 0.0
          %v4800 = vmax.f32 %v4784, 0.0
          %v4801 = vmax.f32 %v4785, 0.0
          %v4802 = vmax.f32 %v4786, 0.0
          %v4803 = vmax.f32 %v4787, 0.0
          %v4804 = vmax.f32 %v4788, 0.0
          %v4805 = vmax.f32 %v4789, 0.0
          %v4806 = vmax.f32 %v4790, 0.0
          %v4807 = vmax.f32 %v4791, 0.0
          %v4808 = vmax.f32 %v4792, 0.0
          %v4809 = vmax.f32 %v4793, 0.0
          %v4810 = vmax.f32 %v4794, 0.0
          %v4811 = vpack.c.bf16 %v4797, %v4795
          %v4812 = vpack.c.bf16 %v4798, %v4796
          %v4813 = vpack.c.bf16 %v4801, %v4799
          %v4814 = vpack.c.bf16 %v4802, %v4800
          %v4815 = vpack.c.bf16 %v4805, %v4803
          %v4816 = vpack.c.bf16 %v4806, %v4804
          %v4817 = vpack.c.bf16 %v4809, %v4807
          %v4818 = vpack.c.bf16 %v4810, %v4808
          %4819 = vst [vmem:[#allocation2 + $0x8] sm:$0xff] %v4811
          %4820 = vst [vmem:[#allocation2 + $0x10] sm:$0xff] %v4812
          %4821 = vst [vmem:[#allocation2 + $0x28] sm:$0xff] %v4813
          %4822 = vst [vmem:[#allocation2 + $0x30] sm:$0xff] %v4814
          %4823 = vst [vmem:[#allocation2 + $0x48] sm:$0xff] %v4815
          %4824 = vst [vmem:[#allocation2 + $0x50] sm:$0xff] %v4816
          %4825 = vst [vmem:[#allocation2 + $0x68] sm:$0xff] %v4817
          %4826 = vst [vmem:[#allocation2 + $0x70] sm:$0xff] %v4818
        $region41: #{tpu_custom_call.1} parent=35 // loop_footer
          %s1321 = sadd.s32 1, %s1317
        $region42: #{tpu_custom_call.1} parent=35 // loop_footer_branch
          %1316 = sbr.rel target = $region38
        $region43: #{tpu_custom_call.1} parent=35 // loop_exit
          _
        %v4827 = vld [vmem:[#allocation2] sm:$0xff]
        %v4828 = vld [vmem:[#allocation2 + $0x8] sm:$0xff]
        %v4829 = vld [vmem:[#allocation2 + $0x10] sm:$0xff]
        %v4830 = vld [vmem:[#allocation2 + $0x20] sm:$0xff]
        %v4831 = vld [vmem:[#allocation2 + $0x28] sm:$0xff]
        %v4832 = vld [vmem:[#allocation2 + $0x30] sm:$0xff]
        %v4833 = vld [vmem:[#allocation2 + $0x40] sm:$0xff]
        %v4834 = vld [vmem:[#allocation2 + $0x48] sm:$0xff]
        %v4835 = vld [vmem:[#allocation2 + $0x50] sm:$0xff]
        %v4836 = vld [vmem:[#allocation2 + $0x60] sm:$0xff]
        %v4837 = vld [vmem:[#allocation2 + $0x68] sm:$0xff]
        %v4838 = vld [vmem:[#allocation2 + $0x70] sm:$0xff]
        %v4839 = vsel %vm282, 1, 0
        %v4840 = vsel %vm283, 1, 0
        %vm4841 = vcmp.eq.s32.totalorder %v4839, 1
        %vm4842 = vcmp.eq.s32.totalorder %v4840, 1
        %vm4843 = vmpackc.low %vm4842, %vm4841
        %v4844 = vsel %vm4843, 65537, 0
        %v4845 = vlaneseq
        %v4846 = vshrl.u32 %v4845, 7
        %v4847 = vsub.s32 0, %v4846
        %v4848 = vrot.slane %v4844, %v4847
        %v4849 = vlaneseq
        %v4850 = vshrl.u32 %v4849, 7
        %v4851 = vsub.s32 4, %v4850
        %v4852 = vrot.slane %v4844, %v4851
        %4853 = vrot.lane.b32.xlu0 %v4848, 111
        %v4854 = vpop.permute.xlu0 %4853
        %4855 = vrot.lane.b32.xlu0 %v4852, 111
        %v4856 = vpop.permute.xlu0 %4855
        %vm4857 = vcmask 908288
        %v4858 = vsel %vm4857, %v4854, %v4856
        %vm4859 = vcmp.ne.s16.totalorder %v4854, 0
        %vm4860 = vcmp.ne.s16.totalorder %v4858, 0
        %vm4861 = vcmp.ne.s16.totalorder %v4856, 0
        %v4862 = vsel %vm4859, %v4827, 0
        %v4863 = vsel %vm4860, %v4828, 0
        %v4864 = vsel %vm4861, %v4829, 0
        %v4865 = vsel %vm4859, %v4830, 0
        %v4866 = vsel %vm4860, %v4831, 0
        %v4867 = vsel %vm4861, %v4832, 0
        %v4868 = vsel %vm4859, %v4833, 0
        %v4869 = vsel %vm4860, %v4834, 0
        %v4870 = vsel %vm4861, %v4835, 0
        %v4871 = vsel %vm4859, %v4836, 0
        %v4872 = vsel %vm4860, %v4837, 0
        %v4873 = vsel %vm4861, %v4838, 0
        %v4874 = vld [vmem:[%s3] sm:$0xf]
        %s4875 = scalar_lea.vmem %s3, 4
        %v4876 = vld [vmem:[%s4875] sm:$0xf]
        %4889 = vrot.lane.b32.xlu0 %v4827, 16
        %v4890 = vpop.permute.xlu0 %4889
        %4891 = vrot.lane.b32.xlu0 %v4828, 16
        %v4892 = vpop.permute.xlu0 %4891
        %4893 = vrot.lane.b32.xlu0 %v4829, 16
        %v4894 = vpop.permute.xlu0 %4893
        %4895 = vrot.lane.b32.xlu0 %v4830, 16
        %v4896 = vpop.permute.xlu0 %4895
        %4897 = vrot.lane.b32.xlu0 %v4831, 16
        %v4898 = vpop.permute.xlu0 %4897
        %4899 = vrot.lane.b32.xlu0 %v4832, 16
        %v4900 = vpop.permute.xlu0 %4899
        %4901 = vrot.lane.b32.xlu0 %v4833, 16
        %v4902 = vpop.permute.xlu0 %4901
        %4903 = vrot.lane.b32.xlu0 %v4834, 16
        %v4904 = vpop.permute.xlu0 %4903
        %4905 = vrot.lane.b32.xlu0 %v4835, 16
        %v4906 = vpop.permute.xlu0 %4905
        %4907 = vrot.lane.b32.xlu0 %v4836, 16
        %v4908 = vpop.permute.xlu0 %4907
        %4909 = vrot.lane.b32.xlu0 %v4837, 16
        %v4910 = vpop.permute.xlu0 %4909
        %4911 = vrot.lane.b32.xlu0 %v4838, 16
        %v4912 = vpop.permute.xlu0 %4911
        %vm4913 = vcmask 130048
        %v4914 = vsel %vm4913, %v4890, %v4892
        %v4915 = vsel %vm4913, %v4892, %v4894
        %v4916 = vsel %vm4913, %v4896, %v4898
        %v4917 = vsel %vm4913, %v4898, %v4900
        %v4918 = vsel %vm4913, %v4902, %v4904
        %v4919 = vsel %vm4913, %v4904, %v4906
        %v4920 = vsel %vm4913, %v4908, %v4910
        %v4921 = vsel %vm4913, %v4910, %v4912
        %vm4930 = vcmask 523264
        %v4932 = vsel %vm4930, %v4876, 0
        %4934 = vmatprep.subr.bf16.mxu0 %v4915
        %4935 = vmatpush1.bf16.msra.mxu0 %v4914
        %4936 = vmatprep.subr.bf16.mxu0 %v4917
        %4937 = vmatpush1.bf16.msra.mxu0 %v4916
        %4938 = vmatprep.subr.bf16.mxu0 %v4919
        %4939 = vmatpush1.bf16.msra.mxu0 %v4918
        %4940 = vmatprep.subr.bf16.mxu0 %v4921
        %4941 = vmatpush1.bf16.msra.mxu0 %v4920
        %4942 = vmatprep.subr.bf16.mxu0 0
        %4943 = vmatpush1.bf16.msra.mxu0 0
        %4944 = vmatprep.subr.bf16.mxu0 0
        %4945 = vmatpush1.bf16.msra.mxu0 0
        %4946 = vmatprep.subr.bf16.mxu0 0
        %4947 = vmatpush1.bf16.msra.mxu0 0
        %4948 = vmatprep.subr.bf16.mxu0 0
        %4949 = vmatpush1.bf16.msra.mxu0 0
        %4950 = vmatprep.subr.bf16.mxu0 0
        %4951 = vmatpush1.bf16.msra.mxu0 0
        %4952 = vmatprep.subr.bf16.mxu0 0
        %4953 = vmatpush1.bf16.msra.mxu0 0
        %4954 = vmatprep.subr.bf16.mxu0 0
        %4955 = vmatpush1.bf16.msra.mxu0 0
        %4956 = vmatprep.subr.bf16.mxu0 0
        %4957 = vmatpush1.bf16.msra.mxu0 0
        %4958 = vmatprep.subr.bf16.mxu0 0
        %4959 = vmatpush1.bf16.msra.mxu0 0
        %4960 = vmatprep.subr.bf16.mxu0 0
        %4961 = vmatpush1.bf16.msra.mxu0 0
        %4962 = vmatprep.subr.bf16.mxu0 0
        %4963 = vmatpush1.bf16.msra.mxu0 0
        %4964 = vmatprep.subr.bf16.mxu0 0
        %4965 = vmatpush1.bf16.msra.mxu0 0
        %4966 = vmatprep.mubr.bf16.mxu0 0
        %4967 = vmatmul.mubr.bf16.gmra.mrb[0].mxu0 %v4932
        %v4968 = vpop.f32.mrb[0].mxu0
        %v4969 = vadd.f32 0.0, %v4968
        %v4970 = vpop.f32.mrb[0].mxu0
        %v4971 = vadd.f32 0.0, %v4970
        %v4972 = vpop.f32.mrb[0].mxu0
        %v4973 = vpop.f32.mrb[0].mxu0
        %4974 = vdwg.mxu0
        %4987 = vrot.lane.b32.xlu0 %v4862, 17
        %v4988 = vpop.permute.xlu0 %4987
        %4989 = vrot.lane.b32.xlu0 %v4863, 17
        %v4990 = vpop.permute.xlu0 %4989
        %4991 = vrot.lane.b32.xlu0 %v4864, 17
        %v4992 = vpop.permute.xlu0 %4991
        %4993 = vrot.lane.b32.xlu0 %v4865, 17
        %v4994 = vpop.permute.xlu0 %4993
        %4995 = vrot.lane.b32.xlu0 %v4866, 17
        %v4996 = vpop.permute.xlu0 %4995
        %4997 = vrot.lane.b32.xlu0 %v4867, 17
        %v4998 = vpop.permute.xlu0 %4997
        %4999 = vrot.lane.b32.xlu0 %v4868, 17
        %v5000 = vpop.permute.xlu0 %4999
        %5001 = vrot.lane.b32.xlu0 %v4869, 17
        %v5002 = vpop.permute.xlu0 %5001
        %5003 = vrot.lane.b32.xlu0 %v4870, 17
        %v5004 = vpop.permute.xlu0 %5003
        %5005 = vrot.lane.b32.xlu0 %v4871, 17
        %v5006 = vpop.permute.xlu0 %5005
        %5007 = vrot.lane.b32.xlu0 %v4872, 17
        %v5008 = vpop.permute.xlu0 %5007
        %5009 = vrot.lane.b32.xlu0 %v4873, 17
        %v5010 = vpop.permute.xlu0 %5009
        %vm5011 = vcmask 138240
        %v5012 = vsel %vm5011, %v4988, %v4990
        %v5013 = vsel %vm5011, %v4990, %v4992
        %v5014 = vsel %vm5011, %v4994, %v4996
        %v5015 = vsel %vm5011, %v4996, %v4998
        %v5016 = vsel %vm5011, %v5000, %v5002
        %v5017 = vsel %vm5011, %v5002, %v5004
        %v5018 = vsel %vm5011, %v5006, %v5008
        %v5019 = vsel %vm5011, %v5008, %v5010
        %v5029 = vsel %vm4930, %v4874, 0
        %5031 = vmatprep.subr.bf16.mxu0 %v5013
        %5032 = vmatpush1.bf16.msra.mxu0 %v5012
        %5033 = vmatprep.subr.bf16.mxu0 %v5015
        %5034 = vmatpush1.bf16.msra.mxu0 %v5014
        %5035 = vmatprep.subr.bf16.mxu0 %v5017
        %5036 = vmatpush1.bf16.msra.mxu0 %v5016
        %5037 = vmatprep.subr.bf16.mxu0 %v5019
        %5038 = vmatpush1.bf16.msra.mxu0 %v5018
        %5039 = vmatprep.subr.bf16.mxu0 0
        %5040 = vmatpush1.bf16.msra.mxu0 0
        %5041 = vmatprep.subr.bf16.mxu0 0
        %5042 = vmatpush1.bf16.msra.mxu0 0
        %5043 = vmatprep.subr.bf16.mxu0 0
        %5044 = vmatpush1.bf16.msra.mxu0 0
        %5045 = vmatprep.subr.bf16.mxu0 0
        %5046 = vmatpush1.bf16.msra.mxu0 0
        %5047 = vmatprep.subr.bf16.mxu0 0
        %5048 = vmatpush1.bf16.msra.mxu0 0
        %5049 = vmatprep.subr.bf16.mxu0 0
        %5050 = vmatpush1.bf16.msra.mxu0 0
        %5051 = vmatprep.subr.bf16.mxu0 0
        %5052 = vmatpush1.bf16.msra.mxu0 0
        %5053 = vmatprep.subr.bf16.mxu0 0
        %5054 = vmatpush1.bf16.msra.mxu0 0
        %5055 = vmatprep.subr.bf16.mxu0 0
        %5056 = vmatpush1.bf16.msra.mxu0 0
        %5057 = vmatprep.subr.bf16.mxu0 0
        %5058 = vmatpush1.bf16.msra.mxu0 0
        %5059 = vmatprep.subr.bf16.mxu0 0
        %5060 = vmatpush1.bf16.msra.mxu0 0
        %5061 = vmatprep.subr.bf16.mxu0 0
        %5062 = vmatpush1.bf16.msra.mxu0 0
        %5063 = vmatprep.mubr.bf16.mxu0 0
        %5064 = vmatmul.mubr.bf16.gmra.mrb[0].mxu0 %v5029
        %v5065 = vpop.f32.mrb[0].mxu0
        %v5066 = vadd.f32 %v4969, %v5065
        %v5067 = vpop.f32.mrb[0].mxu0
        %v5068 = vadd.f32 %v4971, %v5067
        %v5069 = vpop.f32.mrb[0].mxu0
        %v5070 = vpop.f32.mrb[0].mxu0
        %5071 = vdwg.mxu0
        %v5072 = vsel %vm284, 1, 0
        %v5073 = vsel %vm285, 1, 0
        %vm5074 = vcmp.eq.s32.totalorder %v5072, 1
        %vm5075 = vcmp.eq.s32.totalorder %v5073, 1
        %vm5076 = vmpackc.low %vm5075, %vm5074
        %v5077 = vsel %vm5076, 65537, 0
        %v5078 = vlaneseq
        %v5079 = vshrl.u32 %v5078, 7
        %v5080 = vsub.s32 0, %v5079
        %v5081 = vrot.slane %v5077, %v5080
        %v5082 = vlaneseq
        %v5083 = vshrl.u32 %v5082, 7
        %v5084 = vsub.s32 4, %v5083
        %v5085 = vrot.slane %v5077, %v5084
        %5086 = vrot.lane.b32.xlu0 %v5081, 113
        %v5087 = vpop.permute.xlu0 %5086
        %5088 = vrot.lane.b32.xlu0 %v5085, 113
        %v5089 = vpop.permute.xlu0 %5088
        %vm5090 = vcmask 924672
        %v5091 = vsel %vm5090, %v5087, %v5089
        %vm5092 = vcmp.ne.s16.totalorder %v5087, 0
        %vm5093 = vcmp.ne.s16.totalorder %v5091, 0
        %vm5094 = vcmp.ne.s16.totalorder %v5089, 0
        %v5095 = vsel %vm5092, %v4827, 0
        %v5096 = vsel %vm5093, %v4828, 0
        %v5097 = vsel %vm5094, %v4829, 0
        %v5098 = vsel %vm5092, %v4830, 0
        %v5099 = vsel %vm5093, %v4831, 0
        %v5100 = vsel %vm5094, %v4832, 0
        %v5101 = vsel %vm5092, %v4833, 0
        %v5102 = vsel %vm5093, %v4834, 0
        %v5103 = vsel %vm5094, %v4835, 0
        %v5104 = vsel %vm5092, %v4836, 0
        %v5105 = vsel %vm5093, %v4837, 0
        %v5106 = vsel %vm5094, %v4838, 0
        %s5107 = scalar_lea.vmem %s3, 8
        %v5108 = vld [vmem:[%s5107] sm:$0xf]
        %5121 = vrot.lane.b32.xlu0 %v5095, 15
        %v5122 = vpop.permute.xlu0 %5121
        %5123 = vrot.lane.b32.xlu0 %v5096, 15
        %v5124 = vpop.permute.xlu0 %5123
        %5125 = vrot.lane.b32.xlu0 %v5097, 15
        %v5126 = vpop.permute.xlu0 %5125
        %5127 = vrot.lane.b32.xlu0 %v5098, 15
        %v5128 = vpop.permute.xlu0 %5127
        %5129 = vrot.lane.b32.xlu0 %v5099, 15
        %v5130 = vpop.permute.xlu0 %5129
        %5131 = vrot.lane.b32.xlu0 %v5100, 15
        %v5132 = vpop.permute.xlu0 %5131
        %5133 = vrot.lane.b32.xlu0 %v5101, 15
        %v5134 = vpop.permute.xlu0 %5133
        %5135 = vrot.lane.b32.xlu0 %v5102, 15
        %v5136 = vpop.permute.xlu0 %5135
        %5137 = vrot.lane.b32.xlu0 %v5103, 15
        %v5138 = vpop.permute.xlu0 %5137
        %5139 = vrot.lane.b32.xlu0 %v5104, 15
        %v5140 = vpop.permute.xlu0 %5139
        %5141 = vrot.lane.b32.xlu0 %v5105, 15
        %v5142 = vpop.permute.xlu0 %5141
        %5143 = vrot.lane.b32.xlu0 %v5106, 15
        %v5144 = vpop.permute.xlu0 %5143
        %vm5145 = vcmask 121856
        %v5146 = vsel %vm5145, %v5122, %v5124
        %v5147 = vsel %vm5145, %v5124, %v5126
        %v5148 = vsel %vm5145, %v5128, %v5130
        %v5149 = vsel %vm5145, %v5130, %v5132
        %v5150 = vsel %vm5145, %v5134, %v5136
        %v5151 = vsel %vm5145, %v5136, %v5138
        %v5152 = vsel %vm5145, %v5140, %v5142
        %v5153 = vsel %vm5145, %v5142, %v5144
        %v5163 = vsel %vm4930, %v5108, 0
        %5165 = vmatprep.subr.bf16.mxu0 %v5147
        %5166 = vmatpush1.bf16.msra.mxu0 %v5146
        %5167 = vmatprep.subr.bf16.mxu0 %v5149
        %5168 = vmatpush1.bf16.msra.mxu0 %v5148
        %5169 = vmatprep.subr.bf16.mxu0 %v5151
        %5170 = vmatpush1.bf16.msra.mxu0 %v5150
        %5171 = vmatprep.subr.bf16.mxu0 %v5153
        %5172 = vmatpush1.bf16.msra.mxu0 %v5152
        %5173 = vmatprep.subr.bf16.mxu0 0
        %5174 = vmatpush1.bf16.msra.mxu0 0
        %5175 = vmatprep.subr.bf16.mxu0 0
        %5176 = vmatpush1.bf16.msra.mxu0 0
        %5177 = vmatprep.subr.bf16.mxu0 0
        %5178 = vmatpush1.bf16.msra.mxu0 0
        %5179 = vmatprep.subr.bf16.mxu0 0
        %5180 = vmatpush1.bf16.msra.mxu0 0
        %5181 = vmatprep.subr.bf16.mxu0 0
        %5182 = vmatpush1.bf16.msra.mxu0 0
        %5183 = vmatprep.subr.bf16.mxu0 0
        %5184 = vmatpush1.bf16.msra.mxu0 0
        %5185 = vmatprep.subr.bf16.mxu0 0
        %5186 = vmatpush1.bf16.msra.mxu0 0
        %5187 = vmatprep.subr.bf16.mxu0 0
        %5188 = vmatpush1.bf16.msra.mxu0 0
        %5189 = vmatprep.subr.bf16.mxu0 0
        %5190 = vmatpush1.bf16.msra.mxu0 0
        %5191 = vmatprep.subr.bf16.mxu0 0
        %5192 = vmatpush1.bf16.msra.mxu0 0
        %5193 = vmatprep.subr.bf16.mxu0 0
        %5194 = vmatpush1.bf16.msra.mxu0 0
        %5195 = vmatprep.subr.bf16.mxu0 0
        %5196 = vmatpush1.bf16.msra.mxu0 0
        %5197 = vmatprep.mubr.bf16.mxu0 0
        %5198 = vmatmul.mubr.bf16.gmra.mrb[0].mxu0 %v5163
        %v5199 = vpop.f32.mrb[0].mxu0
        %v5200 = vadd.f32 0.0, %v5199
        %v5201 = vpop.f32.mrb[0].mxu0
        %v5202 = vadd.f32 0.0, %v5201
        %v5203 = vpop.f32.mrb[0].mxu0
        %v5204 = vpop.f32.mrb[0].mxu0
        %5205 = vdwg.mxu0
        %v5206 = vadd.f32 %v5066, %v5200
        %v5207 = vadd.f32 %v5068, %v5202
        %5208 = vrot.lane.b32.xlu0 %v4848, 127
        %v5209 = vpop.permute.xlu0 %5208
        %5210 = vrot.lane.b32.xlu0 %v4852, 127
        %v5211 = vpop.permute.xlu0 %5210
        %vm5212 = vcmask 1039360
        %v5213 = vsel %vm5212, %v5209, %v5211
        %vm5214 = vcmp.ne.s16.totalorder %v5209, 0
        %vm5215 = vcmp.ne.s16.totalorder %v5213, 0
        %vm5216 = vcmp.ne.s16.totalorder %v5211, 0
        %v5217 = vsel %vm5214, %v4827, 0
        %v5218 = vsel %vm5215, %v4828, 0
        %v5219 = vsel %vm5216, %v4829, 0
        %v5220 = vsel %vm5214, %v4830, 0
        %v5221 = vsel %vm5215, %v4831, 0
        %v5222 = vsel %vm5216, %v4832, 0
        %v5223 = vsel %vm5214, %v4833, 0
        %v5224 = vsel %vm5215, %v4834, 0
        %v5225 = vsel %vm5216, %v4835, 0
        %v5226 = vsel %vm5214, %v4836, 0
        %v5227 = vsel %vm5215, %v4837, 0
        %v5228 = vsel %vm5216, %v4838, 0
        %s5229 = scalar_lea.vmem %s3, 12
        %v5230 = vld [vmem:[%s5229] sm:$0xf]
        %5243 = vrot.lane.b32.xlu0 %v5217, 1
        %v5244 = vpop.permute.xlu0 %5243
        %5245 = vrot.lane.b32.xlu0 %v5218, 1
        %v5246 = vpop.permute.xlu0 %5245
        %5247 = vrot.lane.b32.xlu0 %v5219, 1
        %v5248 = vpop.permute.xlu0 %5247
        %5249 = vrot.lane.b32.xlu0 %v5220, 1
        %v5250 = vpop.permute.xlu0 %5249
        %5251 = vrot.lane.b32.xlu0 %v5221, 1
        %v5252 = vpop.permute.xlu0 %5251
        %5253 = vrot.lane.b32.xlu0 %v5222, 1
        %v5254 = vpop.permute.xlu0 %5253
        %5255 = vrot.lane.b32.xlu0 %v5223, 1
        %v5256 = vpop.permute.xlu0 %5255
        %5257 = vrot.lane.b32.xlu0 %v5224, 1
        %v5258 = vpop.permute.xlu0 %5257
        %5259 = vrot.lane.b32.xlu0 %v5225, 1
        %v5260 = vpop.permute.xlu0 %5259
        %5261 = vrot.lane.b32.xlu0 %v5226, 1
        %v5262 = vpop.permute.xlu0 %5261
        %5263 = vrot.lane.b32.xlu0 %v5227, 1
        %v5264 = vpop.permute.xlu0 %5263
        %5265 = vrot.lane.b32.xlu0 %v5228, 1
        %v5266 = vpop.permute.xlu0 %5265
        %vm5267 = vcmask 7168
        %v5268 = vsel %vm5267, %v5244, %v5246
        %v5269 = vsel %vm5267, %v5246, %v5248
        %v5270 = vsel %vm5267, %v5250, %v5252
        %v5271 = vsel %vm5267, %v5252, %v5254
        %v5272 = vsel %vm5267, %v5256, %v5258
        %v5273 = vsel %vm5267, %v5258, %v5260
        %v5274 = vsel %vm5267, %v5262, %v5264
        %v5275 = vsel %vm5267, %v5264, %v5266
        %v5285 = vsel %vm4930, %v5230, 0
        %5287 = vmatprep.subr.bf16.mxu0 %v5269
        %5288 = vmatpush1.bf16.msra.mxu0 %v5268
        %5289 = vmatprep.subr.bf16.mxu0 %v5271
        %5290 = vmatpush1.bf16.msra.mxu0 %v5270
        %5291 = vmatprep.subr.bf16.mxu0 %v5273
        %5292 = vmatpush1.bf16.msra.mxu0 %v5272
        %5293 = vmatprep.subr.bf16.mxu0 %v5275
        %5294 = vmatpush1.bf16.msra.mxu0 %v5274
        %5295 = vmatprep.subr.bf16.mxu0 0
        %5296 = vmatpush1.bf16.msra.mxu0 0
        %5297 = vmatprep.subr.bf16.mxu0 0
        %5298 = vmatpush1.bf16.msra.mxu0 0
        %5299 = vmatprep.subr.bf16.mxu0 0
        %5300 = vmatpush1.bf16.msra.mxu0 0
        %5301 = vmatprep.subr.bf16.mxu0 0
        %5302 = vmatpush1.bf16.msra.mxu0 0
        %5303 = vmatprep.subr.bf16.mxu0 0
        %5304 = vmatpush1.bf16.msra.mxu0 0
        %5305 = vmatprep.subr.bf16.mxu0 0
        %5306 = vmatpush1.bf16.msra.mxu0 0
        %5307 = vmatprep.subr.bf16.mxu0 0
        %5308 = vmatpush1.bf16.msra.mxu0 0
        %5309 = vmatprep.subr.bf16.mxu0 0
        %5310 = vmatpush1.bf16.msra.mxu0 0
        %5311 = vmatprep.subr.bf16.mxu0 0
        %5312 = vmatpush1.bf16.msra.mxu0 0
        %5313 = vmatprep.subr.bf16.mxu0 0
        %5314 = vmatpush1.bf16.msra.mxu0 0
        %5315 = vmatprep.subr.bf16.mxu0 0
        %5316 = vmatpush1.bf16.msra.mxu0 0
        %5317 = vmatprep.subr.bf16.mxu0 0
        %5318 = vmatpush1.bf16.msra.mxu0 0
        %5319 = vmatprep.mubr.bf16.mxu0 0
        %5320 = vmatmul.mubr.bf16.gmra.mrb[0].mxu0 %v5285
        %v5321 = vpop.f32.mrb[0].mxu0
        %v5322 = vadd.f32 0.0, %v5321
        %v5323 = vpop.f32.mrb[0].mxu0
        %v5324 = vadd.f32 0.0, %v5323
        %v5325 = vpop.f32.mrb[0].mxu0
        %v5326 = vpop.f32.mrb[0].mxu0
        %5327 = vdwg.mxu0
        %v5328 = vadd.f32 %v5206, %v5322
        %v5329 = vadd.f32 %v5207, %v5324
        %s5330 = scalar_lea.vmem %s3, 16
        %v5331 = vld [vmem:[%s5330] sm:$0xf]
        %v5333 = vsel %vm4930, %v5331, 0
        %5335 = vmatprep.subr.bf16.mxu0 %v4829
        %5336 = vmatpush1.bf16.msra.mxu0 %v4828
        %5337 = vmatprep.subr.bf16.mxu0 %v4832
        %5338 = vmatpush1.bf16.msra.mxu0 %v4831
        %5339 = vmatprep.subr.bf16.mxu0 %v4835
        %5340 = vmatpush1.bf16.msra.mxu0 %v4834
        %5341 = vmatprep.subr.bf16.mxu0 %v4838
        %5342 = vmatpush1.bf16.msra.mxu0 %v4837
        %5343 = vmatprep.subr.bf16.mxu0 0
        %5344 = vmatpush1.bf16.msra.mxu0 0
        %5345 = vmatprep.subr.bf16.mxu0 0
        %5346 = vmatpush1.bf16.msra.mxu0 0
        %5347 = vmatprep.subr.bf16.mxu0 0
        %5348 = vmatpush1.bf16.msra.mxu0 0
        %5349 = vmatprep.subr.bf16.mxu0 0
        %5350 = vmatpush1.bf16.msra.mxu0 0
        %5351 = vmatprep.subr.bf16.mxu0 0
        %5352 = vmatpush1.bf16.msra.mxu0 0
        %5353 = vmatprep.subr.bf16.mxu0 0
        %5354 = vmatpush1.bf16.msra.mxu0 0
        %5355 = vmatprep.subr.bf16.mxu0 0
        %5356 = vmatpush1.bf16.msra.mxu0 0
        %5357 = vmatprep.subr.bf16.mxu0 0
        %5358 = vmatpush1.bf16.msra.mxu0 0
        %5359 = vmatprep.subr.bf16.mxu0 0
        %5360 = vmatpush1.bf16.msra.mxu0 0
        %5361 = vmatprep.subr.bf16.mxu0 0
        %5362 = vmatpush1.bf16.msra.mxu0 0
        %5363 = vmatprep.subr.bf16.mxu0 0
        %5364 = vmatpush1.bf16.msra.mxu0 0
        %5365 = vmatprep.subr.bf16.mxu0 0
        %5366 = vmatpush1.bf16.msra.mxu0 0
        %5367 = vmatprep.mubr.bf16.mxu0 0
        %5368 = vmatmul.mubr.bf16.gmra.mrb[0].mxu0 %v5333
        %v5369 = vpop.f32.mrb[0].mxu0
        %v5370 = vadd.f32 0.0, %v5369
        %v5371 = vpop.f32.mrb[0].mxu0
        %v5372 = vadd.f32 0.0, %v5371
        %v5373 = vpop.f32.mrb[0].mxu0
        %v5374 = vpop.f32.mrb[0].mxu0
        %5375 = vdwg.mxu0
        %v5376 = vadd.f32 %v5328, %v5370
        %v5377 = vadd.f32 %v5329, %v5372
        %v5378 = vld [vmem:[#allocation2 + $0x8] sm:$0xff]
        %v5379 = vld [vmem:[#allocation2 + $0x10] sm:$0xff]
        %v5380 = vld [vmem:[#allocation2 + $0x18] sm:$0xff]
        %v5381 = vld [vmem:[#allocation2 + $0x28] sm:$0xff]
        %v5382 = vld [vmem:[#allocation2 + $0x30] sm:$0xff]
        %v5383 = vld [vmem:[#allocation2 + $0x38] sm:$0xff]
        %v5384 = vld [vmem:[#allocation2 + $0x48] sm:$0xff]
        %v5385 = vld [vmem:[#allocation2 + $0x50] sm:$0xff]
        %v5386 = vld [vmem:[#allocation2 + $0x58] sm:$0xff]
        %v5387 = vld [vmem:[#allocation2 + $0x68] sm:$0xff]
        %v5388 = vld [vmem:[#allocation2 + $0x70] sm:$0xff]
        %v5389 = vld [vmem:[#allocation2 + $0x78] sm:$0xff]
        %5390 = vrot.lane.b32.xlu0 %v5081, 1
        %v5391 = vpop.permute.xlu0 %5390
        %5392 = vrot.lane.b32.xlu0 %v5085, 1
        %v5393 = vpop.permute.xlu0 %5392
        %v5394 = vsel %vm5267, %v5391, %v5393
        %vm5395 = vcmp.ne.s16.totalorder %v5391, 0
        %vm5396 = vcmp.ne.s16.totalorder %v5394, 0
        %vm5397 = vcmp.ne.s16.totalorder %v5393, 0
        %v5398 = vsel %vm5395, %v5378, 0
        %v5399 = vsel %vm5396, %v5379, 0
        %v5400 = vsel %vm5397, %v5380, 0
        %v5401 = vsel %vm5395, %v5381, 0
        %v5402 = vsel %vm5396, %v5382, 0
        %v5403 = vsel %vm5397, %v5383, 0
        %v5404 = vsel %vm5395, %v5384, 0
        %v5405 = vsel %vm5396, %v5385, 0
        %v5406 = vsel %vm5397, %v5386, 0
        %v5407 = vsel %vm5395, %v5387, 0
        %v5408 = vsel %vm5396, %v5388, 0
        %v5409 = vsel %vm5397, %v5389, 0
        %s5410 = scalar_lea.vmem %s3, 20
        %v5411 = vld [vmem:[%s5410] sm:$0xf]
        %5424 = vrot.lane.b32.xlu0 %v5398, 127
        %v5425 = vpop.permute.xlu0 %5424
        %5426 = vrot.lane.b32.xlu0 %v5399, 127
        %v5427 = vpop.permute.xlu0 %5426
        %5428 = vrot.lane.b32.xlu0 %v5400, 127
        %v5429 = vpop.permute.xlu0 %5428
        %5430 = vrot.lane.b32.xlu0 %v5401, 127
        %v5431 = vpop.permute.xlu0 %5430
        %5432 = vrot.lane.b32.xlu0 %v5402, 127
        %v5433 = vpop.permute.xlu0 %5432
        %5434 = vrot.lane.b32.xlu0 %v5403, 127
        %v5435 = vpop.permute.xlu0 %5434
        %5436 = vrot.lane.b32.xlu0 %v5404, 127
        %v5437 = vpop.permute.xlu0 %5436
        %5438 = vrot.lane.b32.xlu0 %v5405, 127
        %v5439 = vpop.permute.xlu0 %5438
        %5440 = vrot.lane.b32.xlu0 %v5406, 127
        %v5441 = vpop.permute.xlu0 %5440
        %5442 = vrot.lane.b32.xlu0 %v5407, 127
        %v5443 = vpop.permute.xlu0 %5442
        %5444 = vrot.lane.b32.xlu0 %v5408, 127
        %v5445 = vpop.permute.xlu0 %5444
        %5446 = vrot.lane.b32.xlu0 %v5409, 127
        %v5447 = vpop.permute.xlu0 %5446
        %v5448 = vsel %vm5212, %v5425, %v5427
        %v5449 = vsel %vm5212, %v5427, %v5429
        %v5450 = vsel %vm5212, %v5431, %v5433
        %v5451 = vsel %vm5212, %v5433, %v5435
        %v5452 = vsel %vm5212, %v5437, %v5439
        %v5453 = vsel %vm5212, %v5439, %v5441
        %v5454 = vsel %vm5212, %v5443, %v5445
        %v5455 = vsel %vm5212, %v5445, %v5447
        %v5465 = vsel %vm4930, %v5411, 0
        %5467 = vmatprep.subr.bf16.mxu0 %v5449
        %5468 = vmatpush1.bf16.msra.mxu0 %v5448
        %5469 = vmatprep.subr.bf16.mxu0 %v5451
        %5470 = vmatpush1.bf16.msra.mxu0 %v5450
        %5471 = vmatprep.subr.bf16.mxu0 %v5453
        %5472 = vmatpush1.bf16.msra.mxu0 %v5452
        %5473 = vmatprep.subr.bf16.mxu0 %v5455
        %5474 = vmatpush1.bf16.msra.mxu0 %v5454
        %5475 = vmatprep.subr.bf16.mxu0 0
        %5476 = vmatpush1.bf16.msra.mxu0 0
        %5477 = vmatprep.subr.bf16.mxu0 0
        %5478 = vmatpush1.bf16.msra.mxu0 0
        %5479 = vmatprep.subr.bf16.mxu0 0
        %5480 = vmatpush1.bf16.msra.mxu0 0
        %5481 = vmatprep.subr.bf16.mxu0 0
        %5482 = vmatpush1.bf16.msra.mxu0 0
        %5483 = vmatprep.subr.bf16.mxu0 0
        %5484 = vmatpush1.bf16.msra.mxu0 0
        %5485 = vmatprep.subr.bf16.mxu0 0
        %5486 = vmatpush1.bf16.msra.mxu0 0
        %5487 = vmatprep.subr.bf16.mxu0 0
        %5488 = vmatpush1.bf16.msra.mxu0 0
        %5489 = vmatprep.subr.bf16.mxu0 0
        %5490 = vmatpush1.bf16.msra.mxu0 0
        %5491 = vmatprep.subr.bf16.mxu0 0
        %5492 = vmatpush1.bf16.msra.mxu0 0
        %5493 = vmatprep.subr.bf16.mxu0 0
        %5494 = vmatpush1.bf16.msra.mxu0 0
        %5495 = vmatprep.subr.bf16.mxu0 0
        %5496 = vmatpush1.bf16.msra.mxu0 0
        %5497 = vmatprep.subr.bf16.mxu0 0
        %5498 = vmatpush1.bf16.msra.mxu0 0
        %5499 = vmatprep.mubr.bf16.mxu0 0
        %5500 = vmatmul.mubr.bf16.gmra.mrb[0].mxu0 %v5465
        %v5501 = vpop.f32.mrb[0].mxu0
        %v5502 = vadd.f32 0.0, %v5501
        %v5503 = vpop.f32.mrb[0].mxu0
        %v5504 = vadd.f32 0.0, %v5503
        %v5505 = vpop.f32.mrb[0].mxu0
        %v5506 = vpop.f32.mrb[0].mxu0
        %5507 = vdwg.mxu0
        %v5508 = vadd.f32 %v5376, %v5502
        %v5509 = vadd.f32 %v5377, %v5504
        %5510 = vrot.lane.b32.xlu0 %v4848, 15
        %v5511 = vpop.permute.xlu0 %5510
        %5512 = vrot.lane.b32.xlu0 %v4852, 15
        %v5513 = vpop.permute.xlu0 %5512
        %v5514 = vsel %vm5145, %v5511, %v5513
        %vm5515 = vcmp.ne.s16.totalorder %v5511, 0
        %vm5516 = vcmp.ne.s16.totalorder %v5514, 0
        %vm5517 = vcmp.ne.s16.totalorder %v5513, 0
        %v5518 = vsel %vm5515, %v5378, 0
        %v5519 = vsel %vm5516, %v5379, 0
        %v5520 = vsel %vm5517, %v5380, 0
        %v5521 = vsel %vm5515, %v5381, 0
        %v5522 = vsel %vm5516, %v5382, 0
        %v5523 = vsel %vm5517, %v5383, 0
        %v5524 = vsel %vm5515, %v5384, 0
        %v5525 = vsel %vm5516, %v5385, 0
        %v5526 = vsel %vm5517, %v5386, 0
        %v5527 = vsel %vm5515, %v5387, 0
        %v5528 = vsel %vm5516, %v5388, 0
        %v5529 = vsel %vm5517, %v5389, 0
        %s5530 = scalar_lea.vmem %s3, 24
        %v5531 = vld [vmem:[%s5530] sm:$0xf]
        %5544 = vrot.lane.b32.xlu0 %v5518, 113
        %v5545 = vpop.permute.xlu0 %5544
        %5546 = vrot.lane.b32.xlu0 %v5519, 113
        %v5547 = vpop.permute.xlu0 %5546
        %5548 = vrot.lane.b32.xlu0 %v5520, 113
        %v5549 = vpop.permute.xlu0 %5548
        %5550 = vrot.lane.b32.xlu0 %v5521, 113
        %v5551 = vpop.permute.xlu0 %5550
        %5552 = vrot.lane.b32.xlu0 %v5522, 113
        %v5553 = vpop.permute.xlu0 %5552
        %5554 = vrot.lane.b32.xlu0 %v5523, 113
        %v5555 = vpop.permute.xlu0 %5554
        %5556 = vrot.lane.b32.xlu0 %v5524, 113
        %v5557 = vpop.permute.xlu0 %5556
        %5558 = vrot.lane.b32.xlu0 %v5525, 113
        %v5559 = vpop.permute.xlu0 %5558
        %5560 = vrot.lane.b32.xlu0 %v5526, 113
        %v5561 = vpop.permute.xlu0 %5560
        %5562 = vrot.lane.b32.xlu0 %v5527, 113
        %v5563 = vpop.permute.xlu0 %5562
        %5564 = vrot.lane.b32.xlu0 %v5528, 113
        %v5565 = vpop.permute.xlu0 %5564
        %5566 = vrot.lane.b32.xlu0 %v5529, 113
        %v5567 = vpop.permute.xlu0 %5566
        %v5568 = vsel %vm5090, %v5545, %v5547
        %v5569 = vsel %vm5090, %v5547, %v5549
        %v5570 = vsel %vm5090, %v5551, %v5553
        %v5571 = vsel %vm5090, %v5553, %v5555
        %v5572 = vsel %vm5090, %v5557, %v5559
        %v5573 = vsel %vm5090, %v5559, %v5561
        %v5574 = vsel %vm5090, %v5563, %v5565
        %v5575 = vsel %vm5090, %v5565, %v5567
        %v5585 = vsel %vm4930, %v5531, 0
        %5587 = vmatprep.subr.bf16.mxu0 %v5569
        %5588 = vmatpush1.bf16.msra.mxu0 %v5568
        %5589 = vmatprep.subr.bf16.mxu0 %v5571
        %5590 = vmatpush1.bf16.msra.mxu0 %v5570
        %5591 = vmatprep.subr.bf16.mxu0 %v5573
        %5592 = vmatpush1.bf16.msra.mxu0 %v5572
        %5593 = vmatprep.subr.bf16.mxu0 %v5575
        %5594 = vmatpush1.bf16.msra.mxu0 %v5574
        %5595 = vmatprep.subr.bf16.mxu0 0
        %5596 = vmatpush1.bf16.msra.mxu0 0
        %5597 = vmatprep.subr.bf16.mxu0 0
        %5598 = vmatpush1.bf16.msra.mxu0 0
        %5599 = vmatprep.subr.bf16.mxu0 0
        %5600 = vmatpush1.bf16.msra.mxu0 0
        %5601 = vmatprep.subr.bf16.mxu0 0
        %5602 = vmatpush1.bf16.msra.mxu0 0
        %5603 = vmatprep.subr.bf16.mxu0 0
        %5604 = vmatpush1.bf16.msra.mxu0 0
        %5605 = vmatprep.subr.bf16.mxu0 0
        %5606 = vmatpush1.bf16.msra.mxu0 0
        %5607 = vmatprep.subr.bf16.mxu0 0
        %5608 = vmatpush1.bf16.msra.mxu0 0
        %5609 = vmatprep.subr.bf16.mxu0 0
        %5610 = vmatpush1.bf16.msra.mxu0 0
        %5611 = vmatprep.subr.bf16.mxu0 0
        %5612 = vmatpush1.bf16.msra.mxu0 0
        %5613 = vmatprep.subr.bf16.mxu0 0
        %5614 = vmatpush1.bf16.msra.mxu0 0
        %5615 = vmatprep.subr.bf16.mxu0 0
        %5616 = vmatpush1.bf16.msra.mxu0 0
        %5617 = vmatprep.subr.bf16.mxu0 0
        %5618 = vmatpush1.bf16.msra.mxu0 0
        %5619 = vmatprep.mubr.bf16.mxu0 0
        %5620 = vmatmul.mubr.bf16.gmra.mrb[0].mxu0 %v5585
        %v5621 = vpop.f32.mrb[0].mxu0
        %v5622 = vadd.f32 0.0, %v5621
        %v5623 = vpop.f32.mrb[0].mxu0
        %v5624 = vadd.f32 0.0, %v5623
        %v5625 = vpop.f32.mrb[0].mxu0
        %v5626 = vpop.f32.mrb[0].mxu0
        %5627 = vdwg.mxu0
        %v5628 = vadd.f32 %v5508, %v5622
        %v5629 = vadd.f32 %v5509, %v5624
        %s5630 = scalar_lea.vmem %s3, 28
        %v5631 = vld [vmem:[%s5630] sm:$0xf]
        %5644 = vrot.lane.b32.xlu0 %v5378, 112
        %v5645 = vpop.permute.xlu0 %5644
        %5646 = vrot.lane.b32.xlu0 %v5379, 112
        %v5647 = vpop.permute.xlu0 %5646
        %5648 = vrot.lane.b32.xlu0 %v5380, 112
        %v5649 = vpop.permute.xlu0 %5648
        %5650 = vrot.lane.b32.xlu0 %v5381, 112
        %v5651 = vpop.permute.xlu0 %5650
        %5652 = vrot.lane.b32.xlu0 %v5382, 112
        %v5653 = vpop.permute.xlu0 %5652
        %5654 = vrot.lane.b32.xlu0 %v5383, 112
        %v5655 = vpop.permute.xlu0 %5654
        %5656 = vrot.lane.b32.xlu0 %v5384, 112
        %v5657 = vpop.permute.xlu0 %5656
        %5658 = vrot.lane.b32.xlu0 %v5385, 112
        %v5659 = vpop.permute.xlu0 %5658
        %5660 = vrot.lane.b32.xlu0 %v5386, 112
        %v5661 = vpop.permute.xlu0 %5660
        %5662 = vrot.lane.b32.xlu0 %v5387, 112
        %v5663 = vpop.permute.xlu0 %5662
        %5664 = vrot.lane.b32.xlu0 %v5388, 112
        %v5665 = vpop.permute.xlu0 %5664
        %5666 = vrot.lane.b32.xlu0 %v5389, 112
        %v5667 = vpop.permute.xlu0 %5666
        %vm5668 = vcmask 916480
        %v5669 = vsel %vm5668, %v5645, %v5647
        %v5670 = vsel %vm5668, %v5647, %v5649
        %v5671 = vsel %vm5668, %v5651, %v5653
        %v5672 = vsel %vm5668, %v5653, %v5655
        %v5673 = vsel %vm5668, %v5657, %v5659
        %v5674 = vsel %vm5668, %v5659, %v5661
        %v5675 = vsel %vm5668, %v5663, %v5665
        %v5676 = vsel %vm5668, %v5665, %v5667
        %v5686 = vsel %vm4930, %v5631, 0
        %5688 = vmatprep.subr.bf16.mxu0 %v5670
        %5689 = vmatpush1.bf16.msra.mxu0 %v5669
        %5690 = vmatprep.subr.bf16.mxu0 %v5672
        %5691 = vmatpush1.bf16.msra.mxu0 %v5671
        %5692 = vmatprep.subr.bf16.mxu0 %v5674
        %5693 = vmatpush1.bf16.msra.mxu0 %v5673
        %5694 = vmatprep.subr.bf16.mxu0 %v5676
        %5695 = vmatpush1.bf16.msra.mxu0 %v5675
        %5696 = vmatprep.subr.bf16.mxu0 0
        %5697 = vmatpush1.bf16.msra.mxu0 0
        %5698 = vmatprep.subr.bf16.mxu0 0
        %5699 = vmatpush1.bf16.msra.mxu0 0
        %5700 = vmatprep.subr.bf16.mxu0 0
        %5701 = vmatpush1.bf16.msra.mxu0 0
        %5702 = vmatprep.subr.bf16.mxu0 0
        %5703 = vmatpush1.bf16.msra.mxu0 0
        %5704 = vmatprep.subr.bf16.mxu0 0
        %5705 = vmatpush1.bf16.msra.mxu0 0
        %5706 = vmatprep.subr.bf16.mxu0 0
        %5707 = vmatpush1.bf16.msra.mxu0 0
        %5708 = vmatprep.subr.bf16.mxu0 0
        %5709 = vmatpush1.bf16.msra.mxu0 0
        %5710 = vmatprep.subr.bf16.mxu0 0
        %5711 = vmatpush1.bf16.msra.mxu0 0
        %5712 = vmatprep.subr.bf16.mxu0 0
        %5713 = vmatpush1.bf16.msra.mxu0 0
        %5714 = vmatprep.subr.bf16.mxu0 0
        %5715 = vmatpush1.bf16.msra.mxu0 0
        %5716 = vmatprep.subr.bf16.mxu0 0
        %5717 = vmatpush1.bf16.msra.mxu0 0
        %5718 = vmatprep.subr.bf16.mxu0 0
        %5719 = vmatpush1.bf16.msra.mxu0 0
        %5720 = vmatprep.mubr.bf16.mxu0 0
        %5721 = vmatmul.mubr.bf16.gmra.mrb[0].mxu0 %v5686
        %v5722 = vpop.f32.mrb[0].mxu0
        %v5723 = vadd.f32 0.0, %v5722
        %v5724 = vpop.f32.mrb[0].mxu0
        %v5725 = vadd.f32 0.0, %v5724
        %v5726 = vpop.f32.mrb[0].mxu0
        %v5727 = vpop.f32.mrb[0].mxu0
        %5728 = vdwg.mxu0
        %v5729 = vadd.f32 %v5628, %v5723
        %v5730 = vadd.f32 %v5629, %v5725
        %5731 = vrot.lane.b32.xlu0 %v5081, 17
        %v5732 = vpop.permute.xlu0 %5731
        %5733 = vrot.lane.b32.xlu0 %v5085, 17
        %v5734 = vpop.permute.xlu0 %5733
        %v5735 = vsel %vm5011, %v5732, %v5734
        %vm5736 = vcmp.ne.s16.totalorder %v5732, 0
        %vm5737 = vcmp.ne.s16.totalorder %v5735, 0
        %vm5738 = vcmp.ne.s16.totalorder %v5734, 0
        %v5739 = vsel %vm5736, %v5378, 0
        %v5740 = vsel %vm5737, %v5379, 0
        %v5741 = vsel %vm5738, %v5380, 0
        %v5742 = vsel %vm5736, %v5381, 0
        %v5743 = vsel %vm5737, %v5382, 0
        %v5744 = vsel %vm5738, %v5383, 0
        %v5745 = vsel %vm5736, %v5384, 0
        %v5746 = vsel %vm5737, %v5385, 0
        %v5747 = vsel %vm5738, %v5386, 0
        %v5748 = vsel %vm5736, %v5387, 0
        %v5749 = vsel %vm5737, %v5388, 0
        %v5750 = vsel %vm5738, %v5389, 0
        %s5751 = scalar_lea.vmem %s3, 32
        %v5752 = vld [vmem:[%s5751] sm:$0xf]
        %5765 = vrot.lane.b32.xlu0 %v5739, 111
        %v5766 = vpop.permute.xlu0 %5765
        %5767 = vrot.lane.b32.xlu0 %v5740, 111
        %v5768 = vpop.permute.xlu0 %5767
        %5769 = vrot.lane.b32.xlu0 %v5741, 111
        %v5770 = vpop.permute.xlu0 %5769
        %5771 = vrot.lane.b32.xlu0 %v5742, 111
        %v5772 = vpop.permute.xlu0 %5771
        %5773 = vrot.lane.b32.xlu0 %v5743, 111
        %v5774 = vpop.permute.xlu0 %5773
        %5775 = vrot.lane.b32.xlu0 %v5744, 111
        %v5776 = vpop.permute.xlu0 %5775
        %5777 = vrot.lane.b32.xlu0 %v5745, 111
        %v5778 = vpop.permute.xlu0 %5777
        %5779 = vrot.lane.b32.xlu0 %v5746, 111
        %v5780 = vpop.permute.xlu0 %5779
        %5781 = vrot.lane.b32.xlu0 %v5747, 111
        %v5782 = vpop.permute.xlu0 %5781
        %5783 = vrot.lane.b32.xlu0 %v5748, 111
        %v5784 = vpop.permute.xlu0 %5783
        %5785 = vrot.lane.b32.xlu0 %v5749, 111
        %v5786 = vpop.permute.xlu0 %5785
        %5787 = vrot.lane.b32.xlu0 %v5750, 111
        %v5788 = vpop.permute.xlu0 %5787
        %v5789 = vsel %vm4857, %v5766, %v5768
        %v5790 = vsel %vm4857, %v5768, %v5770
        %v5791 = vsel %vm4857, %v5772, %v5774
        %v5792 = vsel %vm4857, %v5774, %v5776
        %v5793 = vsel %vm4857, %v5778, %v5780
        %v5794 = vsel %vm4857, %v5780, %v5782
        %v5795 = vsel %vm4857, %v5784, %v5786
        %v5796 = vsel %vm4857, %v5786, %v5788
        %v5806 = vsel %vm4930, %v5752, 0
        %5808 = vmatprep.subr.bf16.mxu0 %v5790
        %5809 = vmatpush1.bf16.msra.mxu0 %v5789
        %5810 = vmatprep.subr.bf16.mxu0 %v5792
        %5811 = vmatpush1.bf16.msra.mxu0 %v5791
        %5812 = vmatprep.subr.bf16.mxu0 %v5794
        %5813 = vmatpush1.bf16.msra.mxu0 %v5793
        %5814 = vmatprep.subr.bf16.mxu0 %v5796
        %5815 = vmatpush1.bf16.msra.mxu0 %v5795
        %5816 = vmatprep.subr.bf16.mxu0 0
        %5817 = vmatpush1.bf16.msra.mxu0 0
        %5818 = vmatprep.subr.bf16.mxu0 0
        %5819 = vmatpush1.bf16.msra.mxu0 0
        %5820 = vmatprep.subr.bf16.mxu0 0
        %5821 = vmatpush1.bf16.msra.mxu0 0
        %5822 = vmatprep.subr.bf16.mxu0 0
        %5823 = vmatpush1.bf16.msra.mxu0 0
        %5824 = vmatprep.subr.bf16.mxu0 0
        %5825 = vmatpush1.bf16.msra.mxu0 0
        %5826 = vmatprep.subr.bf16.mxu0 0
        %5827 = vmatpush1.bf16.msra.mxu0 0
        %5828 = vmatprep.subr.bf16.mxu0 0
        %5829 = vmatpush1.bf16.msra.mxu0 0
        %5830 = vmatprep.subr.bf16.mxu0 0
        %5831 = vmatpush1.bf16.msra.mxu0 0
        %5832 = vmatprep.subr.bf16.mxu0 0
        %5833 = vmatpush1.bf16.msra.mxu0 0
        %5834 = vmatprep.subr.bf16.mxu0 0
        %5835 = vmatpush1.bf16.msra.mxu0 0
        %5836 = vmatprep.subr.bf16.mxu0 0
        %5837 = vmatpush1.bf16.msra.mxu0 0
        %5838 = vmatprep.subr.bf16.mxu0 0
        %5839 = vmatpush1.bf16.msra.mxu0 0
        %5840 = vmatprep.mubr.bf16.mxu0 0
        %5841 = vmatmul.mubr.bf16.gmra.mrb[0].mxu0 %v5806
        %v5842 = vpop.f32.mrb[0].mxu0
        %v5843 = vadd.f32 0.0, %v5842
        %v5844 = vpop.f32.mrb[0].mxu0
        %v5845 = vadd.f32 0.0, %v5844
        %v5846 = vpop.f32.mrb[0].mxu0
        %v5847 = vpop.f32.mrb[0].mxu0
        %5848 = vdwg.mxu0
        %v5849 = vadd.f32 %v5729, %v5843
        %v5850 = vadd.f32 %v5730, %v5845
        %v5851 = vadd.f32 %v5849, %v223
        %v5852 = vadd.f32 %v5850, %v227
        %v5855 = vcombine.low %v5851, %v5852
        %v5857 = vunpack.c.l.s4 1966171168
        %v5858 = vunpack.c.0.s8 %v5857
        %v5859 = vlaneseq
        %v5860 = vshrl.u32 %v5859, 7
        %v5861 = vsub.s32 %v5858, %v5860
        %v5862 = vrot.slane %v5855, %v5861
        %v5864 = vunpack.c.l.s4 1966171168
        %v5865 = vunpack.c.0.s8 %v5864
        %v5866 = vlaneseq
        %v5867 = vshrl.u32 %v5866, 7
        %v5868 = vsub.s32 %v5865, %v5867
        %v5869 = vrot.slane %v5862, %v5868
        %5871 = vst.msk [vmem:[%s188] sm:$0x3] %vm253, %v5869
        %s5872 = sand.u32 %s115, 1
        %s5873 = scalar_lea.sflag [#allocation6], %s5872
        %s5874 = sand.u32 %s115, 1
        %s5875 = smul.addr %s5874, 2
        %s5876 = scalar_lea.vmem [#allocation5], %s5875
        // Predicated region
        $region44: #{tpu_custom_call.1} parent=35 // pred_check
          %p5877 = pneg %p125
        $region45: #{tpu_custom_call.1} parent=35 // pred_check_branch
          %5879 = sbr.rel (%p5877) target = $region47
        $region46: #{tpu_custom_call.1} parent=35 // pred_region
          %s5881 = ssub.s32 32, 32
          %5882 = vsyncadd %s5873, %s5881
          %s5883 = smul.addr %s18, 2
          %s5884 = smul.addr %s5883, 16
          %s5885 = scalar_lea.hbm %s4, %s5884
          %s5887 = sshll.u32 %s5876, 4
          %s5888 = int_to_ptr.vmem [resolvable:$true] %s5887
          %5890 = dma.vmem_to_hbm [thread:$0]  %s5888, 32, %s5885, %s5873
        $region47: #{tpu_custom_call.1} parent=35 // pred_fallthru
          _
      $region36: #{tpu_custom_call.1} parent=5 // pred_fallthru
        _
      %p5891 = scmp.le.s32.totalorder 2, %s13
      // Predicated region
      $region48: #{tpu_custom_call.1} parent=5 // pred_check
        %p5892 = pneg %p5891
      $region49: #{tpu_custom_call.1} parent=5 // pred_check_branch
        %5894 = sbr.rel (%p5892) target = $region51
      $region50: #{tpu_custom_call.1} parent=5 // pred_region
        %s5895 = ssub.s32 %s13, 2
        // Predicated region
        $region52: #{tpu_custom_call.1} parent=50 // pred_check
          %p5896 = pneg %p131
        $region53: #{tpu_custom_call.1} parent=50 // pred_check_branch
          %5898 = sbr.rel (%p5896) target = $region55
        $region54: #{tpu_custom_call.1} parent=50 // pred_region
          %s5899 = sand.u32 %s116, 1
          %s5900 = scalar_lea.sflag [#allocation6], %s5899
          %s5901 = sand.u32 %s116, 1
          %s5902 = smul.addr %s5901, 2
          %s5903 = scalar_lea.vmem [#allocation5], %s5902
          %5904 = dma.done %s5900, 32
        $region55: #{tpu_custom_call.1} parent=50 // pred_fallthru
          _
      $region51: #{tpu_custom_call.1} parent=5 // pred_fallthru
        _
    $region6: #{tpu_custom_call.1} parent=1 // loop_footer
      %s17 = sadd.s32 1, %s13
    $region7: #{tpu_custom_call.1} parent=1 // loop_footer_branch
      %12 = sbr.rel target = $region3
    $region8: #{tpu_custom_call.1} parent=1 // loop_exit
      _
    %5905 = vsyncpa [#allocation6], 1
    %s5906 = scalar_lea.sflag [#allocation6], 1
    %5907 = vsyncpa %s5906, 1

</llo_original>
